<compile_context>
chip_gen: v7x
topology: tpu7x:2x2x1
jax: 0.10.0
libtpu: 0.0.40
codegen_flags: <defaults>
</compile_context>

<pallas_src>
import functools
import inspect

import jax
import jax.numpy as jnp
import numpy as np
from jax import lax
from jax.experimental import pallas as pl
from jax.experimental.pallas import tpu as pltpu


# ----------------------------------------------------------------------------- utilities


def _device_kind() -> str:
    try:
        return jax.devices()[0].device_kind.lower()
    except Exception:
        return ""


def _is_multicore_tc() -> bool:
    """True on parts with >1 TensorCore per chip sharing the grid (v7x)."""
    return "v7" in _device_kind()


def _vmem_cap_bytes() -> int:
    # v7x: 64 MiB physical per TC -> leave headroom (48 MiB).
    # v5e/v6e: 128 MiB physical -> ~100 MiB usable.
    return (48 if _is_multicore_tc() else 100) * 1024 * 1024


def _supports_buffered() -> bool:
    """Feature-detect pl.Buffered / BlockSpec(pipeline_mode=...) without swallowing trace errors."""
    if not hasattr(pl, "Buffered"):
        return False
    try:
        params = inspect.signature(pl.BlockSpec.__init__).parameters
    except (TypeError, ValueError):
        return False
    return "pipeline_mode" in params


def _largest_divisor(n, target):
    target = max(1, min(n, target))
    for c in range(target, 0, -1):
        if n % c == 0:
            return c
    return 1


# -------------------------------------------------------------------------------- kernel


def _rhn_kernel(xp_ref, r_ref, b_ref, s0_ref, out_ref, sfin_ref,
                *, num_layers, hidden, time_block, unroll):
    """One grid step == `time_block` timesteps of the RHN recurrence for one batch shard.

    xp_ref : (Tb, Bb, 3H)      hoisted input projections [h|t|c], layer-0 bias folded in
    r_ref  : (L, H, 3H)        fused recurrent weights, (in, out) layout, packed [h|t|c]
    b_ref  : (L, 1, 3H) f32    fused recurrent biases (layer-0 row unused: folded into xp)
    s0_ref : (Bb, H)           initial state for this batch shard
    out_ref: (Tb, Bb, H)       state after each timestep in this block
    sfin_ref: (Bb, H) f32      carried state; resident across the time axis (accumulator)
    """
    H = hidden
    t_blk = pl.program_id(1)

    @pl.when(t_blk == 0)
    def _():
        sfin_ref[...] = s0_ref[...].astype(jnp.float32)

    bb = s0_ref.shape[0]
    # Hoist per-layer bias loads AND their broadcasts out of the (unrolled) time loop:
    # JAX does not CSE broadcast_in_dim, so doing it inside would re-materialize tb*(L-1)x.
    biases = [jnp.broadcast_to(b_ref[l], (bb, 3 * H)) for l in range(1, num_layers)]

    def step(i, s):
        gx = xp_ref[i].astype(jnp.float32)                      # (Bb, 3H), includes bias[0]
        for l in range(num_layers):                             # static unroll; L is small
            # ONE fused MXU push per layer: (Bb, H) @ (H, 3H) -> f32 accumulate.
            g = jnp.dot(s.astype(r_ref.dtype), r_ref[l],
                        preferred_element_type=jnp.float32)
            g = g + (gx if l == 0 else biases[l - 1])
            h = jnp.tanh(g[:, :H])
            t = jax.nn.sigmoid(g[:, H:2 * H])
            c = jax.nn.sigmoid(g[:, 2 * H:])
            s = h * t + s * c
        out_ref[i] = s.astype(out_ref.dtype)
        return s

    # Partial unroll: keeps LLO scheduling visibility without blowing up vreg live ranges
    # (and spills) when the time block is large.
    sfin_ref[...] = lax.fori_loop(0, time_block, step, sfin_ref[...], unroll=unroll)


# --------------------------------------------------------------------------- pallas_call


@functools.partial(
    jax.jit,
    static_argnames=("num_layers", "tb", "bb", "compute_dtype",
                     "single_buffer_weights", "vmem_limit"))
def _rhn_forward_impl(x_bti, s0, w_x, r_w, r_b, *, num_layers, tb, bb, compute_dtype,
                      single_buffer_weights, vmem_limit):
    B, T, I = x_bti.shape
    H = s0.shape[1]
    L = num_layers
    G = 3 * H
    n_b = B // bb
    n_t = T // tb
    cdt = jnp.dtype(compute_dtype)

    # Pack the gates [h, t, c] along the output axis so each layer is ONE (H, 3H) matmul.
    w_cat = jnp.transpose(w_x, (1, 0, 2)).reshape(I, G)                     # (I, 3H)
    r_cat = jnp.transpose(r_w, (1, 2, 0, 3)).reshape(L, H, G).astype(cdt)   # (L, H, 3H)
    b_cat = jnp.transpose(r_b, (1, 0, 2)).reshape(L, 1, G).astype(jnp.float32)

    # Hoisted input projection for ALL timesteps as one big MXU-efficient matmul, laid out
    # pre-sharded (n_b, T, bb, 3H) so each streamed block is a contiguous HBM DMA. The
    # layer-0 recurrent bias is folded in here; the result is rounded ONCE to compute dtype.
    x_sh = x_bti.reshape(n_b, bb, T, I)
    xp = jnp.einsum("nbti,ig->ntbg", x_sh, w_cat,
                    preferred_element_type=jnp.float32)
    xp = (xp + b_cat[0]).astype(cdt)                                        # (n_b,T,bb,3H)

    if single_buffer_weights:
        # Resident tensors (constant index_map): single-buffer them so the default
        # double-buffering does not silently double their VMEM footprint.
        r_spec = pl.BlockSpec((L, H, G), lambda b, t: (0, 0, 0),
                              pipeline_mode=pl.Buffered(1))
        b_spec = pl.BlockSpec((L, 1, G), lambda b, t: (0, 0, 0),
                              pipeline_mode=pl.Buffered(1))
    else:
        r_spec = pl.BlockSpec((L, H, G), lambda b, t: (0, 0, 0))
        b_spec = pl.BlockSpec((L, 1, G), lambda b, t: (0, 0, 0))

    unroll = max(1, min(tb, 8))

    out_sh, s_final = pl.pallas_call(
        functools.partial(_rhn_kernel, num_layers=L, hidden=H, time_block=tb,
                          unroll=unroll),
        out_shape=(
            jax.ShapeDtypeStruct((n_b, T, bb, H), x_bti.dtype),
            jax.ShapeDtypeStruct((B, H), jnp.float32),
        ),
        grid_spec=pltpu.PrefetchScalarGridSpec(
            num_scalar_prefetch=0,
            grid=(n_b, n_t),
            in_specs=[
                pl.BlockSpec((None, tb, bb, G), lambda b, t: (b, t, 0, 0)),  # xp (contig)
                r_spec,                                                      # fused weights
                b_spec,                                                      # fused biases
                pl.BlockSpec((bb, H), lambda b, t: (b, 0)),                  # initial state
            ],
            out_specs=[
                pl.BlockSpec((None, tb, bb, H), lambda b, t: (b, t, 0, 0)),  # per-step states
                pl.BlockSpec((bb, H), lambda b, t: (b, 0)),                  # carried state
            ],
        ),
        compiler_params=pltpu.CompilerParams(
            # Batch shards are independent ("parallel" -> v7x megacore); time is a strict
            # recurrence ("arbitrary", innermost).
            dimension_semantics=("parallel", "arbitrary"),
            vmem_limit_bytes=vmem_limit,
        ),
    )(xp, r_cat, b_cat, s0)

    outputs = jnp.transpose(out_sh, (0, 2, 1, 3)).reshape(B, T, H)  # PyTorch (B, T, H)
    return outputs, s_final       # carried final state stays f32 (no re-rounding)


# ------------------------------------------------------------------------------- wrapper


def rhn_lin_forward(x_bti, s0, w_x, r_w, r_b, *, num_layers,
                    time_block=None, batch_block=None, compute_dtype=None):
    """Pallas RhnLin forward.

    x_bti : (B, T, I)    same (batch, seq, features) convention as the PyTorch module
    s0    : (B, H)
    w_x   : (3, I, H)    [w_h, w_t, w_c]
    r_w   : (3, L, H, H) recurrent weights, (in, out) layout (i.e. nn.Linear weight .T)
    r_b   : (3, L, H)    recurrent biases
    compute_dtype : dtype for the resident weights / streamed projection (e.g. bf16);
                    state and elementwise math stay f32. Defaults to x_bti.dtype.
    returns (outputs (B, T, H), final state (B, H) f32) like the PyTorch module.
    """
    B, T, _ = x_bti.shape
    H = s0.shape[1]
    G = 3 * H
    if compute_dtype is None:
        compute_dtype = x_bti.dtype
    compute_dtype = jnp.dtype(compute_dtype)

    # ---- batch blocking: split across the "parallel" axis ONLY on multi-TC parts (v7x).
    # On single-TC v5e/v6e the split just shrinks the matmul M dim and doubles the serial
    # time recurrence. bb is the only free MXU M dimension -> keep it as large as possible.
    if batch_block is not None:
        bb = batch_block
    elif _is_multicore_tc() and B % 16 == 0:
        bb = B // 2
    else:
        bb = B
    if B % bb != 0:
        raise ValueError(f"batch_block={bb} must divide batch size {B}")

    # ---- time blocking: derive tb from a per-generation VMEM budget so streamed block
    # DMAs are as large as possible (amortizing ~0.35us/grid-step + per-DMA overhead).
    xp_isz = compute_dtype.itemsize
    out_isz = jnp.dtype(x_bti.dtype).itemsize
    resident = num_layers * H * G * xp_isz + num_layers * G * 4     # weights + f32 biases
    single_buffer_weights = _supports_buffered() and resident > 2 * 1024 * 1024
    weight_bufs = 1 if single_buffer_weights else 2
    state_bytes = 4 * bb * H * 4
    cap = _vmem_cap_bytes()
    stream_budget = max(1, cap - weight_bufs * resident - state_bytes - (2 << 20))
    bytes_per_step = bb * G * xp_isz + bb * H * out_isz             # xp block + out block
    tb_max = max(1, stream_budget // (2 * bytes_per_step))          # double-buffered
    if time_block is not None:
        tb = time_block
    else:
        tb = _largest_divisor(T, min(T, tb_max, 512))
    if T % tb != 0:
        raise ValueError(f"time_block={tb} must divide sequence length {T}")

    # Explicit VMEM limit only when the footprint exceeds the default scoped limit;
    # capped at ~48 MiB on v7x (64 MiB physical) and ~100 MiB on v5e/v6e (128 MiB).
    est = weight_bufs * resident + 2 * tb * bytes_per_step + state_bytes
    vmem_limit = None
    if est > 12 * 1024 * 1024:
        vmem_limit = int(min(est + est // 2, cap))

    return _rhn_forward_impl(
        x_bti, s0, w_x, r_w, r_b, num_layers=num_layers, tb=tb, bb=bb,
        compute_dtype=str(compute_dtype), single_buffer_weights=single_buffer_weights,
        vmem_limit=vmem_limit)


# ----------------------------------------------------------------------------- reference


def rhn_lin_ref(x_bti, s0, w_x, r_w, r_b, num_layers):
    """Pure-JAX reference mirroring the PyTorch forward exactly (dropout = identity)."""
    B, T, _ = x_bti.shape
    s = s0
    outs = []
    for t in range(T):
        xt = x_bti[:, t, :]
        whx = xt @ w_x[0]
        wtx = xt @ w_x[1]
        wcx = xt @ w_x[2]
        for l in range(num_layers):
            rh = s @ r_w[0, l] + r_b[0, l]
            rt = s @ r_w[1, l] + r_b[1, l]
            rc = s @ r_w[2, l] + r_b[2, l]
            if l == 0:
                rh = rh + whx
                rt = rt + wtx
                rc = rc + wcx
            h = jnp.tanh(rh)
            tg = jax.nn.sigmoid(rt)
            c = jax.nn.sigmoid(rc)
            s = h * tg + s * c
        outs.append(s)
    return jnp.stack(outs, 1), s


if __name__ == "__main__":
    # Small deterministic setup consistent with the module:
    # batch=8, seq=8, input_size=32, hidden_size=32, num_layers=3
    B, T, I, H, L = 8, 8, 32, 32, 3

    key = jax.random.PRNGKey(0)
    k_x, k_s, k_wx, k_rw, k_rb = jax.random.split(key, 5)
    x = jax.random.normal(k_x, (B, T, I), jnp.float32)
    s0 = 0.1 * jax.random.normal(k_s, (B, H), jnp.float32)
    w_x = jax.random.normal(k_wx, (3, I, H), jnp.float32) / jnp.sqrt(I).astype(jnp.float32)
    r_w = jax.random.normal(k_rw, (3, L, H, H), jnp.float32) / jnp.sqrt(H).astype(jnp.float32)
    r_b = 0.1 * jax.random.normal(k_rb, (3, L, H), jnp.float32)

    ref_out, ref_s = rhn_lin_ref(x, s0, w_x, r_w, r_b, L)

    # Exact-semantics path (compute dtype == input dtype == f32).
    out, s_final = rhn_lin_forward(x, s0, w_x, r_w, r_b, num_layers=L)
    jax.block_until_ready(out)
    jax.block_until_ready(s_final)
    assert np.allclose(np.asarray(out), np.asarray(ref_out), rtol=1e-4, atol=1e-4)
    assert np.allclose(np.asarray(s_final), np.asarray(ref_s), rtol=1e-4, atol=1e-4)

    # Fast path (bf16 resident weights + streamed projection, f32 state/elementwise math).
    out_bf, s_bf = rhn_lin_forward(x, s0, w_x, r_w, r_b, num_layers=L,
                                   compute_dtype=jnp.bfloat16)
    jax.block_until_ready(out_bf)
    jax.block_until_ready(s_bf)
    assert np.allclose(np.asarray(out_bf), np.asarray(ref_out), rtol=0.0, atol=1e-1)
    assert np.allclose(np.asarray(s_bf), np.asarray(ref_s), rtol=0.0, atol=1e-1)

    print("KERNEL_OK")
</pallas_src>

<mosaic_0001>
module attributes {stable_mosaic.version = 11 : i64} {
  func.func @_rhn_kernel(%arg0: i32, %arg1: i32, %arg2: memref<1x8x8x96xf32, #tpu.memory_space<vmem>>, %arg3: memref<3x32x96xf32, #tpu.memory_space<vmem>>, %arg4: memref<3x1x96xf32, #tpu.memory_space<vmem>>, %arg5: memref<8x32xf32, #tpu.memory_space<vmem>>, %arg6: memref<1x8x8x32xf32, #tpu.memory_space<vmem>>, %arg7: memref<8x32xf32, #tpu.memory_space<vmem>>) attributes {dimension_semantics = [#tpu.dimension_semantics<parallel>, #tpu.dimension_semantics<arbitrary>], iteration_bounds = array<i64: 1, 1>, scalar_prefetch = 0 : i64, scratch_operands = 0 : i64, tpu.core_type = #tpu.core_type<tc>, window_params = [{transform_indices = @transform_0, window_bounds = array<i64: 1, 8, 8, 96>}, {pipeline_mode = #tpu.pipeline_mode<synchronous>, transform_indices = @transform_1, window_bounds = array<i64: 3, 32, 96>}, {pipeline_mode = #tpu.pipeline_mode<synchronous>, transform_indices = @transform_2, window_bounds = array<i64: 3, 1, 96>}, {transform_indices = @transform_3, window_bounds = array<i64: 8, 32>}, {transform_indices = @transform_4, window_bounds = array<i64: 1, 8, 8, 32>}, {transform_indices = @transform_5, window_bounds = array<i64: 8, 32>}]} {
    %c0_i32 = arith.constant 0 : i32
    %0 = arith.cmpi eq, %arg1, %c0_i32 : i32
    %1 = arith.extui %0 : i1 to i32
    %c0_i32_0 = arith.constant 0 : i32
    %2 = arith.cmpi ne, %1, %c0_i32_0 : i32
    scf.if %2 {
      %c0_200 = arith.constant 0 : index
      %c0_201 = arith.constant 0 : index
      %573 = vector.load %arg5[%c0_200, %c0_201] : memref<8x32xf32, #tpu.memory_space<vmem>>, vector<8x32xf32>
      %c0_202 = arith.constant 0 : index
      %c0_203 = arith.constant 0 : index
      %574 = vector.load %arg7[%c0_202, %c0_203] : memref<8x32xf32, #tpu.memory_space<vmem>>, vector<8x32xf32>
      tpu.vector_store %arg7[%c0_202, %c0_203], %573 {strides = array<i32>} : memref<8x32xf32, #tpu.memory_space<vmem>>, vector<8x32xf32>,
    } else {
    }
    %c1 = arith.constant 1 : index
    %c0 = arith.constant 0 : index
    %c0_1 = arith.constant 0 : index
    %3 = vector.load %arg4[%c1, %c0, %c0_1] : memref<3x1x96xf32, #tpu.memory_space<vmem>>, vector<1x1x96xf32>
    %4 = vector.shape_cast %3 : vector<1x1x96xf32> to vector<1x96xf32>
    %5 = vector.shape_cast %4 : vector<1x96xf32> to vector<1x96xf32>
    %6 = vector.broadcast %5 : vector<1x96xf32> to vector<8x96xf32>
    %c2 = arith.constant 2 : index
    %c0_2 = arith.constant 0 : index
    %c0_3 = arith.constant 0 : index
    %7 = vector.load %arg4[%c2, %c0_2, %c0_3] : memref<3x1x96xf32, #tpu.memory_space<vmem>>, vector<1x1x96xf32>
    %8 = vector.shape_cast %7 : vector<1x1x96xf32> to vector<1x96xf32>
    %9 = vector.shape_cast %8 : vector<1x96xf32> to vector<1x96xf32>
    %10 = vector.broadcast %9 : vector<1x96xf32> to vector<8x96xf32>
    %c0_4 = arith.constant 0 : index
    %c0_5 = arith.constant 0 : index
    %11 = vector.load %arg7[%c0_4, %c0_5] : memref<8x32xf32, #tpu.memory_space<vmem>>, vector<8x32xf32>
    %c0_i32_6 = arith.constant 0 : i32
    %c0_7 = arith.constant 0 : index
    %12 = arith.index_cast %c0_i32_6 : i32 to index
    %c0_8 = arith.constant 0 : index
    %c0_9 = arith.constant 0 : index
    %13 = vector.load %arg2[%c0_7, %12, %c0_8, %c0_9] : memref<1x8x8x96xf32, #tpu.memory_space<vmem>>, vector<1x1x8x96xf32>
    %14 = vector.shape_cast %13 : vector<1x1x8x96xf32> to vector<8x96xf32>
    %c0_10 = arith.constant 0 : index
    %c0_11 = arith.constant 0 : index
    %c0_12 = arith.constant 0 : index
    %15 = vector.load %arg3[%c0_10, %c0_11, %c0_12] : memref<3x32x96xf32, #tpu.memory_space<vmem>>, vector<1x32x96xf32>
    %16 = vector.shape_cast %15 : vector<1x32x96xf32> to vector<32x96xf32>
    %cst = arith.constant dense<0.000000e+00> : vector<8x96xf32>
    %17 = tpu.matmul %11, %16, %cst {dimension_numbers = #tpu.dot_dimension_numbers<[1], [0], [0], [1], [0, 0, 1, 1], [], []>} : vector<8x32xf32>, vector<32x96xf32>, vector<8x96xf32> -> vector<8x96xf32>
    %18 = arith.addf %17, %14 : vector<8x96xf32>
    %19 = vector.extract_strided_slice %18 {offsets = [0, 0], sizes = [8, 32], strides = [1, 1]} : vector<8x96xf32> to vector<8x32xf32>
    %20 = math.tanh %19 : vector<8x32xf32>
    %21 = vector.extract_strided_slice %18 {offsets = [0, 32], sizes = [8, 32], strides = [1, 1]} : vector<8x96xf32> to vector<8x32xf32>
    %22 = arith.negf %21 : vector<8x32xf32>
    %23 = math.exp %22 : vector<8x32xf32>
    %cst_13 = arith.constant 1.000000e+00 : f32
    %24 = vector.broadcast %cst_13 : f32 to vector<8x32xf32>
    %25 = arith.addf %24, %23 : vector<8x32xf32>
    %26 = arith.divf %24, %25 : vector<8x32xf32>
    %27 = vector.extract_strided_slice %18 {offsets = [0, 64], sizes = [8, 32], strides = [1, 1]} : vector<8x96xf32> to vector<8x32xf32>
    %28 = arith.negf %27 : vector<8x32xf32>
    %29 = math.exp %28 : vector<8x32xf32>
    %cst_14 = arith.constant 1.000000e+00 : f32
    %30 = vector.broadcast %cst_14 : f32 to vector<8x32xf32>
    %31 = arith.addf %30, %29 : vector<8x32xf32>
    %32 = arith.divf %30, %31 : vector<8x32xf32>
    %33 = arith.mulf %20, %26 : vector<8x32xf32>
    %34 = arith.mulf %11, %32 : vector<8x32xf32>
    %35 = arith.addf %33, %34 : vector<8x32xf32>
    %c1_15 = arith.constant 1 : index
    %c0_16 = arith.constant 0 : index
    %c0_17 = arith.constant 0 : index
    %36 = vector.load %arg3[%c1_15, %c0_16, %c0_17] : memref<3x32x96xf32, #tpu.memory_space<vmem>>, vector<1x32x96xf32>
    %37 = vector.shape_cast %36 : vector<1x32x96xf32> to vector<32x96xf32>
    %cst_18 = arith.constant dense<0.000000e+00> : vector<8x96xf32>
    %38 = tpu.matmul %35, %37, %cst_18 {dimension_numbers = #tpu.dot_dimension_numbers<[1], [0], [0], [1], [0, 0, 1, 1], [], []>} : vector<8x32xf32>, vector<32x96xf32>, vector<8x96xf32> -> vector<8x96xf32>
    %39 = arith.addf %38, %6 : vector<8x96xf32>
    %40 = vector.extract_strided_slice %39 {offsets = [0, 0], sizes = [8, 32], strides = [1, 1]} : vector<8x96xf32> to vector<8x32xf32>
    %41 = math.tanh %40 : vector<8x32xf32>
    %42 = vector.extract_strided_slice %39 {offsets = [0, 32], sizes = [8, 32], strides = [1, 1]} : vector<8x96xf32> to vector<8x32xf32>
    %43 = arith.negf %42 : vector<8x32xf32>
    %44 = math.exp %43 : vector<8x32xf32>
    %cst_19 = arith.constant 1.000000e+00 : f32
    %45 = vector.broadcast %cst_19 : f32 to vector<8x32xf32>
    %46 = arith.addf %45, %44 : vector<8x32xf32>
    %47 = arith.divf %45, %46 : vector<8x32xf32>
    %48 = vector.extract_strided_slice %39 {offsets = [0, 64], sizes = [8, 32], strides = [1, 1]} : vector<8x96xf32> to vector<8x32xf32>
    %49 = arith.negf %48 : vector<8x32xf32>
    %50 = math.exp %49 : vector<8x32xf32>
    %cst_20 = arith.constant 1.000000e+00 : f32
    %51 = vector.broadcast %cst_20 : f32 to vector<8x32xf32>
    %52 = arith.addf %51, %50 : vector<8x32xf32>
    %53 = arith.divf %51, %52 : vector<8x32xf32>
    %54 = arith.mulf %41, %47 : vector<8x32xf32>
    %55 = arith.mulf %35, %53 : vector<8x32xf32>
    %56 = arith.addf %54, %55 : vector<8x32xf32>
    %c2_21 = arith.constant 2 : index
    %c0_22 = arith.constant 0 : index
    %c0_23 = arith.constant 0 : index
    %57 = vector.load %arg3[%c2_21, %c0_22, %c0_23] : memref<3x32x96xf32, #tpu.memory_space<vmem>>, vector<1x32x96xf32>
    %58 = vector.shape_cast %57 : vector<1x32x96xf32> to vector<32x96xf32>
    %cst_24 = arith.constant dense<0.000000e+00> : vector<8x96xf32>
    %59 = tpu.matmul %56, %58, %cst_24 {dimension_numbers = #tpu.dot_dimension_numbers<[1], [0], [0], [1], [0, 0, 1, 1], [], []>} : vector<8x32xf32>, vector<32x96xf32>, vector<8x96xf32> -> vector<8x96xf32>
    %60 = arith.addf %59, %10 : vector<8x96xf32>
    %61 = vector.extract_strided_slice %60 {offsets = [0, 0], sizes = [8, 32], strides = [1, 1]} : vector<8x96xf32> to vector<8x32xf32>
    %62 = math.tanh %61 : vector<8x32xf32>
    %63 = vector.extract_strided_slice %60 {offsets = [0, 32], sizes = [8, 32], strides = [1, 1]} : vector<8x96xf32> to vector<8x32xf32>
    %64 = arith.negf %63 : vector<8x32xf32>
    %65 = math.exp %64 : vector<8x32xf32>
    %cst_25 = arith.constant 1.000000e+00 : f32
    %66 = vector.broadcast %cst_25 : f32 to vector<8x32xf32>
    %67 = arith.addf %66, %65 : vector<8x32xf32>
    %68 = arith.divf %66, %67 : vector<8x32xf32>
    %69 = vector.extract_strided_slice %60 {offsets = [0, 64], sizes = [8, 32], strides = [1, 1]} : vector<8x96xf32> to vector<8x32xf32>
    %70 = arith.negf %69 : vector<8x32xf32>
    %71 = math.exp %70 : vector<8x32xf32>
    %cst_26 = arith.constant 1.000000e+00 : f32
    %72 = vector.broadcast %cst_26 : f32 to vector<8x32xf32>
    %73 = arith.addf %72, %71 : vector<8x32xf32>
    %74 = arith.divf %72, %73 : vector<8x32xf32>
    %75 = arith.mulf %62, %68 : vector<8x32xf32>
    %76 = arith.mulf %56, %74 : vector<8x32xf32>
    %77 = arith.addf %75, %76 : vector<8x32xf32>
    %c0_27 = arith.constant 0 : index
    %78 = arith.index_cast %c0_i32_6 : i32 to index
    %c0_28 = arith.constant 0 : index
    %c0_29 = arith.constant 0 : index
    %79 = vector.load %arg6[%c0_27, %78, %c0_28, %c0_29] : memref<1x8x8x32xf32, #tpu.memory_space<vmem>>, vector<1x1x8x32xf32>
    %80 = vector.shape_cast %79 : vector<1x1x8x32xf32> to vector<8x32xf32>
    %81 = vector.shape_cast %77 : vector<8x32xf32> to vector<1x1x8x32xf32>
    tpu.vector_store %arg6[%c0_27, %78, %c0_28, %c0_29], %81 {strides = array<i32>} : memref<1x8x8x32xf32, #tpu.memory_space<vmem>>, vector<1x1x8x32xf32>,
    %c1_i32 = arith.constant 1 : i32
    %c0_30 = arith.constant 0 : index
    %82 = arith.index_cast %c1_i32 : i32 to index
    %c0_31 = arith.constant 0 : index
    %c0_32 = arith.constant 0 : index
    %83 = vector.load %arg2[%c0_30, %82, %c0_31, %c0_32] : memref<1x8x8x96xf32, #tpu.memory_space<vmem>>, vector<1x1x8x96xf32>
    %84 = vector.shape_cast %83 : vector<1x1x8x96xf32> to vector<8x96xf32>
    %c0_33 = arith.constant 0 : index
    %c0_34 = arith.constant 0 : index
    %c0_35 = arith.constant 0 : index
    %85 = vector.load %arg3[%c0_33, %c0_34, %c0_35] : memref<3x32x96xf32, #tpu.memory_space<vmem>>, vector<1x32x96xf32>
    %86 = vector.shape_cast %85 : vector<1x32x96xf32> to vector<32x96xf32>
    %cst_36 = arith.constant dense<0.000000e+00> : vector<8x96xf32>
    %87 = tpu.matmul %77, %86, %cst_36 {dimension_numbers = #tpu.dot_dimension_numbers<[1], [0], [0], [1], [0, 0, 1, 1], [], []>} : vector<8x32xf32>, vector<32x96xf32>, vector<8x96xf32> -> vector<8x96xf32>
    %88 = arith.addf %87, %84 : vector<8x96xf32>
    %89 = vector.extract_strided_slice %88 {offsets = [0, 0], sizes = [8, 32], strides = [1, 1]} : vector<8x96xf32> to vector<8x32xf32>
    %90 = math.tanh %89 : vector<8x32xf32>
    %91 = vector.extract_strided_slice %88 {offsets = [0, 32], sizes = [8, 32], strides = [1, 1]} : vector<8x96xf32> to vector<8x32xf32>
    %92 = arith.negf %91 : vector<8x32xf32>
    %93 = math.exp %92 : vector<8x32xf32>
    %cst_37 = arith.constant 1.000000e+00 : f32
    %94 = vector.broadcast %cst_37 : f32 to vector<8x32xf32>
    %95 = arith.addf %94, %93 : vector<8x32xf32>
    %96 = arith.divf %94, %95 : vector<8x32xf32>
    %97 = vector.extract_strided_slice %88 {offsets = [0, 64], sizes = [8, 32], strides = [1, 1]} : vector<8x96xf32> to vector<8x32xf32>
    %98 = arith.negf %97 : vector<8x32xf32>
    %99 = math.exp %98 : vector<8x32xf32>
    %cst_38 = arith.constant 1.000000e+00 : f32
    %100 = vector.broadcast %cst_38 : f32 to vector<8x32xf32>
    %101 = arith.addf %100, %99 : vector<8x32xf32>
    %102 = arith.divf %100, %101 : vector<8x32xf32>
    %103 = arith.mulf %90, %96 : vector<8x32xf32>
    %104 = arith.mulf %77, %102 : vector<8x32xf32>
    %105 = arith.addf %103, %104 : vector<8x32xf32>
    %c1_39 = arith.constant 1 : index
    %c0_40 = arith.constant 0 : index
    %c0_41 = arith.constant 0 : index
    %106 = vector.load %arg3[%c1_39, %c0_40, %c0_41] : memref<3x32x96xf32, #tpu.memory_space<vmem>>, vector<1x32x96xf32>
    %107 = vector.shape_cast %106 : vector<1x32x96xf32> to vector<32x96xf32>
    %cst_42 = arith.constant dense<0.000000e+00> : vector<8x96xf32>
    %108 = tpu.matmul %105, %107, %cst_42 {dimension_numbers = #tpu.dot_dimension_numbers<[1], [0], [0], [1], [0, 0, 1, 1], [], []>} : vector<8x32xf32>, vector<32x96xf32>, vector<8x96xf32> -> vector<8x96xf32>
    %109 = arith.addf %108, %6 : vector<8x96xf32>
    %110 = vector.extract_strided_slice %109 {offsets = [0, 0], sizes = [8, 32], strides = [1, 1]} : vector<8x96xf32> to vector<8x32xf32>
    %111 = math.tanh %110 : vector<8x32xf32>
    %112 = vector.extract_strided_slice %109 {offsets = [0, 32], sizes = [8, 32], strides = [1, 1]} : vector<8x96xf32> to vector<8x32xf32>
    %113 = arith.negf %112 : vector<8x32xf32>
    %114 = math.exp %113 : vector<8x32xf32>
    %cst_43 = arith.constant 1.000000e+00 : f32
    %115 = vector.broadcast %cst_43 : f32 to vector<8x32xf32>
    %116 = arith.addf %115, %114 : vector<8x32xf32>
    %117 = arith.divf %115, %116 : vector<8x32xf32>
    %118 = vector.extract_strided_slice %109 {offsets = [0, 64], sizes = [8, 32], strides = [1, 1]} : vector<8x96xf32> to vector<8x32xf32>
    %119 = arith.negf %118 : vector<8x32xf32>
    %120 = math.exp %119 : vector<8x32xf32>
    %cst_44 = arith.constant 1.000000e+00 : f32
    %121 = vector.broadcast %cst_44 : f32 to vector<8x32xf32>
    %122 = arith.addf %121, %120 : vector<8x32xf32>
    %123 = arith.divf %121, %122 : vector<8x32xf32>
    %124 = arith.mulf %111, %117 : vector<8x32xf32>
    %125 = arith.mulf %105, %123 : vector<8x32xf32>
    %126 = arith.addf %124, %125 : vector<8x32xf32>
    %c2_45 = arith.constant 2 : index
    %c0_46 = arith.constant 0 : index
    %c0_47 = arith.constant 0 : index
    %127 = vector.load %arg3[%c2_45, %c0_46, %c0_47] : memref<3x32x96xf32, #tpu.memory_space<vmem>>, vector<1x32x96xf32>
    %128 = vector.shape_cast %127 : vector<1x32x96xf32> to vector<32x96xf32>
    %cst_48 = arith.constant dense<0.000000e+00> : vector<8x96xf32>
    %129 = tpu.matmul %126, %128, %cst_48 {dimension_numbers = #tpu.dot_dimension_numbers<[1], [0], [0], [1], [0, 0, 1, 1], [], []>} : vector<8x32xf32>, vector<32x96xf32>, vector<8x96xf32> -> vector<8x96xf32>
    %130 = arith.addf %129, %10 : vector<8x96xf32>
    %131 = vector.extract_strided_slice %130 {offsets = [0, 0], sizes = [8, 32], strides = [1, 1]} : vector<8x96xf32> to vector<8x32xf32>
    %132 = math.tanh %131 : vector<8x32xf32>
    %133 = vector.extract_strided_slice %130 {offsets = [0, 32], sizes = [8, 32], strides = [1, 1]} : vector<8x96xf32> to vector<8x32xf32>
    %134 = arith.negf %133 : vector<8x32xf32>
    %135 = math.exp %134 : vector<8x32xf32>
    %cst_49 = arith.constant 1.000000e+00 : f32
    %136 = vector.broadcast %cst_49 : f32 to vector<8x32xf32>
    %137 = arith.addf %136, %135 : vector<8x32xf32>
    %138 = arith.divf %136, %137 : vector<8x32xf32>
    %139 = vector.extract_strided_slice %130 {offsets = [0, 64], sizes = [8, 32], strides = [1, 1]} : vector<8x96xf32> to vector<8x32xf32>
    %140 = arith.negf %139 : vector<8x32xf32>
    %141 = math.exp %140 : vector<8x32xf32>
    %cst_50 = arith.constant 1.000000e+00 : f32
    %142 = vector.broadcast %cst_50 : f32 to vector<8x32xf32>
    %143 = arith.addf %142, %141 : vector<8x32xf32>
    %144 = arith.divf %142, %143 : vector<8x32xf32>
    %145 = arith.mulf %132, %138 : vector<8x32xf32>
    %146 = arith.mulf %126, %144 : vector<8x32xf32>
    %147 = arith.addf %145, %146 : vector<8x32xf32>
    %c0_51 = arith.constant 0 : index
    %148 = arith.index_cast %c1_i32 : i32 to index
    %c0_52 = arith.constant 0 : index
    %c0_53 = arith.constant 0 : index
    %149 = vector.load %arg6[%c0_51, %148, %c0_52, %c0_53] : memref<1x8x8x32xf32, #tpu.memory_space<vmem>>, vector<1x1x8x32xf32>
    %150 = vector.shape_cast %149 : vector<1x1x8x32xf32> to vector<8x32xf32>
    %151 = vector.shape_cast %147 : vector<8x32xf32> to vector<1x1x8x32xf32>
    tpu.vector_store %arg6[%c0_51, %148, %c0_52, %c0_53], %151 {strides = array<i32>} : memref<1x8x8x32xf32, #tpu.memory_space<vmem>>, vector<1x1x8x32xf32>,
    %c2_i32 = arith.constant 2 : i32
    %c0_54 = arith.constant 0 : index
    %152 = arith.index_cast %c2_i32 : i32 to index
    %c0_55 = arith.constant 0 : index
    %c0_56 = arith.constant 0 : index
    %153 = vector.load %arg2[%c0_54, %152, %c0_55, %c0_56] : memref<1x8x8x96xf32, #tpu.memory_space<vmem>>, vector<1x1x8x96xf32>
    %154 = vector.shape_cast %153 : vector<1x1x8x96xf32> to vector<8x96xf32>
    %c0_57 = arith.constant 0 : index
    %c0_58 = arith.constant 0 : index
    %c0_59 = arith.constant 0 : index
    %155 = vector.load %arg3[%c0_57, %c0_58, %c0_59] : memref<3x32x96xf32, #tpu.memory_space<vmem>>, vector<1x32x96xf32>
    %156 = vector.shape_cast %155 : vector<1x32x96xf32> to vector<32x96xf32>
    %cst_60 = arith.constant dense<0.000000e+00> : vector<8x96xf32>
    %157 = tpu.matmul %147, %156, %cst_60 {dimension_numbers = #tpu.dot_dimension_numbers<[1], [0], [0], [1], [0, 0, 1, 1], [], []>} : vector<8x32xf32>, vector<32x96xf32>, vector<8x96xf32> -> vector<8x96xf32>
    %158 = arith.addf %157, %154 : vector<8x96xf32>
    %159 = vector.extract_strided_slice %158 {offsets = [0, 0], sizes = [8, 32], strides = [1, 1]} : vector<8x96xf32> to vector<8x32xf32>
    %160 = math.tanh %159 : vector<8x32xf32>
    %161 = vector.extract_strided_slice %158 {offsets = [0, 32], sizes = [8, 32], strides = [1, 1]} : vector<8x96xf32> to vector<8x32xf32>
    %162 = arith.negf %161 : vector<8x32xf32>
    %163 = math.exp %162 : vector<8x32xf32>
    %cst_61 = arith.constant 1.000000e+00 : f32
    %164 = vector.broadcast %cst_61 : f32 to vector<8x32xf32>
    %165 = arith.addf %164, %163 : vector<8x32xf32>
    %166 = arith.divf %164, %165 : vector<8x32xf32>
    %167 = vector.extract_strided_slice %158 {offsets = [0, 64], sizes = [8, 32], strides = [1, 1]} : vector<8x96xf32> to vector<8x32xf32>
    %168 = arith.negf %167 : vector<8x32xf32>
    %169 = math.exp %168 : vector<8x32xf32>
    %cst_62 = arith.constant 1.000000e+00 : f32
    %170 = vector.broadcast %cst_62 : f32 to vector<8x32xf32>
    %171 = arith.addf %170, %169 : vector<8x32xf32>
    %172 = arith.divf %170, %171 : vector<8x32xf32>
    %173 = arith.mulf %160, %166 : vector<8x32xf32>
    %174 = arith.mulf %147, %172 : vector<8x32xf32>
    %175 = arith.addf %173, %174 : vector<8x32xf32>
    %c1_63 = arith.constant 1 : index
    %c0_64 = arith.constant 0 : index
    %c0_65 = arith.constant 0 : index
    %176 = vector.load %arg3[%c1_63, %c0_64, %c0_65] : memref<3x32x96xf32, #tpu.memory_space<vmem>>, vector<1x32x96xf32>
    %177 = vector.shape_cast %176 : vector<1x32x96xf32> to vector<32x96xf32>
    %cst_66 = arith.constant dense<0.000000e+00> : vector<8x96xf32>
    %178 = tpu.matmul %175, %177, %cst_66 {dimension_numbers = #tpu.dot_dimension_numbers<[1], [0], [0], [1], [0, 0, 1, 1], [], []>} : vector<8x32xf32>, vector<32x96xf32>, vector<8x96xf32> -> vector<8x96xf32>
    %179 = arith.addf %178, %6 : vector<8x96xf32>
    %180 = vector.extract_strided_slice %179 {offsets = [0, 0], sizes = [8, 32], strides = [1, 1]} : vector<8x96xf32> to vector<8x32xf32>
    %181 = math.tanh %180 : vector<8x32xf32>
    %182 = vector.extract_strided_slice %179 {offsets = [0, 32], sizes = [8, 32], strides = [1, 1]} : vector<8x96xf32> to vector<8x32xf32>
    %183 = arith.negf %182 : vector<8x32xf32>
    %184 = math.exp %183 : vector<8x32xf32>
    %cst_67 = arith.constant 1.000000e+00 : f32
    %185 = vector.broadcast %cst_67 : f32 to vector<8x32xf32>
    %186 = arith.addf %185, %184 : vector<8x32xf32>
    %187 = arith.divf %185, %186 : vector<8x32xf32>
    %188 = vector.extract_strided_slice %179 {offsets = [0, 64], sizes = [8, 32], strides = [1, 1]} : vector<8x96xf32> to vector<8x32xf32>
    %189 = arith.negf %188 : vector<8x32xf32>
    %190 = math.exp %189 : vector<8x32xf32>
    %cst_68 = arith.constant 1.000000e+00 : f32
    %191 = vector.broadcast %cst_68 : f32 to vector<8x32xf32>
    %192 = arith.addf %191, %190 : vector<8x32xf32>
    %193 = arith.divf %191, %192 : vector<8x32xf32>
    %194 = arith.mulf %181, %187 : vector<8x32xf32>
    %195 = arith.mulf %175, %193 : vector<8x32xf32>
    %196 = arith.addf %194, %195 : vector<8x32xf32>
    %c2_69 = arith.constant 2 : index
    %c0_70 = arith.constant 0 : index
    %c0_71 = arith.constant 0 : index
    %197 = vector.load %arg3[%c2_69, %c0_70, %c0_71] : memref<3x32x96xf32, #tpu.memory_space<vmem>>, vector<1x32x96xf32>
    %198 = vector.shape_cast %197 : vector<1x32x96xf32> to vector<32x96xf32>
    %cst_72 = arith.constant dense<0.000000e+00> : vector<8x96xf32>
    %199 = tpu.matmul %196, %198, %cst_72 {dimension_numbers = #tpu.dot_dimension_numbers<[1], [0], [0], [1], [0, 0, 1, 1], [], []>} : vector<8x32xf32>, vector<32x96xf32>, vector<8x96xf32> -> vector<8x96xf32>
    %200 = arith.addf %199, %10 : vector<8x96xf32>
    %201 = vector.extract_strided_slice %200 {offsets = [0, 0], sizes = [8, 32], strides = [1, 1]} : vector<8x96xf32> to vector<8x32xf32>
    %202 = math.tanh %201 : vector<8x32xf32>
    %203 = vector.extract_strided_slice %200 {offsets = [0, 32], sizes = [8, 32], strides = [1, 1]} : vector<8x96xf32> to vector<8x32xf32>
    %204 = arith.negf %203 : vector<8x32xf32>
    %205 = math.exp %204 : vector<8x32xf32>
    %cst_73 = arith.constant 1.000000e+00 : f32
    %206 = vector.broadcast %cst_73 : f32 to vector<8x32xf32>
    %207 = arith.addf %206, %205 : vector<8x32xf32>
    %208 = arith.divf %206, %207 : vector<8x32xf32>
    %209 = vector.extract_strided_slice %200 {offsets = [0, 64], sizes = [8, 32], strides = [1, 1]} : vector<8x96xf32> to vector<8x32xf32>
    %210 = arith.negf %209 : vector<8x32xf32>
    %211 = math.exp %210 : vector<8x32xf32>
    %cst_74 = arith.constant 1.000000e+00 : f32
    %212 = vector.broadcast %cst_74 : f32 to vector<8x32xf32>
    %213 = arith.addf %212, %211 : vector<8x32xf32>
    %214 = arith.divf %212, %213 : vector<8x32xf32>
    %215 = arith.mulf %202, %208 : vector<8x32xf32>
    %216 = arith.mulf %196, %214 : vector<8x32xf32>
    %217 = arith.addf %215, %216 : vector<8x32xf32>
    %c0_75 = arith.constant 0 : index
    %218 = arith.index_cast %c2_i32 : i32 to index
    %c0_76 = arith.constant 0 : index
    %c0_77 = arith.constant 0 : index
    %219 = vector.load %arg6[%c0_75, %218, %c0_76, %c0_77] : memref<1x8x8x32xf32, #tpu.memory_space<vmem>>, vector<1x1x8x32xf32>
    %220 = vector.shape_cast %219 : vector<1x1x8x32xf32> to vector<8x32xf32>
    %221 = vector.shape_cast %217 : vector<8x32xf32> to vector<1x1x8x32xf32>
    tpu.vector_store %arg6[%c0_75, %218, %c0_76, %c0_77], %221 {strides = array<i32>} : memref<1x8x8x32xf32, #tpu.memory_space<vmem>>, vector<1x1x8x32xf32>,
    %c3_i32 = arith.constant 3 : i32
    %c0_78 = arith.constant 0 : index
    %222 = arith.index_cast %c3_i32 : i32 to index
    %c0_79 = arith.constant 0 : index
    %c0_80 = arith.constant 0 : index
    %223 = vector.load %arg2[%c0_78, %222, %c0_79, %c0_80] : memref<1x8x8x96xf32, #tpu.memory_space<vmem>>, vector<1x1x8x96xf32>
    %224 = vector.shape_cast %223 : vector<1x1x8x96xf32> to vector<8x96xf32>
    %c0_81 = arith.constant 0 : index
    %c0_82 = arith.constant 0 : index
    %c0_83 = arith.constant 0 : index
    %225 = vector.load %arg3[%c0_81, %c0_82, %c0_83] : memref<3x32x96xf32, #tpu.memory_space<vmem>>, vector<1x32x96xf32>
    %226 = vector.shape_cast %225 : vector<1x32x96xf32> to vector<32x96xf32>
    %cst_84 = arith.constant dense<0.000000e+00> : vector<8x96xf32>
    %227 = tpu.matmul %217, %226, %cst_84 {dimension_numbers = #tpu.dot_dimension_numbers<[1], [0], [0], [1], [0, 0, 1, 1], [], []>} : vector<8x32xf32>, vector<32x96xf32>, vector<8x96xf32> -> vector<8x96xf32>
    %228 = arith.addf %227, %224 : vector<8x96xf32>
    %229 = vector.extract_strided_slice %228 {offsets = [0, 0], sizes = [8, 32], strides = [1, 1]} : vector<8x96xf32> to vector<8x32xf32>
    %230 = math.tanh %229 : vector<8x32xf32>
    %231 = vector.extract_strided_slice %228 {offsets = [0, 32], sizes = [8, 32], strides = [1, 1]} : vector<8x96xf32> to vector<8x32xf32>
    %232 = arith.negf %231 : vector<8x32xf32>
    %233 = math.exp %232 : vector<8x32xf32>
    %cst_85 = arith.constant 1.000000e+00 : f32
    %234 = vector.broadcast %cst_85 : f32 to vector<8x32xf32>
    %235 = arith.addf %234, %233 : vector<8x32xf32>
    %236 = arith.divf %234, %235 : vector<8x32xf32>
    %237 = vector.extract_strided_slice %228 {offsets = [0, 64], sizes = [8, 32], strides = [1, 1]} : vector<8x96xf32> to vector<8x32xf32>
    %238 = arith.negf %237 : vector<8x32xf32>
    %239 = math.exp %238 : vector<8x32xf32>
    %cst_86 = arith.constant 1.000000e+00 : f32
    %240 = vector.broadcast %cst_86 : f32 to vector<8x32xf32>
    %241 = arith.addf %240, %239 : vector<8x32xf32>
    %242 = arith.divf %240, %241 : vector<8x32xf32>
    %243 = arith.mulf %230, %236 : vector<8x32xf32>
    %244 = arith.mulf %217, %242 : vector<8x32xf32>
    %245 = arith.addf %243, %244 : vector<8x32xf32>
    %c1_87 = arith.constant 1 : index
    %c0_88 = arith.constant 0 : index
    %c0_89 = arith.constant 0 : index
    %246 = vector.load %arg3[%c1_87, %c0_88, %c0_89] : memref<3x32x96xf32, #tpu.memory_space<vmem>>, vector<1x32x96xf32>
    %247 = vector.shape_cast %246 : vector<1x32x96xf32> to vector<32x96xf32>
    %cst_90 = arith.constant dense<0.000000e+00> : vector<8x96xf32>
    %248 = tpu.matmul %245, %247, %cst_90 {dimension_numbers = #tpu.dot_dimension_numbers<[1], [0], [0], [1], [0, 0, 1, 1], [], []>} : vector<8x32xf32>, vector<32x96xf32>, vector<8x96xf32> -> vector<8x96xf32>
    %249 = arith.addf %248, %6 : vector<8x96xf32>
    %250 = vector.extract_strided_slice %249 {offsets = [0, 0], sizes = [8, 32], strides = [1, 1]} : vector<8x96xf32> to vector<8x32xf32>
    %251 = math.tanh %250 : vector<8x32xf32>
    %252 = vector.extract_strided_slice %249 {offsets = [0, 32], sizes = [8, 32], strides = [1, 1]} : vector<8x96xf32> to vector<8x32xf32>
    %253 = arith.negf %252 : vector<8x32xf32>
    %254 = math.exp %253 : vector<8x32xf32>
    %cst_91 = arith.constant 1.000000e+00 : f32
    %255 = vector.broadcast %cst_91 : f32 to vector<8x32xf32>
    %256 = arith.addf %255, %254 : vector<8x32xf32>
    %257 = arith.divf %255, %256 : vector<8x32xf32>
    %258 = vector.extract_strided_slice %249 {offsets = [0, 64], sizes = [8, 32], strides = [1, 1]} : vector<8x96xf32> to vector<8x32xf32>
    %259 = arith.negf %258 : vector<8x32xf32>
    %260 = math.exp %259 : vector<8x32xf32>
    %cst_92 = arith.constant 1.000000e+00 : f32
    %261 = vector.broadcast %cst_92 : f32 to vector<8x32xf32>
    %262 = arith.addf %261, %260 : vector<8x32xf32>
    %263 = arith.divf %261, %262 : vector<8x32xf32>
    %264 = arith.mulf %251, %257 : vector<8x32xf32>
    %265 = arith.mulf %245, %263 : vector<8x32xf32>
    %266 = arith.addf %264, %265 : vector<8x32xf32>
    %c2_93 = arith.constant 2 : index
    %c0_94 = arith.constant 0 : index
    %c0_95 = arith.constant 0 : index
    %267 = vector.load %arg3[%c2_93, %c0_94, %c0_95] : memref<3x32x96xf32, #tpu.memory_space<vmem>>, vector<1x32x96xf32>
    %268 = vector.shape_cast %267 : vector<1x32x96xf32> to vector<32x96xf32>
    %cst_96 = arith.constant dense<0.000000e+00> : vector<8x96xf32>
    %269 = tpu.matmul %266, %268, %cst_96 {dimension_numbers = #tpu.dot_dimension_numbers<[1], [0], [0], [1], [0, 0, 1, 1], [], []>} : vector<8x32xf32>, vector<32x96xf32>, vector<8x96xf32> -> vector<8x96xf32>
    %270 = arith.addf %269, %10 : vector<8x96xf32>
    %271 = vector.extract_strided_slice %270 {offsets = [0, 0], sizes = [8, 32], strides = [1, 1]} : vector<8x96xf32> to vector<8x32xf32>
    %272 = math.tanh %271 : vector<8x32xf32>
    %273 = vector.extract_strided_slice %270 {offsets = [0, 32], sizes = [8, 32], strides = [1, 1]} : vector<8x96xf32> to vector<8x32xf32>
    %274 = arith.negf %273 : vector<8x32xf32>
    %275 = math.exp %274 : vector<8x32xf32>
    %cst_97 = arith.constant 1.000000e+00 : f32
    %276 = vector.broadcast %cst_97 : f32 to vector<8x32xf32>
    %277 = arith.addf %276, %275 : vector<8x32xf32>
    %278 = arith.divf %276, %277 : vector<8x32xf32>
    %279 = vector.extract_strided_slice %270 {offsets = [0, 64], sizes = [8, 32], strides = [1, 1]} : vector<8x96xf32> to vector<8x32xf32>
    %280 = arith.negf %279 : vector<8x32xf32>
    %281 = math.exp %280 : vector<8x32xf32>
    %cst_98 = arith.constant 1.000000e+00 : f32
    %282 = vector.broadcast %cst_98 : f32 to vector<8x32xf32>
    %283 = arith.addf %282, %281 : vector<8x32xf32>
    %284 = arith.divf %282, %283 : vector<8x32xf32>
    %285 = arith.mulf %272, %278 : vector<8x32xf32>
    %286 = arith.mulf %266, %284 : vector<8x32xf32>
    %287 = arith.addf %285, %286 : vector<8x32xf32>
    %c0_99 = arith.constant 0 : index
    %288 = arith.index_cast %c3_i32 : i32 to index
    %c0_100 = arith.constant 0 : index
    %c0_101 = arith.constant 0 : index
    %289 = vector.load %arg6[%c0_99, %288, %c0_100, %c0_101] : memref<1x8x8x32xf32, #tpu.memory_space<vmem>>, vector<1x1x8x32xf32>
    %290 = vector.shape_cast %289 : vector<1x1x8x32xf32> to vector<8x32xf32>
    %291 = vector.shape_cast %287 : vector<8x32xf32> to vector<1x1x8x32xf32>
    tpu.vector_store %arg6[%c0_99, %288, %c0_100, %c0_101], %291 {strides = array<i32>} : memref<1x8x8x32xf32, #tpu.memory_space<vmem>>, vector<1x1x8x32xf32>,
    %c4_i32 = arith.constant 4 : i32
    %c0_102 = arith.constant 0 : index
    %292 = arith.index_cast %c4_i32 : i32 to index
    %c0_103 = arith.constant 0 : index
    %c0_104 = arith.constant 0 : index
    %293 = vector.load %arg2[%c0_102, %292, %c0_103, %c0_104] : memref<1x8x8x96xf32, #tpu.memory_space<vmem>>, vector<1x1x8x96xf32>
    %294 = vector.shape_cast %293 : vector<1x1x8x96xf32> to vector<8x96xf32>
    %c0_105 = arith.constant 0 : index
    %c0_106 = arith.constant 0 : index
    %c0_107 = arith.constant 0 : index
    %295 = vector.load %arg3[%c0_105, %c0_106, %c0_107] : memref<3x32x96xf32, #tpu.memory_space<vmem>>, vector<1x32x96xf32>
    %296 = vector.shape_cast %295 : vector<1x32x96xf32> to vector<32x96xf32>
    %cst_108 = arith.constant dense<0.000000e+00> : vector<8x96xf32>
    %297 = tpu.matmul %287, %296, %cst_108 {dimension_numbers = #tpu.dot_dimension_numbers<[1], [0], [0], [1], [0, 0, 1, 1], [], []>} : vector<8x32xf32>, vector<32x96xf32>, vector<8x96xf32> -> vector<8x96xf32>
    %298 = arith.addf %297, %294 : vector<8x96xf32>
    %299 = vector.extract_strided_slice %298 {offsets = [0, 0], sizes = [8, 32], strides = [1, 1]} : vector<8x96xf32> to vector<8x32xf32>
    %300 = math.tanh %299 : vector<8x32xf32>
    %301 = vector.extract_strided_slice %298 {offsets = [0, 32], sizes = [8, 32], strides = [1, 1]} : vector<8x96xf32> to vector<8x32xf32>
    %302 = arith.negf %301 : vector<8x32xf32>
    %303 = math.exp %302 : vector<8x32xf32>
    %cst_109 = arith.constant 1.000000e+00 : f32
    %304 = vector.broadcast %cst_109 : f32 to vector<8x32xf32>
    %305 = arith.addf %304, %303 : vector<8x32xf32>
    %306 = arith.divf %304, %305 : vector<8x32xf32>
    %307 = vector.extract_strided_slice %298 {offsets = [0, 64], sizes = [8, 32], strides = [1, 1]} : vector<8x96xf32> to vector<8x32xf32>
    %308 = arith.negf %307 : vector<8x32xf32>
    %309 = math.exp %308 : vector<8x32xf32>
    %cst_110 = arith.constant 1.000000e+00 : f32
    %310 = vector.broadcast %cst_110 : f32 to vector<8x32xf32>
    %311 = arith.addf %310, %309 : vector<8x32xf32>
    %312 = arith.divf %310, %311 : vector<8x32xf32>
    %313 = arith.mulf %300, %306 : vector<8x32xf32>
    %314 = arith.mulf %287, %312 : vector<8x32xf32>
    %315 = arith.addf %313, %314 : vector<8x32xf32>
    %c1_111 = arith.constant 1 : index
    %c0_112 = arith.constant 0 : index
    %c0_113 = arith.constant 0 : index
    %316 = vector.load %arg3[%c1_111, %c0_112, %c0_113] : memref<3x32x96xf32, #tpu.memory_space<vmem>>, vector<1x32x96xf32>
    %317 = vector.shape_cast %316 : vector<1x32x96xf32> to vector<32x96xf32>
    %cst_114 = arith.constant dense<0.000000e+00> : vector<8x96xf32>
    %318 = tpu.matmul %315, %317, %cst_114 {dimension_numbers = #tpu.dot_dimension_numbers<[1], [0], [0], [1], [0, 0, 1, 1], [], []>} : vector<8x32xf32>, vector<32x96xf32>, vector<8x96xf32> -> vector<8x96xf32>
    %319 = arith.addf %318, %6 : vector<8x96xf32>
    %320 = vector.extract_strided_slice %319 {offsets = [0, 0], sizes = [8, 32], strides = [1, 1]} : vector<8x96xf32> to vector<8x32xf32>
    %321 = math.tanh %320 : vector<8x32xf32>
    %322 = vector.extract_strided_slice %319 {offsets = [0, 32], sizes = [8, 32], strides = [1, 1]} : vector<8x96xf32> to vector<8x32xf32>
    %323 = arith.negf %322 : vector<8x32xf32>
    %324 = math.exp %323 : vector<8x32xf32>
    %cst_115 = arith.constant 1.000000e+00 : f32
    %325 = vector.broadcast %cst_115 : f32 to vector<8x32xf32>
    %326 = arith.addf %325, %324 : vector<8x32xf32>
    %327 = arith.divf %325, %326 : vector<8x32xf32>
    %328 = vector.extract_strided_slice %319 {offsets = [0, 64], sizes = [8, 32], strides = [1, 1]} : vector<8x96xf32> to vector<8x32xf32>
    %329 = arith.negf %328 : vector<8x32xf32>
    %330 = math.exp %329 : vector<8x32xf32>
    %cst_116 = arith.constant 1.000000e+00 : f32
    %331 = vector.broadcast %cst_116 : f32 to vector<8x32xf32>
    %332 = arith.addf %331, %330 : vector<8x32xf32>
    %333 = arith.divf %331, %332 : vector<8x32xf32>
    %334 = arith.mulf %321, %327 : vector<8x32xf32>
    %335 = arith.mulf %315, %333 : vector<8x32xf32>
    %336 = arith.addf %334, %335 : vector<8x32xf32>
    %c2_117 = arith.constant 2 : index
    %c0_118 = arith.constant 0 : index
    %c0_119 = arith.constant 0 : index
    %337 = vector.load %arg3[%c2_117, %c0_118, %c0_119] : memref<3x32x96xf32, #tpu.memory_space<vmem>>, vector<1x32x96xf32>
    %338 = vector.shape_cast %337 : vector<1x32x96xf32> to vector<32x96xf32>
    %cst_120 = arith.constant dense<0.000000e+00> : vector<8x96xf32>
    %339 = tpu.matmul %336, %338, %cst_120 {dimension_numbers = #tpu.dot_dimension_numbers<[1], [0], [0], [1], [0, 0, 1, 1], [], []>} : vector<8x32xf32>, vector<32x96xf32>, vector<8x96xf32> -> vector<8x96xf32>
    %340 = arith.addf %339, %10 : vector<8x96xf32>
    %341 = vector.extract_strided_slice %340 {offsets = [0, 0], sizes = [8, 32], strides = [1, 1]} : vector<8x96xf32> to vector<8x32xf32>
    %342 = math.tanh %341 : vector<8x32xf32>
    %343 = vector.extract_strided_slice %340 {offsets = [0, 32], sizes = [8, 32], strides = [1, 1]} : vector<8x96xf32> to vector<8x32xf32>
    %344 = arith.negf %343 : vector<8x32xf32>
    %345 = math.exp %344 : vector<8x32xf32>
    %cst_121 = arith.constant 1.000000e+00 : f32
    %346 = vector.broadcast %cst_121 : f32 to vector<8x32xf32>
    %347 = arith.addf %346, %345 : vector<8x32xf32>
    %348 = arith.divf %346, %347 : vector<8x32xf32>
    %349 = vector.extract_strided_slice %340 {offsets = [0, 64], sizes = [8, 32], strides = [1, 1]} : vector<8x96xf32> to vector<8x32xf32>
    %350 = arith.negf %349 : vector<8x32xf32>
    %351 = math.exp %350 : vector<8x32xf32>
    %cst_122 = arith.constant 1.000000e+00 : f32
    %352 = vector.broadcast %cst_122 : f32 to vector<8x32xf32>
    %353 = arith.addf %352, %351 : vector<8x32xf32>
    %354 = arith.divf %352, %353 : vector<8x32xf32>
    %355 = arith.mulf %342, %348 : vector<8x32xf32>
    %356 = arith.mulf %336, %354 : vector<8x32xf32>
    %357 = arith.addf %355, %356 : vector<8x32xf32>
    %c0_123 = arith.constant 0 : index
    %358 = arith.index_cast %c4_i32 : i32 to index
    %c0_124 = arith.constant 0 : index
    %c0_125 = arith.constant 0 : index
    %359 = vector.load %arg6[%c0_123, %358, %c0_124, %c0_125] : memref<1x8x8x32xf32, #tpu.memory_space<vmem>>, vector<1x1x8x32xf32>
    %360 = vector.shape_cast %359 : vector<1x1x8x32xf32> to vector<8x32xf32>
    %361 = vector.shape_cast %357 : vector<8x32xf32> to vector<1x1x8x32xf32>
    tpu.vector_store %arg6[%c0_123, %358, %c0_124, %c0_125], %361 {strides = array<i32>} : memref<1x8x8x32xf32, #tpu.memory_space<vmem>>, vector<1x1x8x32xf32>,
    %c5_i32 = arith.constant 5 : i32
    %c0_126 = arith.constant 0 : index
    %362 = arith.index_cast %c5_i32 : i32 to index
    %c0_127 = arith.constant 0 : index
    %c0_128 = arith.constant 0 : index
    %363 = vector.load %arg2[%c0_126, %362, %c0_127, %c0_128] : memref<1x8x8x96xf32, #tpu.memory_space<vmem>>, vector<1x1x8x96xf32>
    %364 = vector.shape_cast %363 : vector<1x1x8x96xf32> to vector<8x96xf32>
    %c0_129 = arith.constant 0 : index
    %c0_130 = arith.constant 0 : index
    %c0_131 = arith.constant 0 : index
    %365 = vector.load %arg3[%c0_129, %c0_130, %c0_131] : memref<3x32x96xf32, #tpu.memory_space<vmem>>, vector<1x32x96xf32>
    %366 = vector.shape_cast %365 : vector<1x32x96xf32> to vector<32x96xf32>
    %cst_132 = arith.constant dense<0.000000e+00> : vector<8x96xf32>
    %367 = tpu.matmul %357, %366, %cst_132 {dimension_numbers = #tpu.dot_dimension_numbers<[1], [0], [0], [1], [0, 0, 1, 1], [], []>} : vector<8x32xf32>, vector<32x96xf32>, vector<8x96xf32> -> vector<8x96xf32>
    %368 = arith.addf %367, %364 : vector<8x96xf32>
    %369 = vector.extract_strided_slice %368 {offsets = [0, 0], sizes = [8, 32], strides = [1, 1]} : vector<8x96xf32> to vector<8x32xf32>
    %370 = math.tanh %369 : vector<8x32xf32>
    %371 = vector.extract_strided_slice %368 {offsets = [0, 32], sizes = [8, 32], strides = [1, 1]} : vector<8x96xf32> to vector<8x32xf32>
    %372 = arith.negf %371 : vector<8x32xf32>
    %373 = math.exp %372 : vector<8x32xf32>
    %cst_133 = arith.constant 1.000000e+00 : f32
    %374 = vector.broadcast %cst_133 : f32 to vector<8x32xf32>
    %375 = arith.addf %374, %373 : vector<8x32xf32>
    %376 = arith.divf %374, %375 : vector<8x32xf32>
    %377 = vector.extract_strided_slice %368 {offsets = [0, 64], sizes = [8, 32], strides = [1, 1]} : vector<8x96xf32> to vector<8x32xf32>
    %378 = arith.negf %377 : vector<8x32xf32>
    %379 = math.exp %378 : vector<8x32xf32>
    %cst_134 = arith.constant 1.000000e+00 : f32
    %380 = vector.broadcast %cst_134 : f32 to vector<8x32xf32>
    %381 = arith.addf %380, %379 : vector<8x32xf32>
    %382 = arith.divf %380, %381 : vector<8x32xf32>
    %383 = arith.mulf %370, %376 : vector<8x32xf32>
    %384 = arith.mulf %357, %382 : vector<8x32xf32>
    %385 = arith.addf %383, %384 : vector<8x32xf32>
    %c1_135 = arith.constant 1 : index
    %c0_136 = arith.constant 0 : index
    %c0_137 = arith.constant 0 : index
    %386 = vector.load %arg3[%c1_135, %c0_136, %c0_137] : memref<3x32x96xf32, #tpu.memory_space<vmem>>, vector<1x32x96xf32>
    %387 = vector.shape_cast %386 : vector<1x32x96xf32> to vector<32x96xf32>
    %cst_138 = arith.constant dense<0.000000e+00> : vector<8x96xf32>
    %388 = tpu.matmul %385, %387, %cst_138 {dimension_numbers = #tpu.dot_dimension_numbers<[1], [0], [0], [1], [0, 0, 1, 1], [], []>} : vector<8x32xf32>, vector<32x96xf32>, vector<8x96xf32> -> vector<8x96xf32>
    %389 = arith.addf %388, %6 : vector<8x96xf32>
    %390 = vector.extract_strided_slice %389 {offsets = [0, 0], sizes = [8, 32], strides = [1, 1]} : vector<8x96xf32> to vector<8x32xf32>
    %391 = math.tanh %390 : vector<8x32xf32>
    %392 = vector.extract_strided_slice %389 {offsets = [0, 32], sizes = [8, 32], strides = [1, 1]} : vector<8x96xf32> to vector<8x32xf32>
    %393 = arith.negf %392 : vector<8x32xf32>
    %394 = math.exp %393 : vector<8x32xf32>
    %cst_139 = arith.constant 1.000000e+00 : f32
    %395 = vector.broadcast %cst_139 : f32 to vector<8x32xf32>
    %396 = arith.addf %395, %394 : vector<8x32xf32>
    %397 = arith.divf %395, %396 : vector<8x32xf32>
    %398 = vector.extract_strided_slice %389 {offsets = [0, 64], sizes = [8, 32], strides = [1, 1]} : vector<8x96xf32> to vector<8x32xf32>
    %399 = arith.negf %398 : vector<8x32xf32>
    %400 = math.exp %399 : vector<8x32xf32>
    %cst_140 = arith.constant 1.000000e+00 : f32
    %401 = vector.broadcast %cst_140 : f32 to vector<8x32xf32>
    %402 = arith.addf %401, %400 : vector<8x32xf32>
    %403 = arith.divf %401, %402 : vector<8x32xf32>
    %404 = arith.mulf %391, %397 : vector<8x32xf32>
    %405 = arith.mulf %385, %403 : vector<8x32xf32>
    %406 = arith.addf %404, %405 : vector<8x32xf32>
    %c2_141 = arith.constant 2 : index
    %c0_142 = arith.constant 0 : index
    %c0_143 = arith.constant 0 : index
    %407 = vector.load %arg3[%c2_141, %c0_142, %c0_143] : memref<3x32x96xf32, #tpu.memory_space<vmem>>, vector<1x32x96xf32>
    %408 = vector.shape_cast %407 : vector<1x32x96xf32> to vector<32x96xf32>
    %cst_144 = arith.constant dense<0.000000e+00> : vector<8x96xf32>
    %409 = tpu.matmul %406, %408, %cst_144 {dimension_numbers = #tpu.dot_dimension_numbers<[1], [0], [0], [1], [0, 0, 1, 1], [], []>} : vector<8x32xf32>, vector<32x96xf32>, vector<8x96xf32> -> vector<8x96xf32>
    %410 = arith.addf %409, %10 : vector<8x96xf32>
    %411 = vector.extract_strided_slice %410 {offsets = [0, 0], sizes = [8, 32], strides = [1, 1]} : vector<8x96xf32> to vector<8x32xf32>
    %412 = math.tanh %411 : vector<8x32xf32>
    %413 = vector.extract_strided_slice %410 {offsets = [0, 32], sizes = [8, 32], strides = [1, 1]} : vector<8x96xf32> to vector<8x32xf32>
    %414 = arith.negf %413 : vector<8x32xf32>
    %415 = math.exp %414 : vector<8x32xf32>
    %cst_145 = arith.constant 1.000000e+00 : f32
    %416 = vector.broadcast %cst_145 : f32 to vector<8x32xf32>
    %417 = arith.addf %416, %415 : vector<8x32xf32>
    %418 = arith.divf %416, %417 : vector<8x32xf32>
    %419 = vector.extract_strided_slice %410 {offsets = [0, 64], sizes = [8, 32], strides = [1, 1]} : vector<8x96xf32> to vector<8x32xf32>
    %420 = arith.negf %419 : vector<8x32xf32>
    %421 = math.exp %420 : vector<8x32xf32>
    %cst_146 = arith.constant 1.000000e+00 : f32
    %422 = vector.broadcast %cst_146 : f32 to vector<8x32xf32>
    %423 = arith.addf %422, %421 : vector<8x32xf32>
    %424 = arith.divf %422, %423 : vector<8x32xf32>
    %425 = arith.mulf %412, %418 : vector<8x32xf32>
    %426 = arith.mulf %406, %424 : vector<8x32xf32>
    %427 = arith.addf %425, %426 : vector<8x32xf32>
    %c0_147 = arith.constant 0 : index
    %428 = arith.index_cast %c5_i32 : i32 to index
    %c0_148 = arith.constant 0 : index
    %c0_149 = arith.constant 0 : index
    %429 = vector.load %arg6[%c0_147, %428, %c0_148, %c0_149] : memref<1x8x8x32xf32, #tpu.memory_space<vmem>>, vector<1x1x8x32xf32>
    %430 = vector.shape_cast %429 : vector<1x1x8x32xf32> to vector<8x32xf32>
    %431 = vector.shape_cast %427 : vector<8x32xf32> to vector<1x1x8x32xf32>
    tpu.vector_store %arg6[%c0_147, %428, %c0_148, %c0_149], %431 {strides = array<i32>} : memref<1x8x8x32xf32, #tpu.memory_space<vmem>>, vector<1x1x8x32xf32>,
    %c6_i32 = arith.constant 6 : i32
    %c0_150 = arith.constant 0 : index
    %432 = arith.index_cast %c6_i32 : i32 to index
    %c0_151 = arith.constant 0 : index
    %c0_152 = arith.constant 0 : index
    %433 = vector.load %arg2[%c0_150, %432, %c0_151, %c0_152] : memref<1x8x8x96xf32, #tpu.memory_space<vmem>>, vector<1x1x8x96xf32>
    %434 = vector.shape_cast %433 : vector<1x1x8x96xf32> to vector<8x96xf32>
    %c0_153 = arith.constant 0 : index
    %c0_154 = arith.constant 0 : index
    %c0_155 = arith.constant 0 : index
    %435 = vector.load %arg3[%c0_153, %c0_154, %c0_155] : memref<3x32x96xf32, #tpu.memory_space<vmem>>, vector<1x32x96xf32>
    %436 = vector.shape_cast %435 : vector<1x32x96xf32> to vector<32x96xf32>
    %cst_156 = arith.constant dense<0.000000e+00> : vector<8x96xf32>
    %437 = tpu.matmul %427, %436, %cst_156 {dimension_numbers = #tpu.dot_dimension_numbers<[1], [0], [0], [1], [0, 0, 1, 1], [], []>} : vector<8x32xf32>, vector<32x96xf32>, vector<8x96xf32> -> vector<8x96xf32>
    %438 = arith.addf %437, %434 : vector<8x96xf32>
    %439 = vector.extract_strided_slice %438 {offsets = [0, 0], sizes = [8, 32], strides = [1, 1]} : vector<8x96xf32> to vector<8x32xf32>
    %440 = math.tanh %439 : vector<8x32xf32>
    %441 = vector.extract_strided_slice %438 {offsets = [0, 32], sizes = [8, 32], strides = [1, 1]} : vector<8x96xf32> to vector<8x32xf32>
    %442 = arith.negf %441 : vector<8x32xf32>
    %443 = math.exp %442 : vector<8x32xf32>
    %cst_157 = arith.constant 1.000000e+00 : f32
    %444 = vector.broadcast %cst_157 : f32 to vector<8x32xf32>
    %445 = arith.addf %444, %443 : vector<8x32xf32>
    %446 = arith.divf %444, %445 : vector<8x32xf32>
    %447 = vector.extract_strided_slice %438 {offsets = [0, 64], sizes = [8, 32], strides = [1, 1]} : vector<8x96xf32> to vector<8x32xf32>
    %448 = arith.negf %447 : vector<8x32xf32>
    %449 = math.exp %448 : vector<8x32xf32>
    %cst_158 = arith.constant 1.000000e+00 : f32
    %450 = vector.broadcast %cst_158 : f32 to vector<8x32xf32>
    %451 = arith.addf %450, %449 : vector<8x32xf32>
    %452 = arith.divf %450, %451 : vector<8x32xf32>
    %453 = arith.mulf %440, %446 : vector<8x32xf32>
    %454 = arith.mulf %427, %452 : vector<8x32xf32>
    %455 = arith.addf %453, %454 : vector<8x32xf32>
    %c1_159 = arith.constant 1 : index
    %c0_160 = arith.constant 0 : index
    %c0_161 = arith.constant 0 : index
    %456 = vector.load %arg3[%c1_159, %c0_160, %c0_161] : memref<3x32x96xf32, #tpu.memory_space<vmem>>, vector<1x32x96xf32>
    %457 = vector.shape_cast %456 : vector<1x32x96xf32> to vector<32x96xf32>
    %cst_162 = arith.constant dense<0.000000e+00> : vector<8x96xf32>
    %458 = tpu.matmul %455, %457, %cst_162 {dimension_numbers = #tpu.dot_dimension_numbers<[1], [0], [0], [1], [0, 0, 1, 1], [], []>} : vector<8x32xf32>, vector<32x96xf32>, vector<8x96xf32> -> vector<8x96xf32>
    %459 = arith.addf %458, %6 : vector<8x96xf32>
    %460 = vector.extract_strided_slice %459 {offsets = [0, 0], sizes = [8, 32], strides = [1, 1]} : vector<8x96xf32> to vector<8x32xf32>
    %461 = math.tanh %460 : vector<8x32xf32>
    %462 = vector.extract_strided_slice %459 {offsets = [0, 32], sizes = [8, 32], strides = [1, 1]} : vector<8x96xf32> to vector<8x32xf32>
    %463 = arith.negf %462 : vector<8x32xf32>
    %464 = math.exp %463 : vector<8x32xf32>
    %cst_163 = arith.constant 1.000000e+00 : f32
    %465 = vector.broadcast %cst_163 : f32 to vector<8x32xf32>
    %466 = arith.addf %465, %464 : vector<8x32xf32>
    %467 = arith.divf %465, %466 : vector<8x32xf32>
    %468 = vector.extract_strided_slice %459 {offsets = [0, 64], sizes = [8, 32], strides = [1, 1]} : vector<8x96xf32> to vector<8x32xf32>
    %469 = arith.negf %468 : vector<8x32xf32>
    %470 = math.exp %469 : vector<8x32xf32>
    %cst_164 = arith.constant 1.000000e+00 : f32
    %471 = vector.broadcast %cst_164 : f32 to vector<8x32xf32>
    %472 = arith.addf %471, %470 : vector<8x32xf32>
    %473 = arith.divf %471, %472 : vector<8x32xf32>
    %474 = arith.mulf %461, %467 : vector<8x32xf32>
    %475 = arith.mulf %455, %473 : vector<8x32xf32>
    %476 = arith.addf %474, %475 : vector<8x32xf32>
    %c2_165 = arith.constant 2 : index
    %c0_166 = arith.constant 0 : index
    %c0_167 = arith.constant 0 : index
    %477 = vector.load %arg3[%c2_165, %c0_166, %c0_167] : memref<3x32x96xf32, #tpu.memory_space<vmem>>, vector<1x32x96xf32>
    %478 = vector.shape_cast %477 : vector<1x32x96xf32> to vector<32x96xf32>
    %cst_168 = arith.constant dense<0.000000e+00> : vector<8x96xf32>
    %479 = tpu.matmul %476, %478, %cst_168 {dimension_numbers = #tpu.dot_dimension_numbers<[1], [0], [0], [1], [0, 0, 1, 1], [], []>} : vector<8x32xf32>, vector<32x96xf32>, vector<8x96xf32> -> vector<8x96xf32>
    %480 = arith.addf %479, %10 : vector<8x96xf32>
    %481 = vector.extract_strided_slice %480 {offsets = [0, 0], sizes = [8, 32], strides = [1, 1]} : vector<8x96xf32> to vector<8x32xf32>
    %482 = math.tanh %481 : vector<8x32xf32>
    %483 = vector.extract_strided_slice %480 {offsets = [0, 32], sizes = [8, 32], strides = [1, 1]} : vector<8x96xf32> to vector<8x32xf32>
    %484 = arith.negf %483 : vector<8x32xf32>
    %485 = math.exp %484 : vector<8x32xf32>
    %cst_169 = arith.constant 1.000000e+00 : f32
    %486 = vector.broadcast %cst_169 : f32 to vector<8x32xf32>
    %487 = arith.addf %486, %485 : vector<8x32xf32>
    %488 = arith.divf %486, %487 : vector<8x32xf32>
    %489 = vector.extract_strided_slice %480 {offsets = [0, 64], sizes = [8, 32], strides = [1, 1]} : vector<8x96xf32> to vector<8x32xf32>
    %490 = arith.negf %489 : vector<8x32xf32>
    %491 = math.exp %490 : vector<8x32xf32>
    %cst_170 = arith.constant 1.000000e+00 : f32
    %492 = vector.broadcast %cst_170 : f32 to vector<8x32xf32>
    %493 = arith.addf %492, %491 : vector<8x32xf32>
    %494 = arith.divf %492, %493 : vector<8x32xf32>
    %495 = arith.mulf %482, %488 : vector<8x32xf32>
    %496 = arith.mulf %476, %494 : vector<8x32xf32>
    %497 = arith.addf %495, %496 : vector<8x32xf32>
    %c0_171 = arith.constant 0 : index
    %498 = arith.index_cast %c6_i32 : i32 to index
    %c0_172 = arith.constant 0 : index
    %c0_173 = arith.constant 0 : index
    %499 = vector.load %arg6[%c0_171, %498, %c0_172, %c0_173] : memref<1x8x8x32xf32, #tpu.memory_space<vmem>>, vector<1x1x8x32xf32>
    %500 = vector.shape_cast %499 : vector<1x1x8x32xf32> to vector<8x32xf32>
    %501 = vector.shape_cast %497 : vector<8x32xf32> to vector<1x1x8x32xf32>
    tpu.vector_store %arg6[%c0_171, %498, %c0_172, %c0_173], %501 {strides = array<i32>} : memref<1x8x8x32xf32, #tpu.memory_space<vmem>>, vector<1x1x8x32xf32>,
    %c7_i32 = arith.constant 7 : i32
    %c0_174 = arith.constant 0 : index
    %502 = arith.index_cast %c7_i32 : i32 to index
    %c0_175 = arith.constant 0 : index
    %c0_176 = arith.constant 0 : index
    %503 = vector.load %arg2[%c0_174, %502, %c0_175, %c0_176] : memref<1x8x8x96xf32, #tpu.memory_space<vmem>>, vector<1x1x8x96xf32>
    %504 = vector.shape_cast %503 : vector<1x1x8x96xf32> to vector<8x96xf32>
    %c0_177 = arith.constant 0 : index
    %c0_178 = arith.constant 0 : index
    %c0_179 = arith.constant 0 : index
    %505 = vector.load %arg3[%c0_177, %c0_178, %c0_179] : memref<3x32x96xf32, #tpu.memory_space<vmem>>, vector<1x32x96xf32>
    %506 = vector.shape_cast %505 : vector<1x32x96xf32> to vector<32x96xf32>
    %cst_180 = arith.constant dense<0.000000e+00> : vector<8x96xf32>
    %507 = tpu.matmul %497, %506, %cst_180 {dimension_numbers = #tpu.dot_dimension_numbers<[1], [0], [0], [1], [0, 0, 1, 1], [], []>} : vector<8x32xf32>, vector<32x96xf32>, vector<8x96xf32> -> vector<8x96xf32>
    %508 = arith.addf %507, %504 : vector<8x96xf32>
    %509 = vector.extract_strided_slice %508 {offsets = [0, 0], sizes = [8, 32], strides = [1, 1]} : vector<8x96xf32> to vector<8x32xf32>
    %510 = math.tanh %509 : vector<8x32xf32>
    %511 = vector.extract_strided_slice %508 {offsets = [0, 32], sizes = [8, 32], strides = [1, 1]} : vector<8x96xf32> to vector<8x32xf32>
    %512 = arith.negf %511 : vector<8x32xf32>
    %513 = math.exp %512 : vector<8x32xf32>
    %cst_181 = arith.constant 1.000000e+00 : f32
    %514 = vector.broadcast %cst_181 : f32 to vector<8x32xf32>
    %515 = arith.addf %514, %513 : vector<8x32xf32>
    %516 = arith.divf %514, %515 : vector<8x32xf32>
    %517 = vector.extract_strided_slice %508 {offsets = [0, 64], sizes = [8, 32], strides = [1, 1]} : vector<8x96xf32> to vector<8x32xf32>
    %518 = arith.negf %517 : vector<8x32xf32>
    %519 = math.exp %518 : vector<8x32xf32>
    %cst_182 = arith.constant 1.000000e+00 : f32
    %520 = vector.broadcast %cst_182 : f32 to vector<8x32xf32>
    %521 = arith.addf %520, %519 : vector<8x32xf32>
    %522 = arith.divf %520, %521 : vector<8x32xf32>
    %523 = arith.mulf %510, %516 : vector<8x32xf32>
    %524 = arith.mulf %497, %522 : vector<8x32xf32>
    %525 = arith.addf %523, %524 : vector<8x32xf32>
    %c1_183 = arith.constant 1 : index
    %c0_184 = arith.constant 0 : index
    %c0_185 = arith.constant 0 : index
    %526 = vector.load %arg3[%c1_183, %c0_184, %c0_185] : memref<3x32x96xf32, #tpu.memory_space<vmem>>, vector<1x32x96xf32>
    %527 = vector.shape_cast %526 : vector<1x32x96xf32> to vector<32x96xf32>
    %cst_186 = arith.constant dense<0.000000e+00> : vector<8x96xf32>
    %528 = tpu.matmul %525, %527, %cst_186 {dimension_numbers = #tpu.dot_dimension_numbers<[1], [0], [0], [1], [0, 0, 1, 1], [], []>} : vector<8x32xf32>, vector<32x96xf32>, vector<8x96xf32> -> vector<8x96xf32>
    %529 = arith.addf %528, %6 : vector<8x96xf32>
    %530 = vector.extract_strided_slice %529 {offsets = [0, 0], sizes = [8, 32], strides = [1, 1]} : vector<8x96xf32> to vector<8x32xf32>
    %531 = math.tanh %530 : vector<8x32xf32>
    %532 = vector.extract_strided_slice %529 {offsets = [0, 32], sizes = [8, 32], strides = [1, 1]} : vector<8x96xf32> to vector<8x32xf32>
    %533 = arith.negf %532 : vector<8x32xf32>
    %534 = math.exp %533 : vector<8x32xf32>
    %cst_187 = arith.constant 1.000000e+00 : f32
    %535 = vector.broadcast %cst_187 : f32 to vector<8x32xf32>
    %536 = arith.addf %535, %534 : vector<8x32xf32>
    %537 = arith.divf %535, %536 : vector<8x32xf32>
    %538 = vector.extract_strided_slice %529 {offsets = [0, 64], sizes = [8, 32], strides = [1, 1]} : vector<8x96xf32> to vector<8x32xf32>
    %539 = arith.negf %538 : vector<8x32xf32>
    %540 = math.exp %539 : vector<8x32xf32>
    %cst_188 = arith.constant 1.000000e+00 : f32
    %541 = vector.broadcast %cst_188 : f32 to vector<8x32xf32>
    %542 = arith.addf %541, %540 : vector<8x32xf32>
    %543 = arith.divf %541, %542 : vector<8x32xf32>
    %544 = arith.mulf %531, %537 : vector<8x32xf32>
    %545 = arith.mulf %525, %543 : vector<8x32xf32>
    %546 = arith.addf %544, %545 : vector<8x32xf32>
    %c2_189 = arith.constant 2 : index
    %c0_190 = arith.constant 0 : index
    %c0_191 = arith.constant 0 : index
    %547 = vector.load %arg3[%c2_189, %c0_190, %c0_191] : memref<3x32x96xf32, #tpu.memory_space<vmem>>, vector<1x32x96xf32>
    %548 = vector.shape_cast %547 : vector<1x32x96xf32> to vector<32x96xf32>
    %cst_192 = arith.constant dense<0.000000e+00> : vector<8x96xf32>
    %549 = tpu.matmul %546, %548, %cst_192 {dimension_numbers = #tpu.dot_dimension_numbers<[1], [0], [0], [1], [0, 0, 1, 1], [], []>} : vector<8x32xf32>, vector<32x96xf32>, vector<8x96xf32> -> vector<8x96xf32>
    %550 = arith.addf %549, %10 : vector<8x96xf32>
    %551 = vector.extract_strided_slice %550 {offsets = [0, 0], sizes = [8, 32], strides = [1, 1]} : vector<8x96xf32> to vector<8x32xf32>
    %552 = math.tanh %551 : vector<8x32xf32>
    %553 = vector.extract_strided_slice %550 {offsets = [0, 32], sizes = [8, 32], strides = [1, 1]} : vector<8x96xf32> to vector<8x32xf32>
    %554 = arith.negf %553 : vector<8x32xf32>
    %555 = math.exp %554 : vector<8x32xf32>
    %cst_193 = arith.constant 1.000000e+00 : f32
    %556 = vector.broadcast %cst_193 : f32 to vector<8x32xf32>
    %557 = arith.addf %556, %555 : vector<8x32xf32>
    %558 = arith.divf %556, %557 : vector<8x32xf32>
    %559 = vector.extract_strided_slice %550 {offsets = [0, 64], sizes = [8, 32], strides = [1, 1]} : vector<8x96xf32> to vector<8x32xf32>
    %560 = arith.negf %559 : vector<8x32xf32>
    %561 = math.exp %560 : vector<8x32xf32>
    %cst_194 = arith.constant 1.000000e+00 : f32
    %562 = vector.broadcast %cst_194 : f32 to vector<8x32xf32>
    %563 = arith.addf %562, %561 : vector<8x32xf32>
    %564 = arith.divf %562, %563 : vector<8x32xf32>
    %565 = arith.mulf %552, %558 : vector<8x32xf32>
    %566 = arith.mulf %546, %564 : vector<8x32xf32>
    %567 = arith.addf %565, %566 : vector<8x32xf32>
    %c0_195 = arith.constant 0 : index
    %568 = arith.index_cast %c7_i32 : i32 to index
    %c0_196 = arith.constant 0 : index
    %c0_197 = arith.constant 0 : index
    %569 = vector.load %arg6[%c0_195, %568, %c0_196, %c0_197] : memref<1x8x8x32xf32, #tpu.memory_space<vmem>>, vector<1x1x8x32xf32>
    %570 = vector.shape_cast %569 : vector<1x1x8x32xf32> to vector<8x32xf32>
    %571 = vector.shape_cast %567 : vector<8x32xf32> to vector<1x1x8x32xf32>
    tpu.vector_store %arg6[%c0_195, %568, %c0_196, %c0_197], %571 {strides = array<i32>} : memref<1x8x8x32xf32, #tpu.memory_space<vmem>>, vector<1x1x8x32xf32>,
    %c8_i32 = arith.constant 8 : i32
    %c0_198 = arith.constant 0 : index
    %c0_199 = arith.constant 0 : index
    %572 = vector.load %arg7[%c0_198, %c0_199] : memref<8x32xf32, #tpu.memory_space<vmem>>, vector<8x32xf32>
    tpu.vector_store %arg7[%c0_198, %c0_199], %567 {strides = array<i32>} : memref<8x32xf32, #tpu.memory_space<vmem>>, vector<8x32xf32>,
    return
  }
  func.func @transform_0(%arg0: i32, %arg1: i32) -> (i32, i32, i32, i32) {
    %c0_i32 = arith.constant 0 : i32
    %c0_i32_0 = arith.constant 0 : i32
    %c0_i32_1 = arith.constant 0 : i32
    return %arg0, %arg1, %c0_i32, %c0_i32_0 : i32, i32, i32, i32
  }
  func.func @transform_1(%arg0: i32, %arg1: i32) -> (i32, i32, i32) {
    %c0_i32 = arith.constant 0 : i32
    %c0_i32_0 = arith.constant 0 : i32
    %c0_i32_1 = arith.constant 0 : i32
    %c0_i32_2 = arith.constant 0 : i32
    return %c0_i32, %c0_i32_0, %c0_i32_1 : i32, i32, i32
  }
  func.func @transform_2(%arg0: i32, %arg1: i32) -> (i32, i32, i32) {
    %c0_i32 = arith.constant 0 : i32
    %c0_i32_0 = arith.constant 0 : i32
    %c0_i32_1 = arith.constant 0 : i32
    %c0_i32_2 = arith.constant 0 : i32
    return %c0_i32, %c0_i32_0, %c0_i32_1 : i32, i32, i32
  }
  func.func @transform_3(%arg0: i32, %arg1: i32) -> (i32, i32) {
    %c0_i32 = arith.constant 0 : i32
    %c0_i32_0 = arith.constant 0 : i32
    return %arg0, %c0_i32 : i32, i32
  }
  func.func @transform_4(%arg0: i32, %arg1: i32) -> (i32, i32, i32, i32) {
    %c0_i32 = arith.constant 0 : i32
    %c0_i32_0 = arith.constant 0 : i32
    %c0_i32_1 = arith.constant 0 : i32
    return %arg0, %arg1, %c0_i32, %c0_i32_0 : i32, i32, i32, i32
  }
  func.func @transform_5(%arg0: i32, %arg1: i32) -> (i32, i32) {
    %c0_i32 = arith.constant 0 : i32
    %c0_i32_0 = arith.constant 0 : i32
    return %arg0, %c0_i32 : i32, i32
  }
}

</mosaic_0001>

<llo_original>
// kernel: _rhn_forward_impl.1
$region0: #{_rhn_forward_impl.1}
  #allocation0 [shape = 'u32[]', space=smem, size = 0x4, offset = 0x4, fixed_abs, tag = 'smem constant byte address 0x4 - core index']
  #allocation1 [shape = 'u32[144,128]{1,0:T(1,128)}', space=vmem, size = 0x12000, scoped, tag = 'internal scratch']
  %s0 = inlined_call_operand.vmem [shape: f32[1,8,8,96], index: 0, kind: input, shape index: {}]
  %s1 = inlined_call_operand.vmem [shape: f32[3,32,96], index: 1, kind: input, shape index: {}]
  %s2 = inlined_call_operand.vmem [shape: f32[3,1,96], index: 2, kind: input, shape index: {}]
  %s3 = inlined_call_operand.vmem [shape: f32[8,32], index: 3, kind: input, shape index: {}]
  %s4 = inlined_call_operand.vmem [shape: f32[1,8,8,32], index: 4, kind: output, shape index: {0}]
  %s5 = inlined_call_operand.hbm [shape: f32[8,32], index: 5, kind: output, shape index: {1}]
  %6 = xla_tuple %s4, %s5
  %s7 = sld [smem:[#allocation0]]
  $region38: #{_rhn_forward_impl.1} parent=0
    _
  %s9 = ssub.s32 1, %s7
  %s10 = scalar_select 0, %s9, %s7
  $region1: #{_rhn_forward_impl.1} parent=0
    #allocation2 [shape = 'u8[4096]{0}', space=vmem, size = 0x1000, scoped, tag = 'output window, operand 1, single buffered']
    #allocation3 [shape = 's32[1]{0}', space=sflag, size = 0x4, scoped, tag = 'scoped memory for _rhn_forward_impl.1']
    %11 = vsyncpa [#allocation3], 0
    // Predicated region
    $region2: #{_rhn_forward_impl.1} parent=1 // pred_check
      _
    $region3: #{_rhn_forward_impl.1} parent=1 // pred_check_branch
      %13 = sbr.rel (0) target = $region5
    $region4: #{_rhn_forward_impl.1} parent=1 // pred_region
      _
    $region5: #{_rhn_forward_impl.1} parent=1 // pred_fallthru
      _
    // Predicated region
    $region6: #{_rhn_forward_impl.1} parent=1 // pred_check
      _
    $region7: #{_rhn_forward_impl.1} parent=1 // pred_check_branch
      %15 = sbr.rel (0) target = $region9
    $region8: #{_rhn_forward_impl.1} parent=1 // pred_region
      _
    $region9: #{_rhn_forward_impl.1} parent=1 // pred_fallthru
      _
    // Predicated region
    $region10: #{_rhn_forward_impl.1} parent=1 // pred_check
      _
    $region11: #{_rhn_forward_impl.1} parent=1 // pred_check_branch
      %17 = sbr.rel (0) target = $region13
    $region12: #{_rhn_forward_impl.1} parent=1 // pred_region
      _
    $region13: #{_rhn_forward_impl.1} parent=1 // pred_fallthru
      _
    // Predicated region
    $region14: #{_rhn_forward_impl.1} parent=1 // pred_check
      _
    $region15: #{_rhn_forward_impl.1} parent=1 // pred_check_branch
      %19 = sbr.rel (0) target = $region17
    $region16: #{_rhn_forward_impl.1} parent=1 // pred_region
      _
    $region17: #{_rhn_forward_impl.1} parent=1 // pred_fallthru
      _
    %p20 = scmp.eq.s32.totalorder 0, 0
    // Predicated region
    $region18: #{_rhn_forward_impl.1} parent=1 // pred_check
      %p21 = pneg %p20
    $region19: #{_rhn_forward_impl.1} parent=1 // pred_check_branch
      %23 = sbr.rel (%p21) target = $region21
    $region20: #{_rhn_forward_impl.1} parent=1 // pred_region
      %v24 = vld [vmem:[%s3] sm:$0xff]
      %vm25 = vcmask 261120
      %26 = vst.msk [vmem:[#allocation2] sm:$0xff] %vm25, %v24
    $region21: #{_rhn_forward_impl.1} parent=1 // pred_fallthru
      _
    %s27 = scalar_lea.vmem %s2, 1
    %v28 = vld [vmem:[%s27] sm:$0x1]
    %v30 = vlaneseq
    %v31 = vshrl.u32 %v30, 7
    %v32 = vsub.s32 0, %v31
    %v33 = vrot.slane %v28, %v32
    %s35 = scalar_lea.vmem %s2, 2
    %v36 = vld [vmem:[%s35] sm:$0x1]
    %v38 = vlaneseq
    %v39 = vshrl.u32 %v38, 7
    %v40 = vsub.s32 0, %v39
    %v41 = vrot.slane %v36, %v40
    %v43 = vld [vmem:[#allocation2] sm:$0xff]
    %v44 = vld [vmem:[%s0] sm:$0xff]
    %v45 = vld [vmem:[%s1] sm:$0xff]
    %v46 = vld [vmem:[%s1 + $0x8] sm:$0xff]
    %v47 = vld [vmem:[%s1 + $0x10] sm:$0xff]
    %v48 = vld [vmem:[%s1 + $0x18] sm:$0xff]
    %vm49 = vcmask 261120
    %v51 = vsel %vm49, %v43, 0
    %53 = vmatprep.subr.mxu0 0.0
    %54 = vmatpush1.msra.mxu0 %v45
    %55 = vmatprep.subr.mxu0 0.0
    %56 = vmatpush1.msra.mxu0 %v46
    %57 = vmatprep.subr.mxu0 0.0
    %58 = vmatpush1.msra.mxu0 %v47
    %59 = vmatprep.subr.mxu0 0.0
    %60 = vmatpush1.msra.mxu0 %v48
    %61 = vmatprep.subr.mxu0 0.0
    %62 = vmatpush1.msra.mxu0 0.0
    %63 = vmatprep.subr.mxu0 0.0
    %64 = vmatpush1.msra.mxu0 0.0
    %65 = vmatprep.subr.mxu0 0.0
    %66 = vmatpush1.msra.mxu0 0.0
    %67 = vmatprep.subr.mxu0 0.0
    %68 = vmatpush1.msra.mxu0 0.0
    %69 = vmatprep.subr.mxu0 0.0
    %70 = vmatpush1.msra.mxu0 0.0
    %71 = vmatprep.subr.mxu0 0.0
    %72 = vmatpush1.msra.mxu0 0.0
    %73 = vmatprep.subr.mxu0 0.0
    %74 = vmatpush1.msra.mxu0 0.0
    %75 = vmatprep.subr.mxu0 0.0
    %76 = vmatpush1.msra.mxu0 0.0
    %77 = vmatprep.subr.mxu0 0.0
    %78 = vmatpush1.msra.mxu0 0.0
    %79 = vmatprep.subr.mxu0 0.0
    %80 = vmatpush1.msra.mxu0 0.0
    %81 = vmatprep.subr.mxu0 0.0
    %82 = vmatpush1.msra.mxu0 0.0
    %83 = vmatprep.subr.mxu0 0.0
    %84 = vmatpush1.msra.mxu0 0.0
    %85 = vmatprep.subr.mxu0 0.0
    %86 = vmatpush1.msra.mxu0 0.0
    %87 = vmatprep.subr.mxu0 0.0
    %88 = vmatpush1.msra.mxu0 0.0
    %89 = vmatprep.subr.mxu0 0.0
    %90 = vmatpush1.msra.mxu0 0.0
    %91 = vmatprep.subr.mxu0 0.0
    %92 = vmatpush1.msra.mxu0 0.0
    %93 = vmatprep.subr.mxu0 0.0
    %94 = vmatpush1.msra.mxu0 0.0
    %95 = vmatprep.subr.mxu0 0.0
    %96 = vmatpush1.msra.mxu0 0.0
    %97 = vmatprep.subr.mxu0 0.0
    %98 = vmatpush1.msra.mxu0 0.0
    %99 = vmatprep.subr.mxu0 0.0
    %100 = vmatpush1.msra.mxu0 0.0
    %101 = vmatprep.subr.mxu0 0.0
    %102 = vmatpush1.msra.mxu0 0.0
    %103 = vmatprep.subr.mxu0 0.0
    %104 = vmatpush1.msra.mxu0 0.0
    %105 = vmatprep.subr.mxu0 0.0
    %106 = vmatpush1.msra.mxu0 0.0
    %107 = vmatprep.subr.mxu0 0.0
    %108 = vmatpush1.msra.mxu0 0.0
    %109 = vmatprep.subr.mxu0 0.0
    %110 = vmatpush1.msra.mxu0 0.0
    %111 = vmatprep.subr.mxu0 0.0
    %112 = vmatpush1.msra.mxu0 0.0
    %113 = vmatprep.subr.mxu0 0.0
    %114 = vmatpush1.msra.mxu0 0.0
    %115 = vmatprep.subr.mxu0 0.0
    %116 = vmatpush1.msra.mxu0 0.0
    %117 = vmatprep.mubr.f32.mxu0 0.0
    %118 = vmatmul.mubr.f32.gmra.mrb[0].mxu0 %v51
    %v119 = vpop.f32.mrb[0].mxu0
    %v120 = vadd.f32 %v44, %v119
    %v121 = vpop.f32.mrb[0].mxu0
    %122 = vdwg.mxu0
    %v123 = vtanh.pop %v120
    %v124 = vxor.u32 %v120, 2147483648
    %v125 = vmul.f32 %v124, 1.442695
    %v126 = vpow.pop %v125
    %v127 = vadd.f32 %v126, 1.0
    %v128 = vrcp.pop %v127
    %v129 = vmul.f32 1.0, %v128
    %131 = vrot.lane.b32.xlu0 %v129, 96
    %v132 = vpop.permute.xlu0 %131
    %v134 = vmul.f32 %v123, %v132
    %135 = vrot.lane.b32.xlu0 %v129, 64
    %v136 = vpop.permute.xlu0 %135
    %v138 = vmul.f32 %v43, %v136
    %v139 = vadd.f32 %v134, %v138
    %s140 = scalar_lea.vmem %s1, 32
    %v141 = vld [vmem:[%s140] sm:$0xff]
    %v142 = vld [vmem:[%s140 + $0x8] sm:$0xff]
    %v143 = vld [vmem:[%s140 + $0x10] sm:$0xff]
    %v144 = vld [vmem:[%s140 + $0x18] sm:$0xff]
    %v146 = vsel %vm49, %v139, 0
    %148 = vmatprep.subr.mxu0 0.0
    %149 = vmatpush1.msra.mxu0 %v141
    %150 = vmatprep.subr.mxu0 0.0
    %151 = vmatpush1.msra.mxu0 %v142
    %152 = vmatprep.subr.mxu0 0.0
    %153 = vmatpush1.msra.mxu0 %v143
    %154 = vmatprep.subr.mxu0 0.0
    %155 = vmatpush1.msra.mxu0 %v144
    %156 = vmatprep.subr.mxu0 0.0
    %157 = vmatpush1.msra.mxu0 0.0
    %158 = vmatprep.subr.mxu0 0.0
    %159 = vmatpush1.msra.mxu0 0.0
    %160 = vmatprep.subr.mxu0 0.0
    %161 = vmatpush1.msra.mxu0 0.0
    %162 = vmatprep.subr.mxu0 0.0
    %163 = vmatpush1.msra.mxu0 0.0
    %164 = vmatprep.subr.mxu0 0.0
    %165 = vmatpush1.msra.mxu0 0.0
    %166 = vmatprep.subr.mxu0 0.0
    %167 = vmatpush1.msra.mxu0 0.0
    %168 = vmatprep.subr.mxu0 0.0
    %169 = vmatpush1.msra.mxu0 0.0
    %170 = vmatprep.subr.mxu0 0.0
    %171 = vmatpush1.msra.mxu0 0.0
    %172 = vmatprep.subr.mxu0 0.0
    %173 = vmatpush1.msra.mxu0 0.0
    %174 = vmatprep.subr.mxu0 0.0
    %175 = vmatpush1.msra.mxu0 0.0
    %176 = vmatprep.subr.mxu0 0.0
    %177 = vmatpush1.msra.mxu0 0.0
    %178 = vmatprep.subr.mxu0 0.0
    %179 = vmatpush1.msra.mxu0 0.0
    %180 = vmatprep.subr.mxu0 0.0
    %181 = vmatpush1.msra.mxu0 0.0
    %182 = vmatprep.subr.mxu0 0.0
    %183 = vmatpush1.msra.mxu0 0.0
    %184 = vmatprep.subr.mxu0 0.0
    %185 = vmatpush1.msra.mxu0 0.0
    %186 = vmatprep.subr.mxu0 0.0
    %187 = vmatpush1.msra.mxu0 0.0
    %188 = vmatprep.subr.mxu0 0.0
    %189 = vmatpush1.msra.mxu0 0.0
    %190 = vmatprep.subr.mxu0 0.0
    %191 = vmatpush1.msra.mxu0 0.0
    %192 = vmatprep.subr.mxu0 0.0
    %193 = vmatpush1.msra.mxu0 0.0
    %194 = vmatprep.subr.mxu0 0.0
    %195 = vmatpush1.msra.mxu0 0.0
    %196 = vmatprep.subr.mxu0 0.0
    %197 = vmatpush1.msra.mxu0 0.0
    %198 = vmatprep.subr.mxu0 0.0
    %199 = vmatpush1.msra.mxu0 0.0
    %200 = vmatprep.subr.mxu0 0.0
    %201 = vmatpush1.msra.mxu0 0.0
    %202 = vmatprep.subr.mxu0 0.0
    %203 = vmatpush1.msra.mxu0 0.0
    %204 = vmatprep.subr.mxu0 0.0
    %205 = vmatpush1.msra.mxu0 0.0
    %206 = vmatprep.subr.mxu0 0.0
    %207 = vmatpush1.msra.mxu0 0.0
    %208 = vmatprep.subr.mxu0 0.0
    %209 = vmatpush1.msra.mxu0 0.0
    %210 = vmatprep.subr.mxu0 0.0
    %211 = vmatpush1.msra.mxu0 0.0
    %212 = vmatprep.mubr.f32.mxu0 0.0
    %213 = vmatmul.mubr.f32.gmra.mrb[0].mxu0 %v146
    %v214 = vpop.f32.mrb[0].mxu0
    %v215 = vadd.f32 %v33, %v214
    %v216 = vpop.f32.mrb[0].mxu0
    %217 = vdwg.mxu0
    %v218 = vtanh.pop %v215
    %v219 = vxor.u32 %v215, 2147483648
    %v220 = vmul.f32 %v219, 1.442695
    %v221 = vpow.pop %v220
    %v222 = vadd.f32 %v221, 1.0
    %v223 = vrcp.pop %v222
    %v224 = vmul.f32 1.0, %v223
    %226 = vrot.lane.b32.xlu0 %v224, 96
    %v227 = vpop.permute.xlu0 %226
    %v229 = vmul.f32 %v218, %v227
    %230 = vrot.lane.b32.xlu0 %v224, 64
    %v231 = vpop.permute.xlu0 %230
    %v233 = vmul.f32 %v139, %v231
    %v234 = vadd.f32 %v229, %v233
    %s235 = scalar_lea.vmem %s1, 64
    %v236 = vld [vmem:[%s235] sm:$0xff]
    %v237 = vld [vmem:[%s235 + $0x8] sm:$0xff]
    %v238 = vld [vmem:[%s235 + $0x10] sm:$0xff]
    %v239 = vld [vmem:[%s235 + $0x18] sm:$0xff]
    %v241 = vsel %vm49, %v234, 0
    %243 = vmatprep.subr.mxu0 0.0
    %244 = vmatpush1.msra.mxu0 %v236
    %245 = vmatprep.subr.mxu0 0.0
    %246 = vmatpush1.msra.mxu0 %v237
    %247 = vmatprep.subr.mxu0 0.0
    %248 = vmatpush1.msra.mxu0 %v238
    %249 = vmatprep.subr.mxu0 0.0
    %250 = vmatpush1.msra.mxu0 %v239
    %251 = vmatprep.subr.mxu0 0.0
    %252 = vmatpush1.msra.mxu0 0.0
    %253 = vmatprep.subr.mxu0 0.0
    %254 = vmatpush1.msra.mxu0 0.0
    %255 = vmatprep.subr.mxu0 0.0
    %256 = vmatpush1.msra.mxu0 0.0
    %257 = vmatprep.subr.mxu0 0.0
    %258 = vmatpush1.msra.mxu0 0.0
    %259 = vmatprep.subr.mxu0 0.0
    %260 = vmatpush1.msra.mxu0 0.0
    %261 = vmatprep.subr.mxu0 0.0
    %262 = vmatpush1.msra.mxu0 0.0
    %263 = vmatprep.subr.mxu0 0.0
    %264 = vmatpush1.msra.mxu0 0.0
    %265 = vmatprep.subr.mxu0 0.0
    %266 = vmatpush1.msra.mxu0 0.0
    %267 = vmatprep.subr.mxu0 0.0
    %268 = vmatpush1.msra.mxu0 0.0
    %269 = vmatprep.subr.mxu0 0.0
    %270 = vmatpush1.msra.mxu0 0.0
    %271 = vmatprep.subr.mxu0 0.0
    %272 = vmatpush1.msra.mxu0 0.0
    %273 = vmatprep.subr.mxu0 0.0
    %274 = vmatpush1.msra.mxu0 0.0
    %275 = vmatprep.subr.mxu0 0.0
    %276 = vmatpush1.msra.mxu0 0.0
    %277 = vmatprep.subr.mxu0 0.0
    %278 = vmatpush1.msra.mxu0 0.0
    %279 = vmatprep.subr.mxu0 0.0
    %280 = vmatpush1.msra.mxu0 0.0
    %281 = vmatprep.subr.mxu0 0.0
    %282 = vmatpush1.msra.mxu0 0.0
    %283 = vmatprep.subr.mxu0 0.0
    %284 = vmatpush1.msra.mxu0 0.0
    %285 = vmatprep.subr.mxu0 0.0
    %286 = vmatpush1.msra.mxu0 0.0
    %287 = vmatprep.subr.mxu0 0.0
    %288 = vmatpush1.msra.mxu0 0.0
    %289 = vmatprep.subr.mxu0 0.0
    %290 = vmatpush1.msra.mxu0 0.0
    %291 = vmatprep.subr.mxu0 0.0
    %292 = vmatpush1.msra.mxu0 0.0
    %293 = vmatprep.subr.mxu0 0.0
    %294 = vmatpush1.msra.mxu0 0.0
    %295 = vmatprep.subr.mxu0 0.0
    %296 = vmatpush1.msra.mxu0 0.0
    %297 = vmatprep.subr.mxu0 0.0
    %298 = vmatpush1.msra.mxu0 0.0
    %299 = vmatprep.subr.mxu0 0.0
    %300 = vmatpush1.msra.mxu0 0.0
    %301 = vmatprep.subr.mxu0 0.0
    %302 = vmatpush1.msra.mxu0 0.0
    %303 = vmatprep.subr.mxu0 0.0
    %304 = vmatpush1.msra.mxu0 0.0
    %305 = vmatprep.subr.mxu0 0.0
    %306 = vmatpush1.msra.mxu0 0.0
    %307 = vmatprep.mubr.f32.mxu0 0.0
    %308 = vmatmul.mubr.f32.gmra.mrb[0].mxu0 %v241
    %v309 = vpop.f32.mrb[0].mxu0
    %v310 = vadd.f32 %v41, %v309
    %v311 = vpop.f32.mrb[0].mxu0
    %312 = vdwg.mxu0
    %v313 = vtanh.pop %v310
    %v314 = vxor.u32 %v310, 2147483648
    %v315 = vmul.f32 %v314, 1.442695
    %v316 = vpow.pop %v315
    %v317 = vadd.f32 %v316, 1.0
    %v318 = vrcp.pop %v317
    %v319 = vmul.f32 1.0, %v318
    %321 = vrot.lane.b32.xlu0 %v319, 96
    %v322 = vpop.permute.xlu0 %321
    %v324 = vmul.f32 %v313, %v322
    %325 = vrot.lane.b32.xlu0 %v319, 64
    %v326 = vpop.permute.xlu0 %325
    %v328 = vmul.f32 %v234, %v326
    %v329 = vadd.f32 %v324, %v328
    %330 = vst.msk [vmem:[%s4] sm:$0xff] %vm49, %v329
    %s331 = scalar_lea.vmem %s0, 8
    %v332 = vld [vmem:[%s331] sm:$0xff]
    %v333 = vld [vmem:[%s1] sm:$0xff]
    %v334 = vld [vmem:[%s1 + $0x8] sm:$0xff]
    %v335 = vld [vmem:[%s1 + $0x10] sm:$0xff]
    %v336 = vld [vmem:[%s1 + $0x18] sm:$0xff]
    %v338 = vsel %vm49, %v329, 0
    %340 = vmatprep.subr.mxu0 0.0
    %341 = vmatpush1.msra.mxu0 %v333
    %342 = vmatprep.subr.mxu0 0.0
    %343 = vmatpush1.msra.mxu0 %v334
    %344 = vmatprep.subr.mxu0 0.0
    %345 = vmatpush1.msra.mxu0 %v335
    %346 = vmatprep.subr.mxu0 0.0
    %347 = vmatpush1.msra.mxu0 %v336
    %348 = vmatprep.subr.mxu0 0.0
    %349 = vmatpush1.msra.mxu0 0.0
    %350 = vmatprep.subr.mxu0 0.0
    %351 = vmatpush1.msra.mxu0 0.0
    %352 = vmatprep.subr.mxu0 0.0
    %353 = vmatpush1.msra.mxu0 0.0
    %354 = vmatprep.subr.mxu0 0.0
    %355 = vmatpush1.msra.mxu0 0.0
    %356 = vmatprep.subr.mxu0 0.0
    %357 = vmatpush1.msra.mxu0 0.0
    %358 = vmatprep.subr.mxu0 0.0
    %359 = vmatpush1.msra.mxu0 0.0
    %360 = vmatprep.subr.mxu0 0.0
    %361 = vmatpush1.msra.mxu0 0.0
    %362 = vmatprep.subr.mxu0 0.0
    %363 = vmatpush1.msra.mxu0 0.0
    %364 = vmatprep.subr.mxu0 0.0
    %365 = vmatpush1.msra.mxu0 0.0
    %366 = vmatprep.subr.mxu0 0.0
    %367 = vmatpush1.msra.mxu0 0.0
    %368 = vmatprep.subr.mxu0 0.0
    %369 = vmatpush1.msra.mxu0 0.0
    %370 = vmatprep.subr.mxu0 0.0
    %371 = vmatpush1.msra.mxu0 0.0
    %372 = vmatprep.subr.mxu0 0.0
    %373 = vmatpush1.msra.mxu0 0.0
    %374 = vmatprep.subr.mxu0 0.0
    %375 = vmatpush1.msra.mxu0 0.0
    %376 = vmatprep.subr.mxu0 0.0
    %377 = vmatpush1.msra.mxu0 0.0
    %378 = vmatprep.subr.mxu0 0.0
    %379 = vmatpush1.msra.mxu0 0.0
    %380 = vmatprep.subr.mxu0 0.0
    %381 = vmatpush1.msra.mxu0 0.0
    %382 = vmatprep.subr.mxu0 0.0
    %383 = vmatpush1.msra.mxu0 0.0
    %384 = vmatprep.subr.mxu0 0.0
    %385 = vmatpush1.msra.mxu0 0.0
    %386 = vmatprep.subr.mxu0 0.0
    %387 = vmatpush1.msra.mxu0 0.0
    %388 = vmatprep.subr.mxu0 0.0
    %389 = vmatpush1.msra.mxu0 0.0
    %390 = vmatprep.subr.mxu0 0.0
    %391 = vmatpush1.msra.mxu0 0.0
    %392 = vmatprep.subr.mxu0 0.0
    %393 = vmatpush1.msra.mxu0 0.0
    %394 = vmatprep.subr.mxu0 0.0
    %395 = vmatpush1.msra.mxu0 0.0
    %396 = vmatprep.subr.mxu0 0.0
    %397 = vmatpush1.msra.mxu0 0.0
    %398 = vmatprep.subr.mxu0 0.0
    %399 = vmatpush1.msra.mxu0 0.0
    %400 = vmatprep.subr.mxu0 0.0
    %401 = vmatpush1.msra.mxu0 0.0
    %402 = vmatprep.subr.mxu0 0.0
    %403 = vmatpush1.msra.mxu0 0.0
    %404 = vmatprep.mubr.f32.mxu0 0.0
    %405 = vmatmul.mubr.f32.gmra.mrb[0].mxu0 %v338
    %v406 = vpop.f32.mrb[0].mxu0
    %v407 = vadd.f32 %v332, %v406
    %v408 = vpop.f32.mrb[0].mxu0
    %409 = vdwg.mxu0
    %v410 = vtanh.pop %v407
    %v411 = vxor.u32 %v407, 2147483648
    %v412 = vmul.f32 %v411, 1.442695
    %v413 = vpow.pop %v412
    %v414 = vadd.f32 %v413, 1.0
    %v415 = vrcp.pop %v414
    %v416 = vmul.f32 1.0, %v415
    %418 = vrot.lane.b32.xlu0 %v416, 96
    %v419 = vpop.permute.xlu0 %418
    %v421 = vmul.f32 %v410, %v419
    %422 = vrot.lane.b32.xlu0 %v416, 64
    %v423 = vpop.permute.xlu0 %422
    %v425 = vmul.f32 %v329, %v423
    %v426 = vadd.f32 %v421, %v425
    %v427 = vld [vmem:[%s140] sm:$0xff]
    %v428 = vld [vmem:[%s140 + $0x8] sm:$0xff]
    %v429 = vld [vmem:[%s140 + $0x10] sm:$0xff]
    %v430 = vld [vmem:[%s140 + $0x18] sm:$0xff]
    %v432 = vsel %vm49, %v426, 0
    %434 = vmatprep.subr.mxu0 0.0
    %435 = vmatpush1.msra.mxu0 %v427
    %436 = vmatprep.subr.mxu0 0.0
    %437 = vmatpush1.msra.mxu0 %v428
    %438 = vmatprep.subr.mxu0 0.0
    %439 = vmatpush1.msra.mxu0 %v429
    %440 = vmatprep.subr.mxu0 0.0
    %441 = vmatpush1.msra.mxu0 %v430
    %442 = vmatprep.subr.mxu0 0.0
    %443 = vmatpush1.msra.mxu0 0.0
    %444 = vmatprep.subr.mxu0 0.0
    %445 = vmatpush1.msra.mxu0 0.0
    %446 = vmatprep.subr.mxu0 0.0
    %447 = vmatpush1.msra.mxu0 0.0
    %448 = vmatprep.subr.mxu0 0.0
    %449 = vmatpush1.msra.mxu0 0.0
    %450 = vmatprep.subr.mxu0 0.0
    %451 = vmatpush1.msra.mxu0 0.0
    %452 = vmatprep.subr.mxu0 0.0
    %453 = vmatpush1.msra.mxu0 0.0
    %454 = vmatprep.subr.mxu0 0.0
    %455 = vmatpush1.msra.mxu0 0.0
    %456 = vmatprep.subr.mxu0 0.0
    %457 = vmatpush1.msra.mxu0 0.0
    %458 = vmatprep.subr.mxu0 0.0
    %459 = vmatpush1.msra.mxu0 0.0
    %460 = vmatprep.subr.mxu0 0.0
    %461 = vmatpush1.msra.mxu0 0.0
    %462 = vmatprep.subr.mxu0 0.0
    %463 = vmatpush1.msra.mxu0 0.0
    %464 = vmatprep.subr.mxu0 0.0
    %465 = vmatpush1.msra.mxu0 0.0
    %466 = vmatprep.subr.mxu0 0.0
    %467 = vmatpush1.msra.mxu0 0.0
    %468 = vmatprep.subr.mxu0 0.0
    %469 = vmatpush1.msra.mxu0 0.0
    %470 = vmatprep.subr.mxu0 0.0
    %471 = vmatpush1.msra.mxu0 0.0
    %472 = vmatprep.subr.mxu0 0.0
    %473 = vmatpush1.msra.mxu0 0.0
    %474 = vmatprep.subr.mxu0 0.0
    %475 = vmatpush1.msra.mxu0 0.0
    %476 = vmatprep.subr.mxu0 0.0
    %477 = vmatpush1.msra.mxu0 0.0
    %478 = vmatprep.subr.mxu0 0.0
    %479 = vmatpush1.msra.mxu0 0.0
    %480 = vmatprep.subr.mxu0 0.0
    %481 = vmatpush1.msra.mxu0 0.0
    %482 = vmatprep.subr.mxu0 0.0
    %483 = vmatpush1.msra.mxu0 0.0
    %484 = vmatprep.subr.mxu0 0.0
    %485 = vmatpush1.msra.mxu0 0.0
    %486 = vmatprep.subr.mxu0 0.0
    %487 = vmatpush1.msra.mxu0 0.0
    %488 = vmatprep.subr.mxu0 0.0
    %489 = vmatpush1.msra.mxu0 0.0
    %490 = vmatprep.subr.mxu0 0.0
    %491 = vmatpush1.msra.mxu0 0.0
    %492 = vmatprep.subr.mxu0 0.0
    %493 = vmatpush1.msra.mxu0 0.0
    %494 = vmatprep.subr.mxu0 0.0
    %495 = vmatpush1.msra.mxu0 0.0
    %496 = vmatprep.subr.mxu0 0.0
    %497 = vmatpush1.msra.mxu0 0.0
    %498 = vmatprep.mubr.f32.mxu0 0.0
    %499 = vmatmul.mubr.f32.gmra.mrb[0].mxu0 %v432
    %v500 = vpop.f32.mrb[0].mxu0
    %v501 = vadd.f32 %v33, %v500
    %v502 = vpop.f32.mrb[0].mxu0
    %503 = vdwg.mxu0
    %v504 = vtanh.pop %v501
    %v505 = vxor.u32 %v501, 2147483648
    %v506 = vmul.f32 %v505, 1.442695
    %v507 = vpow.pop %v506
    %v508 = vadd.f32 %v507, 1.0
    %v509 = vrcp.pop %v508
    %v510 = vmul.f32 1.0, %v509
    %512 = vrot.lane.b32.xlu0 %v510, 96
    %v513 = vpop.permute.xlu0 %512
    %v515 = vmul.f32 %v504, %v513
    %516 = vrot.lane.b32.xlu0 %v510, 64
    %v517 = vpop.permute.xlu0 %516
    %v519 = vmul.f32 %v426, %v517
    %v520 = vadd.f32 %v515, %v519
    %v521 = vld [vmem:[%s235] sm:$0xff]
    %v522 = vld [vmem:[%s235 + $0x8] sm:$0xff]
    %v523 = vld [vmem:[%s235 + $0x10] sm:$0xff]
    %v524 = vld [vmem:[%s235 + $0x18] sm:$0xff]
    %v526 = vsel %vm49, %v520, 0
    %528 = vmatprep.subr.mxu0 0.0
    %529 = vmatpush1.msra.mxu0 %v521
    %530 = vmatprep.subr.mxu0 0.0
    %531 = vmatpush1.msra.mxu0 %v522
    %532 = vmatprep.subr.mxu0 0.0
    %533 = vmatpush1.msra.mxu0 %v523
    %534 = vmatprep.subr.mxu0 0.0
    %535 = vmatpush1.msra.mxu0 %v524
    %536 = vmatprep.subr.mxu0 0.0
    %537 = vmatpush1.msra.mxu0 0.0
    %538 = vmatprep.subr.mxu0 0.0
    %539 = vmatpush1.msra.mxu0 0.0
    %540 = vmatprep.subr.mxu0 0.0
    %541 = vmatpush1.msra.mxu0 0.0
    %542 = vmatprep.subr.mxu0 0.0
    %543 = vmatpush1.msra.mxu0 0.0
    %544 = vmatprep.subr.mxu0 0.0
    %545 = vmatpush1.msra.mxu0 0.0
    %546 = vmatprep.subr.mxu0 0.0
    %547 = vmatpush1.msra.mxu0 0.0
    %548 = vmatprep.subr.mxu0 0.0
    %549 = vmatpush1.msra.mxu0 0.0
    %550 = vmatprep.subr.mxu0 0.0
    %551 = vmatpush1.msra.mxu0 0.0
    %552 = vmatprep.subr.mxu0 0.0
    %553 = vmatpush1.msra.mxu0 0.0
    %554 = vmatprep.subr.mxu0 0.0
    %555 = vmatpush1.msra.mxu0 0.0
    %556 = vmatprep.subr.mxu0 0.0
    %557 = vmatpush1.msra.mxu0 0.0
    %558 = vmatprep.subr.mxu0 0.0
    %559 = vmatpush1.msra.mxu0 0.0
    %560 = vmatprep.subr.mxu0 0.0
    %561 = vmatpush1.msra.mxu0 0.0
    %562 = vmatprep.subr.mxu0 0.0
    %563 = vmatpush1.msra.mxu0 0.0
    %564 = vmatprep.subr.mxu0 0.0
    %565 = vmatpush1.msra.mxu0 0.0
    %566 = vmatprep.subr.mxu0 0.0
    %567 = vmatpush1.msra.mxu0 0.0
    %568 = vmatprep.subr.mxu0 0.0
    %569 = vmatpush1.msra.mxu0 0.0
    %570 = vmatprep.subr.mxu0 0.0
    %571 = vmatpush1.msra.mxu0 0.0
    %572 = vmatprep.subr.mxu0 0.0
    %573 = vmatpush1.msra.mxu0 0.0
    %574 = vmatprep.subr.mxu0 0.0
    %575 = vmatpush1.msra.mxu0 0.0
    %576 = vmatprep.subr.mxu0 0.0
    %577 = vmatpush1.msra.mxu0 0.0
    %578 = vmatprep.subr.mxu0 0.0
    %579 = vmatpush1.msra.mxu0 0.0
    %580 = vmatprep.subr.mxu0 0.0
    %581 = vmatpush1.msra.mxu0 0.0
    %582 = vmatprep.subr.mxu0 0.0
    %583 = vmatpush1.msra.mxu0 0.0
    %584 = vmatprep.subr.mxu0 0.0
    %585 = vmatpush1.msra.mxu0 0.0
    %586 = vmatprep.subr.mxu0 0.0
    %587 = vmatpush1.msra.mxu0 0.0
    %588 = vmatprep.subr.mxu0 0.0
    %589 = vmatpush1.msra.mxu0 0.0
    %590 = vmatprep.subr.mxu0 0.0
    %591 = vmatpush1.msra.mxu0 0.0
    %592 = vmatprep.mubr.f32.mxu0 0.0
    %593 = vmatmul.mubr.f32.gmra.mrb[0].mxu0 %v526
    %v594 = vpop.f32.mrb[0].mxu0
    %v595 = vadd.f32 %v41, %v594
    %v596 = vpop.f32.mrb[0].mxu0
    %597 = vdwg.mxu0
    %v598 = vtanh.pop %v595
    %v599 = vxor.u32 %v595, 2147483648
    %v600 = vmul.f32 %v599, 1.442695
    %v601 = vpow.pop %v600
    %v602 = vadd.f32 %v601, 1.0
    %v603 = vrcp.pop %v602
    %v604 = vmul.f32 1.0, %v603
    %606 = vrot.lane.b32.xlu0 %v604, 96
    %v607 = vpop.permute.xlu0 %606
    %v609 = vmul.f32 %v598, %v607
    %610 = vrot.lane.b32.xlu0 %v604, 64
    %v611 = vpop.permute.xlu0 %610
    %v613 = vmul.f32 %v520, %v611
    %v614 = vadd.f32 %v609, %v613
    %s615 = scalar_lea.vmem %s4, 8
    %616 = vst.msk [vmem:[%s615] sm:$0xff] %vm49, %v614
    %s617 = scalar_lea.vmem %s0, 16
    %v618 = vld [vmem:[%s617] sm:$0xff]
    %v619 = vld [vmem:[%s1] sm:$0xff]
    %v620 = vld [vmem:[%s1 + $0x8] sm:$0xff]
    %v621 = vld [vmem:[%s1 + $0x10] sm:$0xff]
    %v622 = vld [vmem:[%s1 + $0x18] sm:$0xff]
    %v624 = vsel %vm49, %v614, 0
    %626 = vmatprep.subr.mxu0 0.0
    %627 = vmatpush1.msra.mxu0 %v619
    %628 = vmatprep.subr.mxu0 0.0
    %629 = vmatpush1.msra.mxu0 %v620
    %630 = vmatprep.subr.mxu0 0.0
    %631 = vmatpush1.msra.mxu0 %v621
    %632 = vmatprep.subr.mxu0 0.0
    %633 = vmatpush1.msra.mxu0 %v622
    %634 = vmatprep.subr.mxu0 0.0
    %635 = vmatpush1.msra.mxu0 0.0
    %636 = vmatprep.subr.mxu0 0.0
    %637 = vmatpush1.msra.mxu0 0.0
    %638 = vmatprep.subr.mxu0 0.0
    %639 = vmatpush1.msra.mxu0 0.0
    %640 = vmatprep.subr.mxu0 0.0
    %641 = vmatpush1.msra.mxu0 0.0
    %642 = vmatprep.subr.mxu0 0.0
    %643 = vmatpush1.msra.mxu0 0.0
    %644 = vmatprep.subr.mxu0 0.0
    %645 = vmatpush1.msra.mxu0 0.0
    %646 = vmatprep.subr.mxu0 0.0
    %647 = vmatpush1.msra.mxu0 0.0
    %648 = vmatprep.subr.mxu0 0.0
    %649 = vmatpush1.msra.mxu0 0.0
    %650 = vmatprep.subr.mxu0 0.0
    %651 = vmatpush1.msra.mxu0 0.0
    %652 = vmatprep.subr.mxu0 0.0
    %653 = vmatpush1.msra.mxu0 0.0
    %654 = vmatprep.subr.mxu0 0.0
    %655 = vmatpush1.msra.mxu0 0.0
    %656 = vmatprep.subr.mxu0 0.0
    %657 = vmatpush1.msra.mxu0 0.0
    %658 = vmatprep.subr.mxu0 0.0
    %659 = vmatpush1.msra.mxu0 0.0
    %660 = vmatprep.subr.mxu0 0.0
    %661 = vmatpush1.msra.mxu0 0.0
    %662 = vmatprep.subr.mxu0 0.0
    %663 = vmatpush1.msra.mxu0 0.0
    %664 = vmatprep.subr.mxu0 0.0
    %665 = vmatpush1.msra.mxu0 0.0
    %666 = vmatprep.subr.mxu0 0.0
    %667 = vmatpush1.msra.mxu0 0.0
    %668 = vmatprep.subr.mxu0 0.0
    %669 = vmatpush1.msra.mxu0 0.0
    %670 = vmatprep.subr.mxu0 0.0
    %671 = vmatpush1.msra.mxu0 0.0
    %672 = vmatprep.subr.mxu0 0.0
    %673 = vmatpush1.msra.mxu0 0.0
    %674 = vmatprep.subr.mxu0 0.0
    %675 = vmatpush1.msra.mxu0 0.0
    %676 = vmatprep.subr.mxu0 0.0
    %677 = vmatpush1.msra.mxu0 0.0
    %678 = vmatprep.subr.mxu0 0.0
    %679 = vmatpush1.msra.mxu0 0.0
    %680 = vmatprep.subr.mxu0 0.0
    %681 = vmatpush1.msra.mxu0 0.0
    %682 = vmatprep.subr.mxu0 0.0
    %683 = vmatpush1.msra.mxu0 0.0
    %684 = vmatprep.subr.mxu0 0.0
    %685 = vmatpush1.msra.mxu0 0.0
    %686 = vmatprep.subr.mxu0 0.0
    %687 = vmatpush1.msra.mxu0 0.0
    %688 = vmatprep.subr.mxu0 0.0
    %689 = vmatpush1.msra.mxu0 0.0
    %690 = vmatprep.mubr.f32.mxu0 0.0
    %691 = vmatmul.mubr.f32.gmra.mrb[0].mxu0 %v624
    %v692 = vpop.f32.mrb[0].mxu0
    %v693 = vadd.f32 %v618, %v692
    %v694 = vpop.f32.mrb[0].mxu0
    %695 = vdwg.mxu0
    %v696 = vtanh.pop %v693
    %v697 = vxor.u32 %v693, 2147483648
    %v698 = vmul.f32 %v697, 1.442695
    %v699 = vpow.pop %v698
    %v700 = vadd.f32 %v699, 1.0
    %v701 = vrcp.pop %v700
    %v702 = vmul.f32 1.0, %v701
    %704 = vrot.lane.b32.xlu0 %v702, 96
    %v705 = vpop.permute.xlu0 %704
    %v707 = vmul.f32 %v696, %v705
    %708 = vrot.lane.b32.xlu0 %v702, 64
    %v709 = vpop.permute.xlu0 %708
    %v711 = vmul.f32 %v614, %v709
    %v712 = vadd.f32 %v707, %v711
    %v713 = vld [vmem:[%s140] sm:$0xff]
    %v714 = vld [vmem:[%s140 + $0x8] sm:$0xff]
    %v715 = vld [vmem:[%s140 + $0x10] sm:$0xff]
    %v716 = vld [vmem:[%s140 + $0x18] sm:$0xff]
    %v718 = vsel %vm49, %v712, 0
    %720 = vmatprep.subr.mxu0 0.0
    %721 = vmatpush1.msra.mxu0 %v713
    %722 = vmatprep.subr.mxu0 0.0
    %723 = vmatpush1.msra.mxu0 %v714
    %724 = vmatprep.subr.mxu0 0.0
    %725 = vmatpush1.msra.mxu0 %v715
    %726 = vmatprep.subr.mxu0 0.0
    %727 = vmatpush1.msra.mxu0 %v716
    %728 = vmatprep.subr.mxu0 0.0
    %729 = vmatpush1.msra.mxu0 0.0
    %730 = vmatprep.subr.mxu0 0.0
    %731 = vmatpush1.msra.mxu0 0.0
    %732 = vmatprep.subr.mxu0 0.0
    %733 = vmatpush1.msra.mxu0 0.0
    %734 = vmatprep.subr.mxu0 0.0
    %735 = vmatpush1.msra.mxu0 0.0
    %736 = vmatprep.subr.mxu0 0.0
    %737 = vmatpush1.msra.mxu0 0.0
    %738 = vmatprep.subr.mxu0 0.0
    %739 = vmatpush1.msra.mxu0 0.0
    %740 = vmatprep.subr.mxu0 0.0
    %741 = vmatpush1.msra.mxu0 0.0
    %742 = vmatprep.subr.mxu0 0.0
    %743 = vmatpush1.msra.mxu0 0.0
    %744 = vmatprep.subr.mxu0 0.0
    %745 = vmatpush1.msra.mxu0 0.0
    %746 = vmatprep.subr.mxu0 0.0
    %747 = vmatpush1.msra.mxu0 0.0
    %748 = vmatprep.subr.mxu0 0.0
    %749 = vmatpush1.msra.mxu0 0.0
    %750 = vmatprep.subr.mxu0 0.0
    %751 = vmatpush1.msra.mxu0 0.0
    %752 = vmatprep.subr.mxu0 0.0
    %753 = vmatpush1.msra.mxu0 0.0
    %754 = vmatprep.subr.mxu0 0.0
    %755 = vmatpush1.msra.mxu0 0.0
    %756 = vmatprep.subr.mxu0 0.0
    %757 = vmatpush1.msra.mxu0 0.0
    %758 = vmatprep.subr.mxu0 0.0
    %759 = vmatpush1.msra.mxu0 0.0
    %760 = vmatprep.subr.mxu0 0.0
    %761 = vmatpush1.msra.mxu0 0.0
    %762 = vmatprep.subr.mxu0 0.0
    %763 = vmatpush1.msra.mxu0 0.0
    %764 = vmatprep.subr.mxu0 0.0
    %765 = vmatpush1.msra.mxu0 0.0
    %766 = vmatprep.subr.mxu0 0.0
    %767 = vmatpush1.msra.mxu0 0.0
    %768 = vmatprep.subr.mxu0 0.0
    %769 = vmatpush1.msra.mxu0 0.0
    %770 = vmatprep.subr.mxu0 0.0
    %771 = vmatpush1.msra.mxu0 0.0
    %772 = vmatprep.subr.mxu0 0.0
    %773 = vmatpush1.msra.mxu0 0.0
    %774 = vmatprep.subr.mxu0 0.0
    %775 = vmatpush1.msra.mxu0 0.0
    %776 = vmatprep.subr.mxu0 0.0
    %777 = vmatpush1.msra.mxu0 0.0
    %778 = vmatprep.subr.mxu0 0.0
    %779 = vmatpush1.msra.mxu0 0.0
    %780 = vmatprep.subr.mxu0 0.0
    %781 = vmatpush1.msra.mxu0 0.0
    %782 = vmatprep.subr.mxu0 0.0
    %783 = vmatpush1.msra.mxu0 0.0
    %784 = vmatprep.mubr.f32.mxu0 0.0
    %785 = vmatmul.mubr.f32.gmra.mrb[0].mxu0 %v718
    %v786 = vpop.f32.mrb[0].mxu0
    %v787 = vadd.f32 %v33, %v786
    %v788 = vpop.f32.mrb[0].mxu0
    %789 = vdwg.mxu0
    %v790 = vtanh.pop %v787
    %v791 = vxor.u32 %v787, 2147483648
    %v792 = vmul.f32 %v791, 1.442695
    %v793 = vpow.pop %v792
    %v794 = vadd.f32 %v793, 1.0
    %v795 = vrcp.pop %v794
    %v796 = vmul.f32 1.0, %v795
    %798 = vrot.lane.b32.xlu0 %v796, 96
    %v799 = vpop.permute.xlu0 %798
    %v801 = vmul.f32 %v790, %v799
    %802 = vrot.lane.b32.xlu0 %v796, 64
    %v803 = vpop.permute.xlu0 %802
    %v805 = vmul.f32 %v712, %v803
    %v806 = vadd.f32 %v801, %v805
    %v807 = vld [vmem:[%s235] sm:$0xff]
    %v808 = vld [vmem:[%s235 + $0x8] sm:$0xff]
    %v809 = vld [vmem:[%s235 + $0x10] sm:$0xff]
    %v810 = vld [vmem:[%s235 + $0x18] sm:$0xff]
    %v812 = vsel %vm49, %v806, 0
    %814 = vmatprep.subr.mxu0 0.0
    %815 = vmatpush1.msra.mxu0 %v807
    %816 = vmatprep.subr.mxu0 0.0
    %817 = vmatpush1.msra.mxu0 %v808
    %818 = vmatprep.subr.mxu0 0.0
    %819 = vmatpush1.msra.mxu0 %v809
    %820 = vmatprep.subr.mxu0 0.0
    %821 = vmatpush1.msra.mxu0 %v810
    %822 = vmatprep.subr.mxu0 0.0
    %823 = vmatpush1.msra.mxu0 0.0
    %824 = vmatprep.subr.mxu0 0.0
    %825 = vmatpush1.msra.mxu0 0.0
    %826 = vmatprep.subr.mxu0 0.0
    %827 = vmatpush1.msra.mxu0 0.0
    %828 = vmatprep.subr.mxu0 0.0
    %829 = vmatpush1.msra.mxu0 0.0
    %830 = vmatprep.subr.mxu0 0.0
    %831 = vmatpush1.msra.mxu0 0.0
    %832 = vmatprep.subr.mxu0 0.0
    %833 = vmatpush1.msra.mxu0 0.0
    %834 = vmatprep.subr.mxu0 0.0
    %835 = vmatpush1.msra.mxu0 0.0
    %836 = vmatprep.subr.mxu0 0.0
    %837 = vmatpush1.msra.mxu0 0.0
    %838 = vmatprep.subr.mxu0 0.0
    %839 = vmatpush1.msra.mxu0 0.0
    %840 = vmatprep.subr.mxu0 0.0
    %841 = vmatpush1.msra.mxu0 0.0
    %842 = vmatprep.subr.mxu0 0.0
    %843 = vmatpush1.msra.mxu0 0.0
    %844 = vmatprep.subr.mxu0 0.0
    %845 = vmatpush1.msra.mxu0 0.0
    %846 = vmatprep.subr.mxu0 0.0
    %847 = vmatpush1.msra.mxu0 0.0
    %848 = vmatprep.subr.mxu0 0.0
    %849 = vmatpush1.msra.mxu0 0.0
    %850 = vmatprep.subr.mxu0 0.0
    %851 = vmatpush1.msra.mxu0 0.0
    %852 = vmatprep.subr.mxu0 0.0
    %853 = vmatpush1.msra.mxu0 0.0
    %854 = vmatprep.subr.mxu0 0.0
    %855 = vmatpush1.msra.mxu0 0.0
    %856 = vmatprep.subr.mxu0 0.0
    %857 = vmatpush1.msra.mxu0 0.0
    %858 = vmatprep.subr.mxu0 0.0
    %859 = vmatpush1.msra.mxu0 0.0
    %860 = vmatprep.subr.mxu0 0.0
    %861 = vmatpush1.msra.mxu0 0.0
    %862 = vmatprep.subr.mxu0 0.0
    %863 = vmatpush1.msra.mxu0 0.0
    %864 = vmatprep.subr.mxu0 0.0
    %865 = vmatpush1.msra.mxu0 0.0
    %866 = vmatprep.subr.mxu0 0.0
    %867 = vmatpush1.msra.mxu0 0.0
    %868 = vmatprep.subr.mxu0 0.0
    %869 = vmatpush1.msra.mxu0 0.0
    %870 = vmatprep.subr.mxu0 0.0
    %871 = vmatpush1.msra.mxu0 0.0
    %872 = vmatprep.subr.mxu0 0.0
    %873 = vmatpush1.msra.mxu0 0.0
    %874 = vmatprep.subr.mxu0 0.0
    %875 = vmatpush1.msra.mxu0 0.0
    %876 = vmatprep.subr.mxu0 0.0
    %877 = vmatpush1.msra.mxu0 0.0
    %878 = vmatprep.mubr.f32.mxu0 0.0
    %879 = vmatmul.mubr.f32.gmra.mrb[0].mxu0 %v812
    %v880 = vpop.f32.mrb[0].mxu0
    %v881 = vadd.f32 %v41, %v880
    %v882 = vpop.f32.mrb[0].mxu0
    %883 = vdwg.mxu0
    %v884 = vtanh.pop %v881
    %v885 = vxor.u32 %v881, 2147483648
    %v886 = vmul.f32 %v885, 1.442695
    %v887 = vpow.pop %v886
    %v888 = vadd.f32 %v887, 1.0
    %v889 = vrcp.pop %v888
    %v890 = vmul.f32 1.0, %v889
    %892 = vrot.lane.b32.xlu0 %v890, 96
    %v893 = vpop.permute.xlu0 %892
    %v895 = vmul.f32 %v884, %v893
    %896 = vrot.lane.b32.xlu0 %v890, 64
    %v897 = vpop.permute.xlu0 %896
    %v899 = vmul.f32 %v806, %v897
    %v900 = vadd.f32 %v895, %v899
    %s901 = scalar_lea.vmem %s4, 16
    %902 = vst.msk [vmem:[%s901] sm:$0xff] %vm49, %v900
    %s903 = scalar_lea.vmem %s0, 24
    %v904 = vld [vmem:[%s903] sm:$0xff]
    %v905 = vld [vmem:[%s1] sm:$0xff]
    %v906 = vld [vmem:[%s1 + $0x8] sm:$0xff]
    %v907 = vld [vmem:[%s1 + $0x10] sm:$0xff]
    %v908 = vld [vmem:[%s1 + $0x18] sm:$0xff]
    %v910 = vsel %vm49, %v900, 0
    %912 = vmatprep.subr.mxu0 0.0
    %913 = vmatpush1.msra.mxu0 %v905
    %914 = vmatprep.subr.mxu0 0.0
    %915 = vmatpush1.msra.mxu0 %v906
    %916 = vmatprep.subr.mxu0 0.0
    %917 = vmatpush1.msra.mxu0 %v907
    %918 = vmatprep.subr.mxu0 0.0
    %919 = vmatpush1.msra.mxu0 %v908
    %920 = vmatprep.subr.mxu0 0.0
    %921 = vmatpush1.msra.mxu0 0.0
    %922 = vmatprep.subr.mxu0 0.0
    %923 = vmatpush1.msra.mxu0 0.0
    %924 = vmatprep.subr.mxu0 0.0
    %925 = vmatpush1.msra.mxu0 0.0
    %926 = vmatprep.subr.mxu0 0.0
    %927 = vmatpush1.msra.mxu0 0.0
    %928 = vmatprep.subr.mxu0 0.0
    %929 = vmatpush1.msra.mxu0 0.0
    %930 = vmatprep.subr.mxu0 0.0
    %931 = vmatpush1.msra.mxu0 0.0
    %932 = vmatprep.subr.mxu0 0.0
    %933 = vmatpush1.msra.mxu0 0.0
    %934 = vmatprep.subr.mxu0 0.0
    %935 = vmatpush1.msra.mxu0 0.0
    %936 = vmatprep.subr.mxu0 0.0
    %937 = vmatpush1.msra.mxu0 0.0
    %938 = vmatprep.subr.mxu0 0.0
    %939 = vmatpush1.msra.mxu0 0.0
    %940 = vmatprep.subr.mxu0 0.0
    %941 = vmatpush1.msra.mxu0 0.0
    %942 = vmatprep.subr.mxu0 0.0
    %943 = vmatpush1.msra.mxu0 0.0
    %944 = vmatprep.subr.mxu0 0.0
    %945 = vmatpush1.msra.mxu0 0.0
    %946 = vmatprep.subr.mxu0 0.0
    %947 = vmatpush1.msra.mxu0 0.0
    %948 = vmatprep.subr.mxu0 0.0
    %949 = vmatpush1.msra.mxu0 0.0
    %950 = vmatprep.subr.mxu0 0.0
    %951 = vmatpush1.msra.mxu0 0.0
    %952 = vmatprep.subr.mxu0 0.0
    %953 = vmatpush1.msra.mxu0 0.0
    %954 = vmatprep.subr.mxu0 0.0
    %955 = vmatpush1.msra.mxu0 0.0
    %956 = vmatprep.subr.mxu0 0.0
    %957 = vmatpush1.msra.mxu0 0.0
    %958 = vmatprep.subr.mxu0 0.0
    %959 = vmatpush1.msra.mxu0 0.0
    %960 = vmatprep.subr.mxu0 0.0
    %961 = vmatpush1.msra.mxu0 0.0
    %962 = vmatprep.subr.mxu0 0.0
    %963 = vmatpush1.msra.mxu0 0.0
    %964 = vmatprep.subr.mxu0 0.0
    %965 = vmatpush1.msra.mxu0 0.0
    %966 = vmatprep.subr.mxu0 0.0
    %967 = vmatpush1.msra.mxu0 0.0
    %968 = vmatprep.subr.mxu0 0.0
    %969 = vmatpush1.msra.mxu0 0.0
    %970 = vmatprep.subr.mxu0 0.0
    %971 = vmatpush1.msra.mxu0 0.0
    %972 = vmatprep.subr.mxu0 0.0
    %973 = vmatpush1.msra.mxu0 0.0
    %974 = vmatprep.subr.mxu0 0.0
    %975 = vmatpush1.msra.mxu0 0.0
    %976 = vmatprep.mubr.f32.mxu0 0.0
    %977 = vmatmul.mubr.f32.gmra.mrb[0].mxu0 %v910
    %v978 = vpop.f32.mrb[0].mxu0
    %v979 = vadd.f32 %v904, %v978
    %v980 = vpop.f32.mrb[0].mxu0
    %981 = vdwg.mxu0
    %v982 = vtanh.pop %v979
    %v983 = vxor.u32 %v979, 2147483648
    %v984 = vmul.f32 %v983, 1.442695
    %v985 = vpow.pop %v984
    %v986 = vadd.f32 %v985, 1.0
    %v987 = vrcp.pop %v986
    %v988 = vmul.f32 1.0, %v987
    %990 = vrot.lane.b32.xlu0 %v988, 96
    %v991 = vpop.permute.xlu0 %990
    %v993 = vmul.f32 %v982, %v991
    %994 = vrot.lane.b32.xlu0 %v988, 64
    %v995 = vpop.permute.xlu0 %994
    %v997 = vmul.f32 %v900, %v995
    %v998 = vadd.f32 %v993, %v997
    %v999 = vld [vmem:[%s140] sm:$0xff]
    %v1000 = vld [vmem:[%s140 + $0x8] sm:$0xff]
    %v1001 = vld [vmem:[%s140 + $0x10] sm:$0xff]
    %v1002 = vld [vmem:[%s140 + $0x18] sm:$0xff]
    %v1004 = vsel %vm49, %v998, 0
    %1006 = vmatprep.subr.mxu0 0.0
    %1007 = vmatpush1.msra.mxu0 %v999
    %1008 = vmatprep.subr.mxu0 0.0
    %1009 = vmatpush1.msra.mxu0 %v1000
    %1010 = vmatprep.subr.mxu0 0.0
    %1011 = vmatpush1.msra.mxu0 %v1001
    %1012 = vmatprep.subr.mxu0 0.0
    %1013 = vmatpush1.msra.mxu0 %v1002
    %1014 = vmatprep.subr.mxu0 0.0
    %1015 = vmatpush1.msra.mxu0 0.0
    %1016 = vmatprep.subr.mxu0 0.0
    %1017 = vmatpush1.msra.mxu0 0.0
    %1018 = vmatprep.subr.mxu0 0.0
    %1019 = vmatpush1.msra.mxu0 0.0
    %1020 = vmatprep.subr.mxu0 0.0
    %1021 = vmatpush1.msra.mxu0 0.0
    %1022 = vmatprep.subr.mxu0 0.0
    %1023 = vmatpush1.msra.mxu0 0.0
    %1024 = vmatprep.subr.mxu0 0.0
    %1025 = vmatpush1.msra.mxu0 0.0
    %1026 = vmatprep.subr.mxu0 0.0
    %1027 = vmatpush1.msra.mxu0 0.0
    %1028 = vmatprep.subr.mxu0 0.0
    %1029 = vmatpush1.msra.mxu0 0.0
    %1030 = vmatprep.subr.mxu0 0.0
    %1031 = vmatpush1.msra.mxu0 0.0
    %1032 = vmatprep.subr.mxu0 0.0
    %1033 = vmatpush1.msra.mxu0 0.0
    %1034 = vmatprep.subr.mxu0 0.0
    %1035 = vmatpush1.msra.mxu0 0.0
    %1036 = vmatprep.subr.mxu0 0.0
    %1037 = vmatpush1.msra.mxu0 0.0
    %1038 = vmatprep.subr.mxu0 0.0
    %1039 = vmatpush1.msra.mxu0 0.0
    %1040 = vmatprep.subr.mxu0 0.0
    %1041 = vmatpush1.msra.mxu0 0.0
    %1042 = vmatprep.subr.mxu0 0.0
    %1043 = vmatpush1.msra.mxu0 0.0
    %1044 = vmatprep.subr.mxu0 0.0
    %1045 = vmatpush1.msra.mxu0 0.0
    %1046 = vmatprep.subr.mxu0 0.0
    %1047 = vmatpush1.msra.mxu0 0.0
    %1048 = vmatprep.subr.mxu0 0.0
    %1049 = vmatpush1.msra.mxu0 0.0
    %1050 = vmatprep.subr.mxu0 0.0
    %1051 = vmatpush1.msra.mxu0 0.0
    %1052 = vmatprep.subr.mxu0 0.0
    %1053 = vmatpush1.msra.mxu0 0.0
    %1054 = vmatprep.subr.mxu0 0.0
    %1055 = vmatpush1.msra.mxu0 0.0
    %1056 = vmatprep.subr.mxu0 0.0
    %1057 = vmatpush1.msra.mxu0 0.0
    %1058 = vmatprep.subr.mxu0 0.0
    %1059 = vmatpush1.msra.mxu0 0.0
    %1060 = vmatprep.subr.mxu0 0.0
    %1061 = vmatpush1.msra.mxu0 0.0
    %1062 = vmatprep.subr.mxu0 0.0
    %1063 = vmatpush1.msra.mxu0 0.0
    %1064 = vmatprep.subr.mxu0 0.0
    %1065 = vmatpush1.msra.mxu0 0.0
    %1066 = vmatprep.subr.mxu0 0.0
    %1067 = vmatpush1.msra.mxu0 0.0
    %1068 = vmatprep.subr.mxu0 0.0
    %1069 = vmatpush1.msra.mxu0 0.0
    %1070 = vmatprep.mubr.f32.mxu0 0.0
    %1071 = vmatmul.mubr.f32.gmra.mrb[0].mxu0 %v1004
    %v1072 = vpop.f32.mrb[0].mxu0
    %v1073 = vadd.f32 %v33, %v1072
    %v1074 = vpop.f32.mrb[0].mxu0
    %1075 = vdwg.mxu0
    %v1076 = vtanh.pop %v1073
    %v1077 = vxor.u32 %v1073, 2147483648
    %v1078 = vmul.f32 %v1077, 1.442695
    %v1079 = vpow.pop %v1078
    %v1080 = vadd.f32 %v1079, 1.0
    %v1081 = vrcp.pop %v1080
    %v1082 = vmul.f32 1.0, %v1081
    %1084 = vrot.lane.b32.xlu0 %v1082, 96
    %v1085 = vpop.permute.xlu0 %1084
    %v1087 = vmul.f32 %v1076, %v1085
    %1088 = vrot.lane.b32.xlu0 %v1082, 64
    %v1089 = vpop.permute.xlu0 %1088
    %v1091 = vmul.f32 %v998, %v1089
    %v1092 = vadd.f32 %v1087, %v1091
    %v1093 = vld [vmem:[%s235] sm:$0xff]
    %v1094 = vld [vmem:[%s235 + $0x8] sm:$0xff]
    %v1095 = vld [vmem:[%s235 + $0x10] sm:$0xff]
    %v1096 = vld [vmem:[%s235 + $0x18] sm:$0xff]
    %v1098 = vsel %vm49, %v1092, 0
    %1100 = vmatprep.subr.mxu0 0.0
    %1101 = vmatpush1.msra.mxu0 %v1093
    %1102 = vmatprep.subr.mxu0 0.0
    %1103 = vmatpush1.msra.mxu0 %v1094
    %1104 = vmatprep.subr.mxu0 0.0
    %1105 = vmatpush1.msra.mxu0 %v1095
    %1106 = vmatprep.subr.mxu0 0.0
    %1107 = vmatpush1.msra.mxu0 %v1096
    %1108 = vmatprep.subr.mxu0 0.0
    %1109 = vmatpush1.msra.mxu0 0.0
    %1110 = vmatprep.subr.mxu0 0.0
    %1111 = vmatpush1.msra.mxu0 0.0
    %1112 = vmatprep.subr.mxu0 0.0
    %1113 = vmatpush1.msra.mxu0 0.0
    %1114 = vmatprep.subr.mxu0 0.0
    %1115 = vmatpush1.msra.mxu0 0.0
    %1116 = vmatprep.subr.mxu0 0.0
    %1117 = vmatpush1.msra.mxu0 0.0
    %1118 = vmatprep.subr.mxu0 0.0
    %1119 = vmatpush1.msra.mxu0 0.0
    %1120 = vmatprep.subr.mxu0 0.0
    %1121 = vmatpush1.msra.mxu0 0.0
    %1122 = vmatprep.subr.mxu0 0.0
    %1123 = vmatpush1.msra.mxu0 0.0
    %1124 = vmatprep.subr.mxu0 0.0
    %1125 = vmatpush1.msra.mxu0 0.0
    %1126 = vmatprep.subr.mxu0 0.0
    %1127 = vmatpush1.msra.mxu0 0.0
    %1128 = vmatprep.subr.mxu0 0.0
    %1129 = vmatpush1.msra.mxu0 0.0
    %1130 = vmatprep.subr.mxu0 0.0
    %1131 = vmatpush1.msra.mxu0 0.0
    %1132 = vmatprep.subr.mxu0 0.0
    %1133 = vmatpush1.msra.mxu0 0.0
    %1134 = vmatprep.subr.mxu0 0.0
    %1135 = vmatpush1.msra.mxu0 0.0
    %1136 = vmatprep.subr.mxu0 0.0
    %1137 = vmatpush1.msra.mxu0 0.0
    %1138 = vmatprep.subr.mxu0 0.0
    %1139 = vmatpush1.msra.mxu0 0.0
    %1140 = vmatprep.subr.mxu0 0.0
    %1141 = vmatpush1.msra.mxu0 0.0
    %1142 = vmatprep.subr.mxu0 0.0
    %1143 = vmatpush1.msra.mxu0 0.0
    %1144 = vmatprep.subr.mxu0 0.0
    %1145 = vmatpush1.msra.mxu0 0.0
    %1146 = vmatprep.subr.mxu0 0.0
    %1147 = vmatpush1.msra.mxu0 0.0
    %1148 = vmatprep.subr.mxu0 0.0
    %1149 = vmatpush1.msra.mxu0 0.0
    %1150 = vmatprep.subr.mxu0 0.0
    %1151 = vmatpush1.msra.mxu0 0.0
    %1152 = vmatprep.subr.mxu0 0.0
    %1153 = vmatpush1.msra.mxu0 0.0
    %1154 = vmatprep.subr.mxu0 0.0
    %1155 = vmatpush1.msra.mxu0 0.0
    %1156 = vmatprep.subr.mxu0 0.0
    %1157 = vmatpush1.msra.mxu0 0.0
    %1158 = vmatprep.subr.mxu0 0.0
    %1159 = vmatpush1.msra.mxu0 0.0
    %1160 = vmatprep.subr.mxu0 0.0
    %1161 = vmatpush1.msra.mxu0 0.0
    %1162 = vmatprep.subr.mxu0 0.0
    %1163 = vmatpush1.msra.mxu0 0.0
    %1164 = vmatprep.mubr.f32.mxu0 0.0
    %1165 = vmatmul.mubr.f32.gmra.mrb[0].mxu0 %v1098
    %v1166 = vpop.f32.mrb[0].mxu0
    %v1167 = vadd.f32 %v41, %v1166
    %v1168 = vpop.f32.mrb[0].mxu0
    %1169 = vdwg.mxu0
    %v1170 = vtanh.pop %v1167
    %v1171 = vxor.u32 %v1167, 2147483648
    %v1172 = vmul.f32 %v1171, 1.442695
    %v1173 = vpow.pop %v1172
    %v1174 = vadd.f32 %v1173, 1.0
    %v1175 = vrcp.pop %v1174
    %v1176 = vmul.f32 1.0, %v1175
    %1178 = vrot.lane.b32.xlu0 %v1176, 96
    %v1179 = vpop.permute.xlu0 %1178
    %v1181 = vmul.f32 %v1170, %v1179
    %1182 = vrot.lane.b32.xlu0 %v1176, 64
    %v1183 = vpop.permute.xlu0 %1182
    %v1185 = vmul.f32 %v1092, %v1183
    %v1186 = vadd.f32 %v1181, %v1185
    %s1187 = scalar_lea.vmem %s4, 24
    %1188 = vst.msk [vmem:[%s1187] sm:$0xff] %vm49, %v1186
    %s1189 = scalar_lea.vmem %s0, 32
    %v1190 = vld [vmem:[%s1189] sm:$0xff]
    %v1191 = vld [vmem:[%s1] sm:$0xff]
    %v1192 = vld [vmem:[%s1 + $0x8] sm:$0xff]
    %v1193 = vld [vmem:[%s1 + $0x10] sm:$0xff]
    %v1194 = vld [vmem:[%s1 + $0x18] sm:$0xff]
    %v1196 = vsel %vm49, %v1186, 0
    %1198 = vmatprep.subr.mxu0 0.0
    %1199 = vmatpush1.msra.mxu0 %v1191
    %1200 = vmatprep.subr.mxu0 0.0
    %1201 = vmatpush1.msra.mxu0 %v1192
    %1202 = vmatprep.subr.mxu0 0.0
    %1203 = vmatpush1.msra.mxu0 %v1193
    %1204 = vmatprep.subr.mxu0 0.0
    %1205 = vmatpush1.msra.mxu0 %v1194
    %1206 = vmatprep.subr.mxu0 0.0
    %1207 = vmatpush1.msra.mxu0 0.0
    %1208 = vmatprep.subr.mxu0 0.0
    %1209 = vmatpush1.msra.mxu0 0.0
    %1210 = vmatprep.subr.mxu0 0.0
    %1211 = vmatpush1.msra.mxu0 0.0
    %1212 = vmatprep.subr.mxu0 0.0
    %1213 = vmatpush1.msra.mxu0 0.0
    %1214 = vmatprep.subr.mxu0 0.0
    %1215 = vmatpush1.msra.mxu0 0.0
    %1216 = vmatprep.subr.mxu0 0.0
    %1217 = vmatpush1.msra.mxu0 0.0
    %1218 = vmatprep.subr.mxu0 0.0
    %1219 = vmatpush1.msra.mxu0 0.0
    %1220 = vmatprep.subr.mxu0 0.0
    %1221 = vmatpush1.msra.mxu0 0.0
    %1222 = vmatprep.subr.mxu0 0.0
    %1223 = vmatpush1.msra.mxu0 0.0
    %1224 = vmatprep.subr.mxu0 0.0
    %1225 = vmatpush1.msra.mxu0 0.0
    %1226 = vmatprep.subr.mxu0 0.0
    %1227 = vmatpush1.msra.mxu0 0.0
    %1228 = vmatprep.subr.mxu0 0.0
    %1229 = vmatpush1.msra.mxu0 0.0
    %1230 = vmatprep.subr.mxu0 0.0
    %1231 = vmatpush1.msra.mxu0 0.0
    %1232 = vmatprep.subr.mxu0 0.0
    %1233 = vmatpush1.msra.mxu0 0.0
    %1234 = vmatprep.subr.mxu0 0.0
    %1235 = vmatpush1.msra.mxu0 0.0
    %1236 = vmatprep.subr.mxu0 0.0
    %1237 = vmatpush1.msra.mxu0 0.0
    %1238 = vmatprep.subr.mxu0 0.0
    %1239 = vmatpush1.msra.mxu0 0.0
    %1240 = vmatprep.subr.mxu0 0.0
    %1241 = vmatpush1.msra.mxu0 0.0
    %1242 = vmatprep.subr.mxu0 0.0
    %1243 = vmatpush1.msra.mxu0 0.0
    %1244 = vmatprep.subr.mxu0 0.0
    %1245 = vmatpush1.msra.mxu0 0.0
    %1246 = vmatprep.subr.mxu0 0.0
    %1247 = vmatpush1.msra.mxu0 0.0
    %1248 = vmatprep.subr.mxu0 0.0
    %1249 = vmatpush1.msra.mxu0 0.0
    %1250 = vmatprep.subr.mxu0 0.0
    %1251 = vmatpush1.msra.mxu0 0.0
    %1252 = vmatprep.subr.mxu0 0.0
    %1253 = vmatpush1.msra.mxu0 0.0
    %1254 = vmatprep.subr.mxu0 0.0
    %1255 = vmatpush1.msra.mxu0 0.0
    %1256 = vmatprep.subr.mxu0 0.0
    %1257 = vmatpush1.msra.mxu0 0.0
    %1258 = vmatprep.subr.mxu0 0.0
    %1259 = vmatpush1.msra.mxu0 0.0
    %1260 = vmatprep.subr.mxu0 0.0
    %1261 = vmatpush1.msra.mxu0 0.0
    %1262 = vmatprep.mubr.f32.mxu0 0.0
    %1263 = vmatmul.mubr.f32.gmra.mrb[0].mxu0 %v1196
    %v1264 = vpop.f32.mrb[0].mxu0
    %v1265 = vadd.f32 %v1190, %v1264
    %v1266 = vpop.f32.mrb[0].mxu0
    %1267 = vdwg.mxu0
    %v1268 = vtanh.pop %v1265
    %v1269 = vxor.u32 %v1265, 2147483648
    %v1270 = vmul.f32 %v1269, 1.442695
    %v1271 = vpow.pop %v1270
    %v1272 = vadd.f32 %v1271, 1.0
    %v1273 = vrcp.pop %v1272
    %v1274 = vmul.f32 1.0, %v1273
    %1276 = vrot.lane.b32.xlu0 %v1274, 96
    %v1277 = vpop.permute.xlu0 %1276
    %v1279 = vmul.f32 %v1268, %v1277
    %1280 = vrot.lane.b32.xlu0 %v1274, 64
    %v1281 = vpop.permute.xlu0 %1280
    %v1283 = vmul.f32 %v1186, %v1281
    %v1284 = vadd.f32 %v1279, %v1283
    %v1285 = vld [vmem:[%s140] sm:$0xff]
    %v1286 = vld [vmem:[%s140 + $0x8] sm:$0xff]
    %v1287 = vld [vmem:[%s140 + $0x10] sm:$0xff]
    %v1288 = vld [vmem:[%s140 + $0x18] sm:$0xff]
    %v1290 = vsel %vm49, %v1284, 0
    %1292 = vmatprep.subr.mxu0 0.0
    %1293 = vmatpush1.msra.mxu0 %v1285
    %1294 = vmatprep.subr.mxu0 0.0
    %1295 = vmatpush1.msra.mxu0 %v1286
    %1296 = vmatprep.subr.mxu0 0.0
    %1297 = vmatpush1.msra.mxu0 %v1287
    %1298 = vmatprep.subr.mxu0 0.0
    %1299 = vmatpush1.msra.mxu0 %v1288
    %1300 = vmatprep.subr.mxu0 0.0
    %1301 = vmatpush1.msra.mxu0 0.0
    %1302 = vmatprep.subr.mxu0 0.0
    %1303 = vmatpush1.msra.mxu0 0.0
    %1304 = vmatprep.subr.mxu0 0.0
    %1305 = vmatpush1.msra.mxu0 0.0
    %1306 = vmatprep.subr.mxu0 0.0
    %1307 = vmatpush1.msra.mxu0 0.0
    %1308 = vmatprep.subr.mxu0 0.0
    %1309 = vmatpush1.msra.mxu0 0.0
    %1310 = vmatprep.subr.mxu0 0.0
    %1311 = vmatpush1.msra.mxu0 0.0
    %1312 = vmatprep.subr.mxu0 0.0
    %1313 = vmatpush1.msra.mxu0 0.0
    %1314 = vmatprep.subr.mxu0 0.0
    %1315 = vmatpush1.msra.mxu0 0.0
    %1316 = vmatprep.subr.mxu0 0.0
    %1317 = vmatpush1.msra.mxu0 0.0
    %1318 = vmatprep.subr.mxu0 0.0
    %1319 = vmatpush1.msra.mxu0 0.0
    %1320 = vmatprep.subr.mxu0 0.0
    %1321 = vmatpush1.msra.mxu0 0.0
    %1322 = vmatprep.subr.mxu0 0.0
    %1323 = vmatpush1.msra.mxu0 0.0
    %1324 = vmatprep.subr.mxu0 0.0
    %1325 = vmatpush1.msra.mxu0 0.0
    %1326 = vmatprep.subr.mxu0 0.0
    %1327 = vmatpush1.msra.mxu0 0.0
    %1328 = vmatprep.subr.mxu0 0.0
    %1329 = vmatpush1.msra.mxu0 0.0
    %1330 = vmatprep.subr.mxu0 0.0
    %1331 = vmatpush1.msra.mxu0 0.0
    %1332 = vmatprep.subr.mxu0 0.0
    %1333 = vmatpush1.msra.mxu0 0.0
    %1334 = vmatprep.subr.mxu0 0.0
    %1335 = vmatpush1.msra.mxu0 0.0
    %1336 = vmatprep.subr.mxu0 0.0
    %1337 = vmatpush1.msra.mxu0 0.0
    %1338 = vmatprep.subr.mxu0 0.0
    %1339 = vmatpush1.msra.mxu0 0.0
    %1340 = vmatprep.subr.mxu0 0.0
    %1341 = vmatpush1.msra.mxu0 0.0
    %1342 = vmatprep.subr.mxu0 0.0
    %1343 = vmatpush1.msra.mxu0 0.0
    %1344 = vmatprep.subr.mxu0 0.0
    %1345 = vmatpush1.msra.mxu0 0.0
    %1346 = vmatprep.subr.mxu0 0.0
    %1347 = vmatpush1.msra.mxu0 0.0
    %1348 = vmatprep.subr.mxu0 0.0
    %1349 = vmatpush1.msra.mxu0 0.0
    %1350 = vmatprep.subr.mxu0 0.0
    %1351 = vmatpush1.msra.mxu0 0.0
    %1352 = vmatprep.subr.mxu0 0.0
    %1353 = vmatpush1.msra.mxu0 0.0
    %1354 = vmatprep.subr.mxu0 0.0
    %1355 = vmatpush1.msra.mxu0 0.0
    %1356 = vmatprep.mubr.f32.mxu0 0.0
    %1357 = vmatmul.mubr.f32.gmra.mrb[0].mxu0 %v1290
    %v1358 = vpop.f32.mrb[0].mxu0
    %v1359 = vadd.f32 %v33, %v1358
    %v1360 = vpop.f32.mrb[0].mxu0
    %1361 = vdwg.mxu0
    %v1362 = vtanh.pop %v1359
    %v1363 = vxor.u32 %v1359, 2147483648
    %v1364 = vmul.f32 %v1363, 1.442695
    %v1365 = vpow.pop %v1364
    %v1366 = vadd.f32 %v1365, 1.0
    %v1367 = vrcp.pop %v1366
    %v1368 = vmul.f32 1.0, %v1367
    %1370 = vrot.lane.b32.xlu0 %v1368, 96
    %v1371 = vpop.permute.xlu0 %1370
    %v1373 = vmul.f32 %v1362, %v1371
    %1374 = vrot.lane.b32.xlu0 %v1368, 64
    %v1375 = vpop.permute.xlu0 %1374
    %v1377 = vmul.f32 %v1284, %v1375
    %v1378 = vadd.f32 %v1373, %v1377
    %v1379 = vld [vmem:[%s235] sm:$0xff]
    %v1380 = vld [vmem:[%s235 + $0x8] sm:$0xff]
    %v1381 = vld [vmem:[%s235 + $0x10] sm:$0xff]
    %v1382 = vld [vmem:[%s235 + $0x18] sm:$0xff]
    %v1384 = vsel %vm49, %v1378, 0
    %1386 = vmatprep.subr.mxu0 0.0
    %1387 = vmatpush1.msra.mxu0 %v1379
    %1388 = vmatprep.subr.mxu0 0.0
    %1389 = vmatpush1.msra.mxu0 %v1380
    %1390 = vmatprep.subr.mxu0 0.0
    %1391 = vmatpush1.msra.mxu0 %v1381
    %1392 = vmatprep.subr.mxu0 0.0
    %1393 = vmatpush1.msra.mxu0 %v1382
    %1394 = vmatprep.subr.mxu0 0.0
    %1395 = vmatpush1.msra.mxu0 0.0
    %1396 = vmatprep.subr.mxu0 0.0
    %1397 = vmatpush1.msra.mxu0 0.0
    %1398 = vmatprep.subr.mxu0 0.0
    %1399 = vmatpush1.msra.mxu0 0.0
    %1400 = vmatprep.subr.mxu0 0.0
    %1401 = vmatpush1.msra.mxu0 0.0
    %1402 = vmatprep.subr.mxu0 0.0
    %1403 = vmatpush1.msra.mxu0 0.0
    %1404 = vmatprep.subr.mxu0 0.0
    %1405 = vmatpush1.msra.mxu0 0.0
    %1406 = vmatprep.subr.mxu0 0.0
    %1407 = vmatpush1.msra.mxu0 0.0
    %1408 = vmatprep.subr.mxu0 0.0
    %1409 = vmatpush1.msra.mxu0 0.0
    %1410 = vmatprep.subr.mxu0 0.0
    %1411 = vmatpush1.msra.mxu0 0.0
    %1412 = vmatprep.subr.mxu0 0.0
    %1413 = vmatpush1.msra.mxu0 0.0
    %1414 = vmatprep.subr.mxu0 0.0
    %1415 = vmatpush1.msra.mxu0 0.0
    %1416 = vmatprep.subr.mxu0 0.0
    %1417 = vmatpush1.msra.mxu0 0.0
    %1418 = vmatprep.subr.mxu0 0.0
    %1419 = vmatpush1.msra.mxu0 0.0
    %1420 = vmatprep.subr.mxu0 0.0
    %1421 = vmatpush1.msra.mxu0 0.0
    %1422 = vmatprep.subr.mxu0 0.0
    %1423 = vmatpush1.msra.mxu0 0.0
    %1424 = vmatprep.subr.mxu0 0.0
    %1425 = vmatpush1.msra.mxu0 0.0
    %1426 = vmatprep.subr.mxu0 0.0
    %1427 = vmatpush1.msra.mxu0 0.0
    %1428 = vmatprep.subr.mxu0 0.0
    %1429 = vmatpush1.msra.mxu0 0.0
    %1430 = vmatprep.subr.mxu0 0.0
    %1431 = vmatpush1.msra.mxu0 0.0
    %1432 = vmatprep.subr.mxu0 0.0
    %1433 = vmatpush1.msra.mxu0 0.0
    %1434 = vmatprep.subr.mxu0 0.0
    %1435 = vmatpush1.msra.mxu0 0.0
    %1436 = vmatprep.subr.mxu0 0.0
    %1437 = vmatpush1.msra.mxu0 0.0
    %1438 = vmatprep.subr.mxu0 0.0
    %1439 = vmatpush1.msra.mxu0 0.0
    %1440 = vmatprep.subr.mxu0 0.0
    %1441 = vmatpush1.msra.mxu0 0.0
    %1442 = vmatprep.subr.mxu0 0.0
    %1443 = vmatpush1.msra.mxu0 0.0
    %1444 = vmatprep.subr.mxu0 0.0
    %1445 = vmatpush1.msra.mxu0 0.0
    %1446 = vmatprep.subr.mxu0 0.0
    %1447 = vmatpush1.msra.mxu0 0.0
    %1448 = vmatprep.subr.mxu0 0.0
    %1449 = vmatpush1.msra.mxu0 0.0
    %1450 = vmatprep.mubr.f32.mxu0 0.0
    %1451 = vmatmul.mubr.f32.gmra.mrb[0].mxu0 %v1384
    %v1452 = vpop.f32.mrb[0].mxu0
    %v1453 = vadd.f32 %v41, %v1452
    %v1454 = vpop.f32.mrb[0].mxu0
    %1455 = vdwg.mxu0
    %v1456 = vtanh.pop %v1453
    %v1457 = vxor.u32 %v1453, 2147483648
    %v1458 = vmul.f32 %v1457, 1.442695
    %v1459 = vpow.pop %v1458
    %v1460 = vadd.f32 %v1459, 1.0
    %v1461 = vrcp.pop %v1460
    %v1462 = vmul.f32 1.0, %v1461
    %1464 = vrot.lane.b32.xlu0 %v1462, 96
    %v1465 = vpop.permute.xlu0 %1464
    %v1467 = vmul.f32 %v1456, %v1465
    %1468 = vrot.lane.b32.xlu0 %v1462, 64
    %v1469 = vpop.permute.xlu0 %1468
    %v1471 = vmul.f32 %v1378, %v1469
    %v1472 = vadd.f32 %v1467, %v1471
    %s1473 = scalar_lea.vmem %s4, 32
    %1474 = vst.msk [vmem:[%s1473] sm:$0xff] %vm49, %v1472
    %s1475 = scalar_lea.vmem %s0, 40
    %v1476 = vld [vmem:[%s1475] sm:$0xff]
    %v1477 = vld [vmem:[%s1] sm:$0xff]
    %v1478 = vld [vmem:[%s1 + $0x8] sm:$0xff]
    %v1479 = vld [vmem:[%s1 + $0x10] sm:$0xff]
    %v1480 = vld [vmem:[%s1 + $0x18] sm:$0xff]
    %v1482 = vsel %vm49, %v1472, 0
    %1484 = vmatprep.subr.mxu0 0.0
    %1485 = vmatpush1.msra.mxu0 %v1477
    %1486 = vmatprep.subr.mxu0 0.0
    %1487 = vmatpush1.msra.mxu0 %v1478
    %1488 = vmatprep.subr.mxu0 0.0
    %1489 = vmatpush1.msra.mxu0 %v1479
    %1490 = vmatprep.subr.mxu0 0.0
    %1491 = vmatpush1.msra.mxu0 %v1480
    %1492 = vmatprep.subr.mxu0 0.0
    %1493 = vmatpush1.msra.mxu0 0.0
    %1494 = vmatprep.subr.mxu0 0.0
    %1495 = vmatpush1.msra.mxu0 0.0
    %1496 = vmatprep.subr.mxu0 0.0
    %1497 = vmatpush1.msra.mxu0 0.0
    %1498 = vmatprep.subr.mxu0 0.0
    %1499 = vmatpush1.msra.mxu0 0.0
    %1500 = vmatprep.subr.mxu0 0.0
    %1501 = vmatpush1.msra.mxu0 0.0
    %1502 = vmatprep.subr.mxu0 0.0
    %1503 = vmatpush1.msra.mxu0 0.0
    %1504 = vmatprep.subr.mxu0 0.0
    %1505 = vmatpush1.msra.mxu0 0.0
    %1506 = vmatprep.subr.mxu0 0.0
    %1507 = vmatpush1.msra.mxu0 0.0
    %1508 = vmatprep.subr.mxu0 0.0
    %1509 = vmatpush1.msra.mxu0 0.0
    %1510 = vmatprep.subr.mxu0 0.0
    %1511 = vmatpush1.msra.mxu0 0.0
    %1512 = vmatprep.subr.mxu0 0.0
    %1513 = vmatpush1.msra.mxu0 0.0
    %1514 = vmatprep.subr.mxu0 0.0
    %1515 = vmatpush1.msra.mxu0 0.0
    %1516 = vmatprep.subr.mxu0 0.0
    %1517 = vmatpush1.msra.mxu0 0.0
    %1518 = vmatprep.subr.mxu0 0.0
    %1519 = vmatpush1.msra.mxu0 0.0
    %1520 = vmatprep.subr.mxu0 0.0
    %1521 = vmatpush1.msra.mxu0 0.0
    %1522 = vmatprep.subr.mxu0 0.0
    %1523 = vmatpush1.msra.mxu0 0.0
    %1524 = vmatprep.subr.mxu0 0.0
    %1525 = vmatpush1.msra.mxu0 0.0
    %1526 = vmatprep.subr.mxu0 0.0
    %1527 = vmatpush1.msra.mxu0 0.0
    %1528 = vmatprep.subr.mxu0 0.0
    %1529 = vmatpush1.msra.mxu0 0.0
    %1530 = vmatprep.subr.mxu0 0.0
    %1531 = vmatpush1.msra.mxu0 0.0
    %1532 = vmatprep.subr.mxu0 0.0
    %1533 = vmatpush1.msra.mxu0 0.0
    %1534 = vmatprep.subr.mxu0 0.0
    %1535 = vmatpush1.msra.mxu0 0.0
    %1536 = vmatprep.subr.mxu0 0.0
    %1537 = vmatpush1.msra.mxu0 0.0
    %1538 = vmatprep.subr.mxu0 0.0
    %1539 = vmatpush1.msra.mxu0 0.0
    %1540 = vmatprep.subr.mxu0 0.0
    %1541 = vmatpush1.msra.mxu0 0.0
    %1542 = vmatprep.subr.mxu0 0.0
    %1543 = vmatpush1.msra.mxu0 0.0
    %1544 = vmatprep.subr.mxu0 0.0
    %1545 = vmatpush1.msra.mxu0 0.0
    %1546 = vmatprep.subr.mxu0 0.0
    %1547 = vmatpush1.msra.mxu0 0.0
    %1548 = vmatprep.mubr.f32.mxu0 0.0
    %1549 = vmatmul.mubr.f32.gmra.mrb[0].mxu0 %v1482
    %v1550 = vpop.f32.mrb[0].mxu0
    %v1551 = vadd.f32 %v1476, %v1550
    %v1552 = vpop.f32.mrb[0].mxu0
    %1553 = vdwg.mxu0
    %v1554 = vtanh.pop %v1551
    %v1555 = vxor.u32 %v1551, 2147483648
    %v1556 = vmul.f32 %v1555, 1.442695
    %v1557 = vpow.pop %v1556
    %v1558 = vadd.f32 %v1557, 1.0
    %v1559 = vrcp.pop %v1558
    %v1560 = vmul.f32 1.0, %v1559
    %1562 = vrot.lane.b32.xlu0 %v1560, 96
    %v1563 = vpop.permute.xlu0 %1562
    %v1565 = vmul.f32 %v1554, %v1563
    %1566 = vrot.lane.b32.xlu0 %v1560, 64
    %v1567 = vpop.permute.xlu0 %1566
    %v1569 = vmul.f32 %v1472, %v1567
    %v1570 = vadd.f32 %v1565, %v1569
    %v1571 = vld [vmem:[%s140] sm:$0xff]
    %v1572 = vld [vmem:[%s140 + $0x8] sm:$0xff]
    %v1573 = vld [vmem:[%s140 + $0x10] sm:$0xff]
    %v1574 = vld [vmem:[%s140 + $0x18] sm:$0xff]
    %v1576 = vsel %vm49, %v1570, 0
    %1578 = vmatprep.subr.mxu0 0.0
    %1579 = vmatpush1.msra.mxu0 %v1571
    %1580 = vmatprep.subr.mxu0 0.0
    %1581 = vmatpush1.msra.mxu0 %v1572
    %1582 = vmatprep.subr.mxu0 0.0
    %1583 = vmatpush1.msra.mxu0 %v1573
    %1584 = vmatprep.subr.mxu0 0.0
    %1585 = vmatpush1.msra.mxu0 %v1574
    %1586 = vmatprep.subr.mxu0 0.0
    %1587 = vmatpush1.msra.mxu0 0.0
    %1588 = vmatprep.subr.mxu0 0.0
    %1589 = vmatpush1.msra.mxu0 0.0
    %1590 = vmatprep.subr.mxu0 0.0
    %1591 = vmatpush1.msra.mxu0 0.0
    %1592 = vmatprep.subr.mxu0 0.0
    %1593 = vmatpush1.msra.mxu0 0.0
    %1594 = vmatprep.subr.mxu0 0.0
    %1595 = vmatpush1.msra.mxu0 0.0
    %1596 = vmatprep.subr.mxu0 0.0
    %1597 = vmatpush1.msra.mxu0 0.0
    %1598 = vmatprep.subr.mxu0 0.0
    %1599 = vmatpush1.msra.mxu0 0.0
    %1600 = vmatprep.subr.mxu0 0.0
    %1601 = vmatpush1.msra.mxu0 0.0
    %1602 = vmatprep.subr.mxu0 0.0
    %1603 = vmatpush1.msra.mxu0 0.0
    %1604 = vmatprep.subr.mxu0 0.0
    %1605 = vmatpush1.msra.mxu0 0.0
    %1606 = vmatprep.subr.mxu0 0.0
    %1607 = vmatpush1.msra.mxu0 0.0
    %1608 = vmatprep.subr.mxu0 0.0
    %1609 = vmatpush1.msra.mxu0 0.0
    %1610 = vmatprep.subr.mxu0 0.0
    %1611 = vmatpush1.msra.mxu0 0.0
    %1612 = vmatprep.subr.mxu0 0.0
    %1613 = vmatpush1.msra.mxu0 0.0
    %1614 = vmatprep.subr.mxu0 0.0
    %1615 = vmatpush1.msra.mxu0 0.0
    %1616 = vmatprep.subr.mxu0 0.0
    %1617 = vmatpush1.msra.mxu0 0.0
    %1618 = vmatprep.subr.mxu0 0.0
    %1619 = vmatpush1.msra.mxu0 0.0
    %1620 = vmatprep.subr.mxu0 0.0
    %1621 = vmatpush1.msra.mxu0 0.0
    %1622 = vmatprep.subr.mxu0 0.0
    %1623 = vmatpush1.msra.mxu0 0.0
    %1624 = vmatprep.subr.mxu0 0.0
    %1625 = vmatpush1.msra.mxu0 0.0
    %1626 = vmatprep.subr.mxu0 0.0
    %1627 = vmatpush1.msra.mxu0 0.0
    %1628 = vmatprep.subr.mxu0 0.0
    %1629 = vmatpush1.msra.mxu0 0.0
    %1630 = vmatprep.subr.mxu0 0.0
    %1631 = vmatpush1.msra.mxu0 0.0
    %1632 = vmatprep.subr.mxu0 0.0
    %1633 = vmatpush1.msra.mxu0 0.0
    %1634 = vmatprep.subr.mxu0 0.0
    %1635 = vmatpush1.msra.mxu0 0.0
    %1636 = vmatprep.subr.mxu0 0.0
    %1637 = vmatpush1.msra.mxu0 0.0
    %1638 = vmatprep.subr.mxu0 0.0
    %1639 = vmatpush1.msra.mxu0 0.0
    %1640 = vmatprep.subr.mxu0 0.0
    %1641 = vmatpush1.msra.mxu0 0.0
    %1642 = vmatprep.mubr.f32.mxu0 0.0
    %1643 = vmatmul.mubr.f32.gmra.mrb[0].mxu0 %v1576
    %v1644 = vpop.f32.mrb[0].mxu0
    %v1645 = vadd.f32 %v33, %v1644
    %v1646 = vpop.f32.mrb[0].mxu0
    %1647 = vdwg.mxu0
    %v1648 = vtanh.pop %v1645
    %v1649 = vxor.u32 %v1645, 2147483648
    %v1650 = vmul.f32 %v1649, 1.442695
    %v1651 = vpow.pop %v1650
    %v1652 = vadd.f32 %v1651, 1.0
    %v1653 = vrcp.pop %v1652
    %v1654 = vmul.f32 1.0, %v1653
    %1656 = vrot.lane.b32.xlu0 %v1654, 96
    %v1657 = vpop.permute.xlu0 %1656
    %v1659 = vmul.f32 %v1648, %v1657
    %1660 = vrot.lane.b32.xlu0 %v1654, 64
    %v1661 = vpop.permute.xlu0 %1660
    %v1663 = vmul.f32 %v1570, %v1661
    %v1664 = vadd.f32 %v1659, %v1663
    %v1665 = vld [vmem:[%s235] sm:$0xff]
    %v1666 = vld [vmem:[%s235 + $0x8] sm:$0xff]
    %v1667 = vld [vmem:[%s235 + $0x10] sm:$0xff]
    %v1668 = vld [vmem:[%s235 + $0x18] sm:$0xff]
    %v1670 = vsel %vm49, %v1664, 0
    %1672 = vmatprep.subr.mxu0 0.0
    %1673 = vmatpush1.msra.mxu0 %v1665
    %1674 = vmatprep.subr.mxu0 0.0
    %1675 = vmatpush1.msra.mxu0 %v1666
    %1676 = vmatprep.subr.mxu0 0.0
    %1677 = vmatpush1.msra.mxu0 %v1667
    %1678 = vmatprep.subr.mxu0 0.0
    %1679 = vmatpush1.msra.mxu0 %v1668
    %1680 = vmatprep.subr.mxu0 0.0
    %1681 = vmatpush1.msra.mxu0 0.0
    %1682 = vmatprep.subr.mxu0 0.0
    %1683 = vmatpush1.msra.mxu0 0.0
    %1684 = vmatprep.subr.mxu0 0.0
    %1685 = vmatpush1.msra.mxu0 0.0
    %1686 = vmatprep.subr.mxu0 0.0
    %1687 = vmatpush1.msra.mxu0 0.0
    %1688 = vmatprep.subr.mxu0 0.0
    %1689 = vmatpush1.msra.mxu0 0.0
    %1690 = vmatprep.subr.mxu0 0.0
    %1691 = vmatpush1.msra.mxu0 0.0
    %1692 = vmatprep.subr.mxu0 0.0
    %1693 = vmatpush1.msra.mxu0 0.0
    %1694 = vmatprep.subr.mxu0 0.0
    %1695 = vmatpush1.msra.mxu0 0.0
    %1696 = vmatprep.subr.mxu0 0.0
    %1697 = vmatpush1.msra.mxu0 0.0
    %1698 = vmatprep.subr.mxu0 0.0
    %1699 = vmatpush1.msra.mxu0 0.0
    %1700 = vmatprep.subr.mxu0 0.0
    %1701 = vmatpush1.msra.mxu0 0.0
    %1702 = vmatprep.subr.mxu0 0.0
    %1703 = vmatpush1.msra.mxu0 0.0
    %1704 = vmatprep.subr.mxu0 0.0
    %1705 = vmatpush1.msra.mxu0 0.0
    %1706 = vmatprep.subr.mxu0 0.0
    %1707 = vmatpush1.msra.mxu0 0.0
    %1708 = vmatprep.subr.mxu0 0.0
    %1709 = vmatpush1.msra.mxu0 0.0
    %1710 = vmatprep.subr.mxu0 0.0
    %1711 = vmatpush1.msra.mxu0 0.0
    %1712 = vmatprep.subr.mxu0 0.0
    %1713 = vmatpush1.msra.mxu0 0.0
    %1714 = vmatprep.subr.mxu0 0.0
    %1715 = vmatpush1.msra.mxu0 0.0
    %1716 = vmatprep.subr.mxu0 0.0
    %1717 = vmatpush1.msra.mxu0 0.0
    %1718 = vmatprep.subr.mxu0 0.0
    %1719 = vmatpush1.msra.mxu0 0.0
    %1720 = vmatprep.subr.mxu0 0.0
    %1721 = vmatpush1.msra.mxu0 0.0
    %1722 = vmatprep.subr.mxu0 0.0
    %1723 = vmatpush1.msra.mxu0 0.0
    %1724 = vmatprep.subr.mxu0 0.0
    %1725 = vmatpush1.msra.mxu0 0.0
    %1726 = vmatprep.subr.mxu0 0.0
    %1727 = vmatpush1.msra.mxu0 0.0
    %1728 = vmatprep.subr.mxu0 0.0
    %1729 = vmatpush1.msra.mxu0 0.0
    %1730 = vmatprep.subr.mxu0 0.0
    %1731 = vmatpush1.msra.mxu0 0.0
    %1732 = vmatprep.subr.mxu0 0.0
    %1733 = vmatpush1.msra.mxu0 0.0
    %1734 = vmatprep.subr.mxu0 0.0
    %1735 = vmatpush1.msra.mxu0 0.0
    %1736 = vmatprep.mubr.f32.mxu0 0.0
    %1737 = vmatmul.mubr.f32.gmra.mrb[0].mxu0 %v1670
    %v1738 = vpop.f32.mrb[0].mxu0
    %v1739 = vadd.f32 %v41, %v1738
    %v1740 = vpop.f32.mrb[0].mxu0
    %1741 = vdwg.mxu0
    %v1742 = vtanh.pop %v1739
    %v1743 = vxor.u32 %v1739, 2147483648
    %v1744 = vmul.f32 %v1743, 1.442695
    %v1745 = vpow.pop %v1744
    %v1746 = vadd.f32 %v1745, 1.0
    %v1747 = vrcp.pop %v1746
    %v1748 = vmul.f32 1.0, %v1747
    %1750 = vrot.lane.b32.xlu0 %v1748, 96
    %v1751 = vpop.permute.xlu0 %1750
    %v1753 = vmul.f32 %v1742, %v1751
    %1754 = vrot.lane.b32.xlu0 %v1748, 64
    %v1755 = vpop.permute.xlu0 %1754
    %v1757 = vmul.f32 %v1664, %v1755
    %v1758 = vadd.f32 %v1753, %v1757
    %s1759 = scalar_lea.vmem %s4, 40
    %1760 = vst.msk [vmem:[%s1759] sm:$0xff] %vm49, %v1758
    %s1761 = scalar_lea.vmem %s0, 48
    %v1762 = vld [vmem:[%s1761] sm:$0xff]
    %v1763 = vld [vmem:[%s1] sm:$0xff]
    %v1764 = vld [vmem:[%s1 + $0x8] sm:$0xff]
    %v1765 = vld [vmem:[%s1 + $0x10] sm:$0xff]
    %v1766 = vld [vmem:[%s1 + $0x18] sm:$0xff]
    %v1768 = vsel %vm49, %v1758, 0
    %1770 = vmatprep.subr.mxu0 0.0
    %1771 = vmatpush1.msra.mxu0 %v1763
    %1772 = vmatprep.subr.mxu0 0.0
    %1773 = vmatpush1.msra.mxu0 %v1764
    %1774 = vmatprep.subr.mxu0 0.0
    %1775 = vmatpush1.msra.mxu0 %v1765
    %1776 = vmatprep.subr.mxu0 0.0
    %1777 = vmatpush1.msra.mxu0 %v1766
    %1778 = vmatprep.subr.mxu0 0.0
    %1779 = vmatpush1.msra.mxu0 0.0
    %1780 = vmatprep.subr.mxu0 0.0
    %1781 = vmatpush1.msra.mxu0 0.0
    %1782 = vmatprep.subr.mxu0 0.0
    %1783 = vmatpush1.msra.mxu0 0.0
    %1784 = vmatprep.subr.mxu0 0.0
    %1785 = vmatpush1.msra.mxu0 0.0
    %1786 = vmatprep.subr.mxu0 0.0
    %1787 = vmatpush1.msra.mxu0 0.0
    %1788 = vmatprep.subr.mxu0 0.0
    %1789 = vmatpush1.msra.mxu0 0.0
    %1790 = vmatprep.subr.mxu0 0.0
    %1791 = vmatpush1.msra.mxu0 0.0
    %1792 = vmatprep.subr.mxu0 0.0
    %1793 = vmatpush1.msra.mxu0 0.0
    %1794 = vmatprep.subr.mxu0 0.0
    %1795 = vmatpush1.msra.mxu0 0.0
    %1796 = vmatprep.subr.mxu0 0.0
    %1797 = vmatpush1.msra.mxu0 0.0
    %1798 = vmatprep.subr.mxu0 0.0
    %1799 = vmatpush1.msra.mxu0 0.0
    %1800 = vmatprep.subr.mxu0 0.0
    %1801 = vmatpush1.msra.mxu0 0.0
    %1802 = vmatprep.subr.mxu0 0.0
    %1803 = vmatpush1.msra.mxu0 0.0
    %1804 = vmatprep.subr.mxu0 0.0
    %1805 = vmatpush1.msra.mxu0 0.0
    %1806 = vmatprep.subr.mxu0 0.0
    %1807 = vmatpush1.msra.mxu0 0.0
    %1808 = vmatprep.subr.mxu0 0.0
    %1809 = vmatpush1.msra.mxu0 0.0
    %1810 = vmatprep.subr.mxu0 0.0
    %1811 = vmatpush1.msra.mxu0 0.0
    %1812 = vmatprep.subr.mxu0 0.0
    %1813 = vmatpush1.msra.mxu0 0.0
    %1814 = vmatprep.subr.mxu0 0.0
    %1815 = vmatpush1.msra.mxu0 0.0
    %1816 = vmatprep.subr.mxu0 0.0
    %1817 = vmatpush1.msra.mxu0 0.0
    %1818 = vmatprep.subr.mxu0 0.0
    %1819 = vmatpush1.msra.mxu0 0.0
    %1820 = vmatprep.subr.mxu0 0.0
    %1821 = vmatpush1.msra.mxu0 0.0
    %1822 = vmatprep.subr.mxu0 0.0
    %1823 = vmatpush1.msra.mxu0 0.0
    %1824 = vmatprep.subr.mxu0 0.0
    %1825 = vmatpush1.msra.mxu0 0.0
    %1826 = vmatprep.subr.mxu0 0.0
    %1827 = vmatpush1.msra.mxu0 0.0
    %1828 = vmatprep.subr.mxu0 0.0
    %1829 = vmatpush1.msra.mxu0 0.0
    %1830 = vmatprep.subr.mxu0 0.0
    %1831 = vmatpush1.msra.mxu0 0.0
    %1832 = vmatprep.subr.mxu0 0.0
    %1833 = vmatpush1.msra.mxu0 0.0
    %1834 = vmatprep.mubr.f32.mxu0 0.0
    %1835 = vmatmul.mubr.f32.gmra.mrb[0].mxu0 %v1768
    %v1836 = vpop.f32.mrb[0].mxu0
    %v1837 = vadd.f32 %v1762, %v1836
    %v1838 = vpop.f32.mrb[0].mxu0
    %1839 = vdwg.mxu0
    %v1840 = vtanh.pop %v1837
    %v1841 = vxor.u32 %v1837, 2147483648
    %v1842 = vmul.f32 %v1841, 1.442695
    %v1843 = vpow.pop %v1842
    %v1844 = vadd.f32 %v1843, 1.0
    %v1845 = vrcp.pop %v1844
    %v1846 = vmul.f32 1.0, %v1845
    %1848 = vrot.lane.b32.xlu0 %v1846, 96
    %v1849 = vpop.permute.xlu0 %1848
    %v1851 = vmul.f32 %v1840, %v1849
    %1852 = vrot.lane.b32.xlu0 %v1846, 64
    %v1853 = vpop.permute.xlu0 %1852
    %v1855 = vmul.f32 %v1758, %v1853
    %v1856 = vadd.f32 %v1851, %v1855
    %v1857 = vld [vmem:[%s140] sm:$0xff]
    %v1858 = vld [vmem:[%s140 + $0x8] sm:$0xff]
    %v1859 = vld [vmem:[%s140 + $0x10] sm:$0xff]
    %v1860 = vld [vmem:[%s140 + $0x18] sm:$0xff]
    %v1862 = vsel %vm49, %v1856, 0
    %1864 = vmatprep.subr.mxu0 0.0
    %1865 = vmatpush1.msra.mxu0 %v1857
    %1866 = vmatprep.subr.mxu0 0.0
    %1867 = vmatpush1.msra.mxu0 %v1858
    %1868 = vmatprep.subr.mxu0 0.0
    %1869 = vmatpush1.msra.mxu0 %v1859
    %1870 = vmatprep.subr.mxu0 0.0
    %1871 = vmatpush1.msra.mxu0 %v1860
    %1872 = vmatprep.subr.mxu0 0.0
    %1873 = vmatpush1.msra.mxu0 0.0
    %1874 = vmatprep.subr.mxu0 0.0
    %1875 = vmatpush1.msra.mxu0 0.0
    %1876 = vmatprep.subr.mxu0 0.0
    %1877 = vmatpush1.msra.mxu0 0.0
    %1878 = vmatprep.subr.mxu0 0.0
    %1879 = vmatpush1.msra.mxu0 0.0
    %1880 = vmatprep.subr.mxu0 0.0
    %1881 = vmatpush1.msra.mxu0 0.0
    %1882 = vmatprep.subr.mxu0 0.0
    %1883 = vmatpush1.msra.mxu0 0.0
    %1884 = vmatprep.subr.mxu0 0.0
    %1885 = vmatpush1.msra.mxu0 0.0
    %1886 = vmatprep.subr.mxu0 0.0
    %1887 = vmatpush1.msra.mxu0 0.0
    %1888 = vmatprep.subr.mxu0 0.0
    %1889 = vmatpush1.msra.mxu0 0.0
    %1890 = vmatprep.subr.mxu0 0.0
    %1891 = vmatpush1.msra.mxu0 0.0
    %1892 = vmatprep.subr.mxu0 0.0
    %1893 = vmatpush1.msra.mxu0 0.0
    %1894 = vmatprep.subr.mxu0 0.0
    %1895 = vmatpush1.msra.mxu0 0.0
    %1896 = vmatprep.subr.mxu0 0.0
    %1897 = vmatpush1.msra.mxu0 0.0
    %1898 = vmatprep.subr.mxu0 0.0
    %1899 = vmatpush1.msra.mxu0 0.0
    %1900 = vmatprep.subr.mxu0 0.0
    %1901 = vmatpush1.msra.mxu0 0.0
    %1902 = vmatprep.subr.mxu0 0.0
    %1903 = vmatpush1.msra.mxu0 0.0
    %1904 = vmatprep.subr.mxu0 0.0
    %1905 = vmatpush1.msra.mxu0 0.0
    %1906 = vmatprep.subr.mxu0 0.0
    %1907 = vmatpush1.msra.mxu0 0.0
    %1908 = vmatprep.subr.mxu0 0.0
    %1909 = vmatpush1.msra.mxu0 0.0
    %1910 = vmatprep.subr.mxu0 0.0
    %1911 = vmatpush1.msra.mxu0 0.0
    %1912 = vmatprep.subr.mxu0 0.0
    %1913 = vmatpush1.msra.mxu0 0.0
    %1914 = vmatprep.subr.mxu0 0.0
    %1915 = vmatpush1.msra.mxu0 0.0
    %1916 = vmatprep.subr.mxu0 0.0
    %1917 = vmatpush1.msra.mxu0 0.0
    %1918 = vmatprep.subr.mxu0 0.0
    %1919 = vmatpush1.msra.mxu0 0.0
    %1920 = vmatprep.subr.mxu0 0.0
    %1921 = vmatpush1.msra.mxu0 0.0
    %1922 = vmatprep.subr.mxu0 0.0
    %1923 = vmatpush1.msra.mxu0 0.0
    %1924 = vmatprep.subr.mxu0 0.0
    %1925 = vmatpush1.msra.mxu0 0.0
    %1926 = vmatprep.subr.mxu0 0.0
    %1927 = vmatpush1.msra.mxu0 0.0
    %1928 = vmatprep.mubr.f32.mxu0 0.0
    %1929 = vmatmul.mubr.f32.gmra.mrb[0].mxu0 %v1862
    %v1930 = vpop.f32.mrb[0].mxu0
    %v1931 = vadd.f32 %v33, %v1930
    %v1932 = vpop.f32.mrb[0].mxu0
    %1933 = vdwg.mxu0
    %v1934 = vtanh.pop %v1931
    %v1935 = vxor.u32 %v1931, 2147483648
    %v1936 = vmul.f32 %v1935, 1.442695
    %v1937 = vpow.pop %v1936
    %v1938 = vadd.f32 %v1937, 1.0
    %v1939 = vrcp.pop %v1938
    %v1940 = vmul.f32 1.0, %v1939
    %1942 = vrot.lane.b32.xlu0 %v1940, 96
    %v1943 = vpop.permute.xlu0 %1942
    %v1945 = vmul.f32 %v1934, %v1943
    %1946 = vrot.lane.b32.xlu0 %v1940, 64
    %v1947 = vpop.permute.xlu0 %1946
    %v1949 = vmul.f32 %v1856, %v1947
    %v1950 = vadd.f32 %v1945, %v1949
    %v1951 = vld [vmem:[%s235] sm:$0xff]
    %v1952 = vld [vmem:[%s235 + $0x8] sm:$0xff]
    %v1953 = vld [vmem:[%s235 + $0x10] sm:$0xff]
    %v1954 = vld [vmem:[%s235 + $0x18] sm:$0xff]
    %v1956 = vsel %vm49, %v1950, 0
    %1958 = vmatprep.subr.mxu0 0.0
    %1959 = vmatpush1.msra.mxu0 %v1951
    %1960 = vmatprep.subr.mxu0 0.0
    %1961 = vmatpush1.msra.mxu0 %v1952
    %1962 = vmatprep.subr.mxu0 0.0
    %1963 = vmatpush1.msra.mxu0 %v1953
    %1964 = vmatprep.subr.mxu0 0.0
    %1965 = vmatpush1.msra.mxu0 %v1954
    %1966 = vmatprep.subr.mxu0 0.0
    %1967 = vmatpush1.msra.mxu0 0.0
    %1968 = vmatprep.subr.mxu0 0.0
    %1969 = vmatpush1.msra.mxu0 0.0
    %1970 = vmatprep.subr.mxu0 0.0
    %1971 = vmatpush1.msra.mxu0 0.0
    %1972 = vmatprep.subr.mxu0 0.0
    %1973 = vmatpush1.msra.mxu0 0.0
    %1974 = vmatprep.subr.mxu0 0.0
    %1975 = vmatpush1.msra.mxu0 0.0
    %1976 = vmatprep.subr.mxu0 0.0
    %1977 = vmatpush1.msra.mxu0 0.0
    %1978 = vmatprep.subr.mxu0 0.0
    %1979 = vmatpush1.msra.mxu0 0.0
    %1980 = vmatprep.subr.mxu0 0.0
    %1981 = vmatpush1.msra.mxu0 0.0
    %1982 = vmatprep.subr.mxu0 0.0
    %1983 = vmatpush1.msra.mxu0 0.0
    %1984 = vmatprep.subr.mxu0 0.0
    %1985 = vmatpush1.msra.mxu0 0.0
    %1986 = vmatprep.subr.mxu0 0.0
    %1987 = vmatpush1.msra.mxu0 0.0
    %1988 = vmatprep.subr.mxu0 0.0
    %1989 = vmatpush1.msra.mxu0 0.0
    %1990 = vmatprep.subr.mxu0 0.0
    %1991 = vmatpush1.msra.mxu0 0.0
    %1992 = vmatprep.subr.mxu0 0.0
    %1993 = vmatpush1.msra.mxu0 0.0
    %1994 = vmatprep.subr.mxu0 0.0
    %1995 = vmatpush1.msra.mxu0 0.0
    %1996 = vmatprep.subr.mxu0 0.0
    %1997 = vmatpush1.msra.mxu0 0.0
    %1998 = vmatprep.subr.mxu0 0.0
    %1999 = vmatpush1.msra.mxu0 0.0
    %2000 = vmatprep.subr.mxu0 0.0
    %2001 = vmatpush1.msra.mxu0 0.0
    %2002 = vmatprep.subr.mxu0 0.0
    %2003 = vmatpush1.msra.mxu0 0.0
    %2004 = vmatprep.subr.mxu0 0.0
    %2005 = vmatpush1.msra.mxu0 0.0
    %2006 = vmatprep.subr.mxu0 0.0
    %2007 = vmatpush1.msra.mxu0 0.0
    %2008 = vmatprep.subr.mxu0 0.0
    %2009 = vmatpush1.msra.mxu0 0.0
    %2010 = vmatprep.subr.mxu0 0.0
    %2011 = vmatpush1.msra.mxu0 0.0
    %2012 = vmatprep.subr.mxu0 0.0
    %2013 = vmatpush1.msra.mxu0 0.0
    %2014 = vmatprep.subr.mxu0 0.0
    %2015 = vmatpush1.msra.mxu0 0.0
    %2016 = vmatprep.subr.mxu0 0.0
    %2017 = vmatpush1.msra.mxu0 0.0
    %2018 = vmatprep.subr.mxu0 0.0
    %2019 = vmatpush1.msra.mxu0 0.0
    %2020 = vmatprep.subr.mxu0 0.0
    %2021 = vmatpush1.msra.mxu0 0.0
    %2022 = vmatprep.mubr.f32.mxu0 0.0
    %2023 = vmatmul.mubr.f32.gmra.mrb[0].mxu0 %v1956
    %v2024 = vpop.f32.mrb[0].mxu0
    %v2025 = vadd.f32 %v41, %v2024
    %v2026 = vpop.f32.mrb[0].mxu0
    %2027 = vdwg.mxu0
    %v2028 = vtanh.pop %v2025
    %v2029 = vxor.u32 %v2025, 2147483648
    %v2030 = vmul.f32 %v2029, 1.442695
    %v2031 = vpow.pop %v2030
    %v2032 = vadd.f32 %v2031, 1.0
    %v2033 = vrcp.pop %v2032
    %v2034 = vmul.f32 1.0, %v2033
    %2036 = vrot.lane.b32.xlu0 %v2034, 96
    %v2037 = vpop.permute.xlu0 %2036
    %v2039 = vmul.f32 %v2028, %v2037
    %2040 = vrot.lane.b32.xlu0 %v2034, 64
    %v2041 = vpop.permute.xlu0 %2040
    %v2043 = vmul.f32 %v1950, %v2041
    %v2044 = vadd.f32 %v2039, %v2043
    %s2045 = scalar_lea.vmem %s4, 48
    %2046 = vst.msk [vmem:[%s2045] sm:$0xff] %vm49, %v2044
    %s2047 = scalar_lea.vmem %s0, 56
    %v2048 = vld [vmem:[%s2047] sm:$0xff]
    %v2049 = vld [vmem:[%s1] sm:$0xff]
    %v2050 = vld [vmem:[%s1 + $0x8] sm:$0xff]
    %v2051 = vld [vmem:[%s1 + $0x10] sm:$0xff]
    %v2052 = vld [vmem:[%s1 + $0x18] sm:$0xff]
    %v2054 = vsel %vm49, %v2044, 0
    %2056 = vmatprep.subr.mxu0 0.0
    %2057 = vmatpush1.msra.mxu0 %v2049
    %2058 = vmatprep.subr.mxu0 0.0
    %2059 = vmatpush1.msra.mxu0 %v2050
    %2060 = vmatprep.subr.mxu0 0.0
    %2061 = vmatpush1.msra.mxu0 %v2051
    %2062 = vmatprep.subr.mxu0 0.0
    %2063 = vmatpush1.msra.mxu0 %v2052
    %2064 = vmatprep.subr.mxu0 0.0
    %2065 = vmatpush1.msra.mxu0 0.0
    %2066 = vmatprep.subr.mxu0 0.0
    %2067 = vmatpush1.msra.mxu0 0.0
    %2068 = vmatprep.subr.mxu0 0.0
    %2069 = vmatpush1.msra.mxu0 0.0
    %2070 = vmatprep.subr.mxu0 0.0
    %2071 = vmatpush1.msra.mxu0 0.0
    %2072 = vmatprep.subr.mxu0 0.0
    %2073 = vmatpush1.msra.mxu0 0.0
    %2074 = vmatprep.subr.mxu0 0.0
    %2075 = vmatpush1.msra.mxu0 0.0
    %2076 = vmatprep.subr.mxu0 0.0
    %2077 = vmatpush1.msra.mxu0 0.0
    %2078 = vmatprep.subr.mxu0 0.0
    %2079 = vmatpush1.msra.mxu0 0.0
    %2080 = vmatprep.subr.mxu0 0.0
    %2081 = vmatpush1.msra.mxu0 0.0
    %2082 = vmatprep.subr.mxu0 0.0
    %2083 = vmatpush1.msra.mxu0 0.0
    %2084 = vmatprep.subr.mxu0 0.0
    %2085 = vmatpush1.msra.mxu0 0.0
    %2086 = vmatprep.subr.mxu0 0.0
    %2087 = vmatpush1.msra.mxu0 0.0
    %2088 = vmatprep.subr.mxu0 0.0
    %2089 = vmatpush1.msra.mxu0 0.0
    %2090 = vmatprep.subr.mxu0 0.0
    %2091 = vmatpush1.msra.mxu0 0.0
    %2092 = vmatprep.subr.mxu0 0.0
    %2093 = vmatpush1.msra.mxu0 0.0
    %2094 = vmatprep.subr.mxu0 0.0
    %2095 = vmatpush1.msra.mxu0 0.0
    %2096 = vmatprep.subr.mxu0 0.0
    %2097 = vmatpush1.msra.mxu0 0.0
    %2098 = vmatprep.subr.mxu0 0.0
    %2099 = vmatpush1.msra.mxu0 0.0
    %2100 = vmatprep.subr.mxu0 0.0
    %2101 = vmatpush1.msra.mxu0 0.0
    %2102 = vmatprep.subr.mxu0 0.0
    %2103 = vmatpush1.msra.mxu0 0.0
    %2104 = vmatprep.subr.mxu0 0.0
    %2105 = vmatpush1.msra.mxu0 0.0
    %2106 = vmatprep.subr.mxu0 0.0
    %2107 = vmatpush1.msra.mxu0 0.0
    %2108 = vmatprep.subr.mxu0 0.0
    %2109 = vmatpush1.msra.mxu0 0.0
    %2110 = vmatprep.subr.mxu0 0.0
    %2111 = vmatpush1.msra.mxu0 0.0
    %2112 = vmatprep.subr.mxu0 0.0
    %2113 = vmatpush1.msra.mxu0 0.0
    %2114 = vmatprep.subr.mxu0 0.0
    %2115 = vmatpush1.msra.mxu0 0.0
    %2116 = vmatprep.subr.mxu0 0.0
    %2117 = vmatpush1.msra.mxu0 0.0
    %2118 = vmatprep.subr.mxu0 0.0
    %2119 = vmatpush1.msra.mxu0 0.0
    %2120 = vmatprep.mubr.f32.mxu0 0.0
    %2121 = vmatmul.mubr.f32.gmra.mrb[0].mxu0 %v2054
    %v2122 = vpop.f32.mrb[0].mxu0
    %v2123 = vadd.f32 %v2048, %v2122
    %v2124 = vpop.f32.mrb[0].mxu0
    %2125 = vdwg.mxu0
    %v2126 = vtanh.pop %v2123
    %v2127 = vxor.u32 %v2123, 2147483648
    %v2128 = vmul.f32 %v2127, 1.442695
    %v2129 = vpow.pop %v2128
    %v2130 = vadd.f32 %v2129, 1.0
    %v2131 = vrcp.pop %v2130
    %v2132 = vmul.f32 1.0, %v2131
    %2134 = vrot.lane.b32.xlu0 %v2132, 96
    %v2135 = vpop.permute.xlu0 %2134
    %v2137 = vmul.f32 %v2126, %v2135
    %2138 = vrot.lane.b32.xlu0 %v2132, 64
    %v2139 = vpop.permute.xlu0 %2138
    %v2141 = vmul.f32 %v2044, %v2139
    %v2142 = vadd.f32 %v2137, %v2141
    %v2143 = vld [vmem:[%s140] sm:$0xff]
    %v2144 = vld [vmem:[%s140 + $0x8] sm:$0xff]
    %v2145 = vld [vmem:[%s140 + $0x10] sm:$0xff]
    %v2146 = vld [vmem:[%s140 + $0x18] sm:$0xff]
    %v2148 = vsel %vm49, %v2142, 0
    %2150 = vmatprep.subr.mxu0 0.0
    %2151 = vmatpush1.msra.mxu0 %v2143
    %2152 = vmatprep.subr.mxu0 0.0
    %2153 = vmatpush1.msra.mxu0 %v2144
    %2154 = vmatprep.subr.mxu0 0.0
    %2155 = vmatpush1.msra.mxu0 %v2145
    %2156 = vmatprep.subr.mxu0 0.0
    %2157 = vmatpush1.msra.mxu0 %v2146
    %2158 = vmatprep.subr.mxu0 0.0
    %2159 = vmatpush1.msra.mxu0 0.0
    %2160 = vmatprep.subr.mxu0 0.0
    %2161 = vmatpush1.msra.mxu0 0.0
    %2162 = vmatprep.subr.mxu0 0.0
    %2163 = vmatpush1.msra.mxu0 0.0
    %2164 = vmatprep.subr.mxu0 0.0
    %2165 = vmatpush1.msra.mxu0 0.0
    %2166 = vmatprep.subr.mxu0 0.0
    %2167 = vmatpush1.msra.mxu0 0.0
    %2168 = vmatprep.subr.mxu0 0.0
    %2169 = vmatpush1.msra.mxu0 0.0
    %2170 = vmatprep.subr.mxu0 0.0
    %2171 = vmatpush1.msra.mxu0 0.0
    %2172 = vmatprep.subr.mxu0 0.0
    %2173 = vmatpush1.msra.mxu0 0.0
    %2174 = vmatprep.subr.mxu0 0.0
    %2175 = vmatpush1.msra.mxu0 0.0
    %2176 = vmatprep.subr.mxu0 0.0
    %2177 = vmatpush1.msra.mxu0 0.0
    %2178 = vmatprep.subr.mxu0 0.0
    %2179 = vmatpush1.msra.mxu0 0.0
    %2180 = vmatprep.subr.mxu0 0.0
    %2181 = vmatpush1.msra.mxu0 0.0
    %2182 = vmatprep.subr.mxu0 0.0
    %2183 = vmatpush1.msra.mxu0 0.0
    %2184 = vmatprep.subr.mxu0 0.0
    %2185 = vmatpush1.msra.mxu0 0.0
    %2186 = vmatprep.subr.mxu0 0.0
    %2187 = vmatpush1.msra.mxu0 0.0
    %2188 = vmatprep.subr.mxu0 0.0
    %2189 = vmatpush1.msra.mxu0 0.0
    %2190 = vmatprep.subr.mxu0 0.0
    %2191 = vmatpush1.msra.mxu0 0.0
    %2192 = vmatprep.subr.mxu0 0.0
    %2193 = vmatpush1.msra.mxu0 0.0
    %2194 = vmatprep.subr.mxu0 0.0
    %2195 = vmatpush1.msra.mxu0 0.0
    %2196 = vmatprep.subr.mxu0 0.0
    %2197 = vmatpush1.msra.mxu0 0.0
    %2198 = vmatprep.subr.mxu0 0.0
    %2199 = vmatpush1.msra.mxu0 0.0
    %2200 = vmatprep.subr.mxu0 0.0
    %2201 = vmatpush1.msra.mxu0 0.0
    %2202 = vmatprep.subr.mxu0 0.0
    %2203 = vmatpush1.msra.mxu0 0.0
    %2204 = vmatprep.subr.mxu0 0.0
    %2205 = vmatpush1.msra.mxu0 0.0
    %2206 = vmatprep.subr.mxu0 0.0
    %2207 = vmatpush1.msra.mxu0 0.0
    %2208 = vmatprep.subr.mxu0 0.0
    %2209 = vmatpush1.msra.mxu0 0.0
    %2210 = vmatprep.subr.mxu0 0.0
    %2211 = vmatpush1.msra.mxu0 0.0
    %2212 = vmatprep.subr.mxu0 0.0
    %2213 = vmatpush1.msra.mxu0 0.0
    %2214 = vmatprep.mubr.f32.mxu0 0.0
    %2215 = vmatmul.mubr.f32.gmra.mrb[0].mxu0 %v2148
    %v2216 = vpop.f32.mrb[0].mxu0
    %v2217 = vadd.f32 %v33, %v2216
    %v2218 = vpop.f32.mrb[0].mxu0
    %2219 = vdwg.mxu0
    %v2220 = vtanh.pop %v2217
    %v2221 = vxor.u32 %v2217, 2147483648
    %v2222 = vmul.f32 %v2221, 1.442695
    %v2223 = vpow.pop %v2222
    %v2224 = vadd.f32 %v2223, 1.0
    %v2225 = vrcp.pop %v2224
    %v2226 = vmul.f32 1.0, %v2225
    %2228 = vrot.lane.b32.xlu0 %v2226, 96
    %v2229 = vpop.permute.xlu0 %2228
    %v2231 = vmul.f32 %v2220, %v2229
    %2232 = vrot.lane.b32.xlu0 %v2226, 64
    %v2233 = vpop.permute.xlu0 %2232
    %v2235 = vmul.f32 %v2142, %v2233
    %v2236 = vadd.f32 %v2231, %v2235
    %v2237 = vld [vmem:[%s235] sm:$0xff]
    %v2238 = vld [vmem:[%s235 + $0x8] sm:$0xff]
    %v2239 = vld [vmem:[%s235 + $0x10] sm:$0xff]
    %v2240 = vld [vmem:[%s235 + $0x18] sm:$0xff]
    %v2242 = vsel %vm49, %v2236, 0
    %2244 = vmatprep.subr.mxu0 0.0
    %2245 = vmatpush1.msra.mxu0 %v2237
    %2246 = vmatprep.subr.mxu0 0.0
    %2247 = vmatpush1.msra.mxu0 %v2238
    %2248 = vmatprep.subr.mxu0 0.0
    %2249 = vmatpush1.msra.mxu0 %v2239
    %2250 = vmatprep.subr.mxu0 0.0
    %2251 = vmatpush1.msra.mxu0 %v2240
    %2252 = vmatprep.subr.mxu0 0.0
    %2253 = vmatpush1.msra.mxu0 0.0
    %2254 = vmatprep.subr.mxu0 0.0
    %2255 = vmatpush1.msra.mxu0 0.0
    %2256 = vmatprep.subr.mxu0 0.0
    %2257 = vmatpush1.msra.mxu0 0.0
    %2258 = vmatprep.subr.mxu0 0.0
    %2259 = vmatpush1.msra.mxu0 0.0
    %2260 = vmatprep.subr.mxu0 0.0
    %2261 = vmatpush1.msra.mxu0 0.0
    %2262 = vmatprep.subr.mxu0 0.0
    %2263 = vmatpush1.msra.mxu0 0.0
    %2264 = vmatprep.subr.mxu0 0.0
    %2265 = vmatpush1.msra.mxu0 0.0
    %2266 = vmatprep.subr.mxu0 0.0
    %2267 = vmatpush1.msra.mxu0 0.0
    %2268 = vmatprep.subr.mxu0 0.0
    %2269 = vmatpush1.msra.mxu0 0.0
    %2270 = vmatprep.subr.mxu0 0.0
    %2271 = vmatpush1.msra.mxu0 0.0
    %2272 = vmatprep.subr.mxu0 0.0
    %2273 = vmatpush1.msra.mxu0 0.0
    %2274 = vmatprep.subr.mxu0 0.0
    %2275 = vmatpush1.msra.mxu0 0.0
    %2276 = vmatprep.subr.mxu0 0.0
    %2277 = vmatpush1.msra.mxu0 0.0
    %2278 = vmatprep.subr.mxu0 0.0
    %2279 = vmatpush1.msra.mxu0 0.0
    %2280 = vmatprep.subr.mxu0 0.0
    %2281 = vmatpush1.msra.mxu0 0.0
    %2282 = vmatprep.subr.mxu0 0.0
    %2283 = vmatpush1.msra.mxu0 0.0
    %2284 = vmatprep.subr.mxu0 0.0
    %2285 = vmatpush1.msra.mxu0 0.0
    %2286 = vmatprep.subr.mxu0 0.0
    %2287 = vmatpush1.msra.mxu0 0.0
    %2288 = vmatprep.subr.mxu0 0.0
    %2289 = vmatpush1.msra.mxu0 0.0
    %2290 = vmatprep.subr.mxu0 0.0
    %2291 = vmatpush1.msra.mxu0 0.0
    %2292 = vmatprep.subr.mxu0 0.0
    %2293 = vmatpush1.msra.mxu0 0.0
    %2294 = vmatprep.subr.mxu0 0.0
    %2295 = vmatpush1.msra.mxu0 0.0
    %2296 = vmatprep.subr.mxu0 0.0
    %2297 = vmatpush1.msra.mxu0 0.0
    %2298 = vmatprep.subr.mxu0 0.0
    %2299 = vmatpush1.msra.mxu0 0.0
    %2300 = vmatprep.subr.mxu0 0.0
    %2301 = vmatpush1.msra.mxu0 0.0
    %2302 = vmatprep.subr.mxu0 0.0
    %2303 = vmatpush1.msra.mxu0 0.0
    %2304 = vmatprep.subr.mxu0 0.0
    %2305 = vmatpush1.msra.mxu0 0.0
    %2306 = vmatprep.subr.mxu0 0.0
    %2307 = vmatpush1.msra.mxu0 0.0
    %2308 = vmatprep.mubr.f32.mxu0 0.0
    %2309 = vmatmul.mubr.f32.gmra.mrb[0].mxu0 %v2242
    %v2310 = vpop.f32.mrb[0].mxu0
    %v2311 = vadd.f32 %v41, %v2310
    %v2312 = vpop.f32.mrb[0].mxu0
    %2313 = vdwg.mxu0
    %v2314 = vtanh.pop %v2311
    %v2315 = vxor.u32 %v2311, 2147483648
    %v2316 = vmul.f32 %v2315, 1.442695
    %v2317 = vpow.pop %v2316
    %v2318 = vadd.f32 %v2317, 1.0
    %v2319 = vrcp.pop %v2318
    %v2320 = vmul.f32 1.0, %v2319
    %2322 = vrot.lane.b32.xlu0 %v2320, 96
    %v2323 = vpop.permute.xlu0 %2322
    %v2325 = vmul.f32 %v2314, %v2323
    %2326 = vrot.lane.b32.xlu0 %v2320, 64
    %v2327 = vpop.permute.xlu0 %2326
    %v2329 = vmul.f32 %v2236, %v2327
    %v2330 = vadd.f32 %v2325, %v2329
    %s2331 = scalar_lea.vmem %s4, 56
    %2332 = vst.msk [vmem:[%s2331] sm:$0xff] %vm49, %v2330
    %2333 = vst.msk [vmem:[#allocation2] sm:$0xff] %vm49, %v2330
    // Predicated region
    $region22: #{_rhn_forward_impl.1} parent=1 // pred_check
      _
    $region23: #{_rhn_forward_impl.1} parent=1 // pred_check_branch
      %2335 = sbr.rel (0) target = $region25
    $region24: #{_rhn_forward_impl.1} parent=1 // pred_region
      _
    $region25: #{_rhn_forward_impl.1} parent=1 // pred_fallthru
      _
    // Predicated region
    $region26: #{_rhn_forward_impl.1} parent=1 // pred_check
      _
    $region27: #{_rhn_forward_impl.1} parent=1 // pred_check_branch
      %2337 = sbr.rel (0) target = $region29
    $region28: #{_rhn_forward_impl.1} parent=1 // pred_region
      %s2339 = ssub.s32 128, 128
      %2340 = vsyncadd [#allocation3], %s2339
      %s2342 = sshll.u32 [#allocation2], 4
      %s2343 = int_to_ptr.vmem [resolvable:$true] %s2342
      %2345 = dma.vmem_to_hbm [thread:$0]  %s2343, 128, %s5, [#allocation3]
    $region29: #{_rhn_forward_impl.1} parent=1 // pred_fallthru
      _
    // Predicated region
    $region30: #{_rhn_forward_impl.1} parent=1 // pred_check
      _
    $region31: #{_rhn_forward_impl.1} parent=1 // pred_check_branch
      %2347 = sbr.rel (0) target = $region33
    $region32: #{_rhn_forward_impl.1} parent=1 // pred_region
      _
    $region33: #{_rhn_forward_impl.1} parent=1 // pred_fallthru
      _
    // Predicated region
    $region34: #{_rhn_forward_impl.1} parent=1 // pred_check
      _
    $region35: #{_rhn_forward_impl.1} parent=1 // pred_check_branch
      %2349 = sbr.rel (0) target = $region37
    $region36: #{_rhn_forward_impl.1} parent=1 // pred_region
      %2350 = dma.done [#allocation3], 128
    $region37: #{_rhn_forward_impl.1} parent=1 // pred_fallthru
      _
    %2351 = vsyncpa [#allocation3], 1

</llo_original>
